<compile_context>
chip_gen: v7x
topology: tpu7x:2x2x1
jax: 0.10.0
libtpu: 0.0.40
codegen_flags: <defaults>
</compile_context>

<pallas_src>
import functools

import jax
import jax.numpy as jnp
from jax.experimental import pallas as pl
from jax.experimental.pallas import tpu as pltpu


def _round_up(v, m):
    return ((v + m - 1) // m) * m


def _compsae_kernel(x_ref,
                    w_enc_ref, b_enc_ref,
                    w_pf_ref, b_pf_ref,
                    w_qkv_ref, b_qkv_ref,
                    w_o_ref, b_o_ref,
                    w_pc_ref, b_pc_ref,
                    w_gf_ref, w_gc_ref, b_g_ref,
                    w_dec_ref, b_dec_ref,
                    out_ref,
                    *, n_heads, head_dim, d_c, sparsity_k, tb, seq, bisect_iters):
    f32 = jnp.float32
    bf16 = jnp.bfloat16
    rows = tb * seq

    def mm(a, w_ref):  # bf16 MXU inputs, f32 accumulation
        return jnp.dot(a.astype(bf16), w_ref[...], preferred_element_type=f32)

    x = x_ref[...].reshape(rows, -1)                            # (R, d_in)

    # --- encode: f = relu(x @ W_enc + b_enc) ---
    f = jnp.maximum(mm(x, w_enc_ref) + b_enc_ref[...], 0.0)     # (R, d_f)

    # --- composition stream: c = proj_f(f) ---
    c = mm(f, w_pf_ref) + b_pf_ref[...]                         # (R, d_c)

    # --- multi-head self-attention over the sequence (attn dropout = identity) ---
    # fused QKV projection: ONE (R, d_c) @ (d_c, 3*d_c) matmul, bias pre-fused.
    qkv = (mm(c, w_qkv_ref) + b_qkv_ref[...]).reshape(tb, seq, 3 * d_c)
    scale = 1.0 / (head_dim ** 0.5)
    o_heads = []
    for h in range(n_heads):                                    # static head loop
        lo_q = h * head_dim
        q = qkv[:, :, lo_q:lo_q + head_dim]                     # (TB, S, hd)
        k = qkv[:, :, d_c + lo_q:d_c + lo_q + head_dim]
        v = qkv[:, :, 2 * d_c + lo_q:2 * d_c + lo_q + head_dim]
        s = jnp.einsum("bqd,bkd->bqk", q.astype(bf16), k.astype(bf16),
                       preferred_element_type=f32) * scale      # (TB, S, S)
        s = s - jnp.max(s, axis=-1, keepdims=True)
        p = jnp.exp(s)
        # softmax normalization via the (otherwise idle) EUP reciprocal slot
        p = p * pl.reciprocal(jnp.sum(p, axis=-1, keepdims=True), approx=True)
        o_heads.append(jnp.einsum("bqk,bkd->bqd", p.astype(bf16), v.astype(bf16),
                                  preferred_element_type=f32))  # (TB, S, hd)
    o_cat = jnp.concatenate(o_heads, axis=-1).reshape(rows, d_c)
    # single full-width out-projection on the concatenated heads
    c_attn = mm(o_cat, w_o_ref) + b_o_ref[...]                  # (R, d_c)

    # --- f_composed = proj_c(c_attn) (module dropout = identity) ---
    f_comp = mm(c_attn, w_pc_ref) + b_pc_ref[...]               # (R, d_f)

    # --- gate = sigmoid(Linear(cat([f, f_comp]))), concat folded into two matmuls ---
    gate = jax.nn.sigmoid(mm(f, w_gf_ref) + mm(f_comp, w_gc_ref) + b_g_ref[...])
    f_final = gate * f + (1.0 - gate) * f_comp                  # (R, d_f)

    # --- top-k thresholding via per-row binary search on the threshold value ---
    # invariant: count(f_final >= lo) >= k and count(f_final >= hi) < k; after
    # the loop lo is within (hi0-lo0)/2^iters (~1e-5) of the exact k-th largest.
    kf = float(sparsity_k)
    lo = jnp.min(f_final, axis=-1, keepdims=True)
    hi = jnp.max(f_final, axis=-1, keepdims=True)
    for _ in range(bisect_iters):
        mid = 0.5 * (lo + hi)
        cnt = jnp.sum((f_final >= mid).astype(f32), axis=-1, keepdims=True)
        ge = cnt >= kf
        lo = jnp.where(ge, mid, lo)
        hi = jnp.where(ge, hi, mid)
    f_sparse = jnp.maximum(f_final - lo, 0.0)

    # --- decode: x_hat = f_sparse @ W_dec + b_dec (lane-dense padded columns) ---
    x_hat = mm(f_sparse, w_dec_ref) + b_dec_ref[...]            # (R, d_in_p)
    out_ref[...] = x_hat.reshape(tb, seq, -1).astype(out_ref.dtype)


_PARAM_ORDER = ("W_enc", "b_enc", "W_pf", "b_pf", "W_qkv", "b_qkv",
                "W_o", "b_o", "W_pc", "b_pc", "W_gf", "W_gc", "b_g",
                "W_dec", "b_dec")


def compsae_forward(x, params, *, n_heads, sparsity_k, batch_tile=None,
                    bisect_iters=22):
    B, S, d_in = x.shape
    d_f = params["W_enc"].shape[1]
    d_c = params["W_pf"].shape[1]
    d_in_p = params["W_dec"].shape[1]          # lane-dense (padded) decode width
    head_dim = d_c // n_heads

    # Fold enough whole sequences into one grid step to reach ~256 MXU rows.
    if batch_tile is None:
        batch_tile = max(1, min(B, max(1, 256 // max(S, 1))))
        while B % batch_tile:
            batch_tile -= 1
    tb = batch_tile
    assert B % tb == 0

    kernel = functools.partial(
        _compsae_kernel, n_heads=n_heads, head_dim=head_dim, d_c=d_c,
        sparsity_k=sparsity_k, tb=tb, seq=S, bisect_iters=bisect_iters)

    def full_spec(a):
        zeros = (0,) * a.ndim
        return pl.BlockSpec(a.shape, lambda b, _z=zeros: _z)

    ordered = [params[k] for k in _PARAM_ORDER]
    in_specs = ([pl.BlockSpec((tb, S, d_in), lambda b: (b, 0, 0))]
                + [full_spec(p) for p in ordered])
    out_specs = pl.BlockSpec((tb, S, d_in_p), lambda b: (b, 0, 0))

    # Advisory cost estimate (dominated by the d_f-wide matmuls).
    rows = B * S
    mm_flops = 2 * rows * (d_in * d_f + d_f * d_c + d_c * 3 * d_c + d_c * d_c
                           + d_c * d_f + 2 * d_f * d_f + d_f * d_in_p)
    attn_flops = 4 * B * n_heads * S * S * head_dim
    bytes_accessed = (x.size * x.dtype.itemsize
                      + sum(int(p.size) * p.dtype.itemsize for p in ordered)
                      + B * S * d_in_p * x.dtype.itemsize)
    cost = pl.CostEstimate(flops=int(mm_flops + attn_flops),
                           transcendentals=int(rows * (n_heads * S + d_f)),
                           bytes_accessed=int(bytes_accessed))

    # NOTE: at production widths (d_f >= 4K) the (d_f, d_f) gate weights should
    # additionally be K/N-tiled over an extra grid axis (or single-buffered) to
    # fit v7x's 64 MiB VMEM; unnecessary at these demo sizes.
    out = pl.pallas_call(
        kernel,
        out_shape=jax.ShapeDtypeStruct((B, S, d_in_p), x.dtype),
        grid=(B // tb,),
        in_specs=in_specs,
        out_specs=out_specs,
        compiler_params=pltpu.CompilerParams(
            dimension_semantics=("parallel",),          # shards across v7x's 2 TCs
            vmem_limit_bytes=48 * 1024 * 1024),
        cost_estimate=cost,
    )(x, *ordered)

    return out if d_in_p == d_in else out[..., :d_in]


def init_params(key, d_in, d_f, d_c, n_heads, *, w_dtype=jnp.bfloat16):
    """Deterministic synthetic init matching CompSAE parameter shapes.

    Weights are stored pre-transposed to (in, out); the MHA in-projection is
    pre-fused into one (d_c, 3*d_c) matrix; the gate Linear is pre-split into
    its f / f_composed halves; decode columns are zero-padded to a multiple of
    128 lanes. Matmul weights are bf16; biases stay f32.
    """
    ks = jax.random.split(key, 16)

    def nrm(k, shape, scale):
        return jax.random.normal(k, shape, jnp.float32) * scale

    d_in_p = _round_up(d_in, 128)

    p = {}
    p["W_enc"] = nrm(ks[0], (d_in, d_f), (2.0 / d_in) ** 0.5).astype(w_dtype)
    p["b_enc"] = jnp.zeros((1, d_f), jnp.float32)
    p["W_pf"] = nrm(ks[1], (d_f, d_c), d_f ** -0.5).astype(w_dtype)       # proj_f
    p["b_pf"] = nrm(ks[2], (1, d_c), 0.02)
    p["W_qkv"] = nrm(ks[3], (d_c, 3 * d_c), d_c ** -0.5).astype(w_dtype)  # fused QKV
    p["b_qkv"] = nrm(ks[4], (1, 3 * d_c), 0.02)
    p["W_o"] = nrm(ks[5], (d_c, d_c), d_c ** -0.5).astype(w_dtype)        # MHA out-proj
    p["b_o"] = nrm(ks[6], (1, d_c), 0.02)
    p["W_pc"] = nrm(ks[7], (d_c, d_f), d_c ** -0.5).astype(w_dtype)       # proj_c
    p["b_pc"] = nrm(ks[8], (1, d_f), 0.02)
    p["W_gf"] = nrm(ks[9], (d_f, d_f), (2 * d_f) ** -0.5).astype(w_dtype)  # gate split
    p["W_gc"] = nrm(ks[10], (d_f, d_f), (2 * d_f) ** -0.5).astype(w_dtype)
    p["b_g"] = jnp.zeros((1, d_f), jnp.float32)
    w_dec = nrm(ks[11], (d_f, d_in), (2.0 / d_f) ** 0.5)
    p["W_dec"] = jnp.pad(w_dec, ((0, 0), (0, d_in_p - d_in))).astype(w_dtype)
    p["b_dec"] = jnp.zeros((1, d_in_p), jnp.float32)
    return p


def compsae_reference(x, p, *, n_heads, sparsity_k):
    """Pure-JAX reference mirroring the PyTorch forward (eval mode) and the
    kernel's bf16-input / f32-accumulate matmul precision."""
    f32, bf16 = jnp.float32, jnp.bfloat16
    B, S, d_in = x.shape
    d_c = p["W_pf"].shape[1]
    hd = d_c // n_heads

    def mm(a, w):
        return jnp.dot(a.astype(bf16), w.astype(bf16), preferred_element_type=f32)

    x2 = x.reshape(B * S, d_in)
    f = jax.nn.relu(mm(x2, p["W_enc"]) + p["b_enc"])
    c = mm(f, p["W_pf"]) + p["b_pf"]
    qkv = (mm(c, p["W_qkv"]) + p["b_qkv"]).reshape(B, S, 3 * d_c)
    heads = []
    for h in range(n_heads):
        q = qkv[:, :, h * hd:(h + 1) * hd]
        k = qkv[:, :, d_c + h * hd:d_c + (h + 1) * hd]
        v = qkv[:, :, 2 * d_c + h * hd:2 * d_c + (h + 1) * hd]
        s = jnp.einsum("bqd,bkd->bqk", q.astype(bf16), k.astype(bf16),
                       preferred_element_type=f32) / (hd ** 0.5)
        a = jax.nn.softmax(s, axis=-1)
        heads.append(jnp.einsum("bqk,bkd->bqd", a.astype(bf16), v.astype(bf16),
                                preferred_element_type=f32))
    o = jnp.concatenate(heads, axis=-1).reshape(B * S, d_c)
    c_attn = mm(o, p["W_o"]) + p["b_o"]
    f_comp = mm(c_attn, p["W_pc"]) + p["b_pc"]
    gate = jax.nn.sigmoid(mm(f, p["W_gf"]) + mm(f_comp, p["W_gc"]) + p["b_g"])
    f_final = gate * f + (1.0 - gate) * f_comp
    thr = jax.lax.top_k(f_final, sparsity_k)[0][..., -1:]
    f_sparse = jax.nn.relu(f_final - thr)
    x_hat = mm(f_sparse, p["W_dec"]) + p["b_dec"]
    return x_hat[:, :d_in].reshape(B, S, d_in)


if __name__ == "__main__":
    # Small config consistent with CompSAEConfig (d_in, d_f, d_c, n_heads, sparsity_k)
    B, S = 2, 8
    d_in, d_f, d_c, n_heads, sparsity_k = 32, 128, 64, 4, 16

    key = jax.random.PRNGKey(0)
    kx, kp = jax.random.split(key)
    x = jax.random.normal(kx, (B, S, d_in), jnp.float32)
    params = init_params(kp, d_in, d_f, d_c, n_heads)

    x_hat = compsae_forward(x, params, n_heads=n_heads, sparsity_k=sparsity_k)
    x_hat = jax.block_until_ready(x_hat)

    ref = compsae_reference(x, params, n_heads=n_heads, sparsity_k=sparsity_k)
    assert x_hat.shape == (B, S, d_in)
    assert bool(jnp.all(jnp.isfinite(x_hat)))
    max_err = float(jnp.max(jnp.abs(x_hat - ref)))
    assert max_err < 5e-2, f"max abs error too large: {max_err}"
    print("KERNEL_OK")
</pallas_src>

<mosaic_0001>
module attributes {stable_mosaic.version = 11 : i64} {
  func.func @_compsae_kernel(%arg0: i32, %arg1: memref<2x8x32xf32, #tpu.memory_space<vmem>>, %arg2: memref<32x128xbf16, #tpu.memory_space<vmem>>, %arg3: memref<1x128xf32, #tpu.memory_space<vmem>>, %arg4: memref<128x64xbf16, #tpu.memory_space<vmem>>, %arg5: memref<1x64xf32, #tpu.memory_space<vmem>>, %arg6: memref<64x192xbf16, #tpu.memory_space<vmem>>, %arg7: memref<1x192xf32, #tpu.memory_space<vmem>>, %arg8: memref<64x64xbf16, #tpu.memory_space<vmem>>, %arg9: memref<1x64xf32, #tpu.memory_space<vmem>>, %arg10: memref<64x128xbf16, #tpu.memory_space<vmem>>, %arg11: memref<1x128xf32, #tpu.memory_space<vmem>>, %arg12: memref<128x128xbf16, #tpu.memory_space<vmem>>, %arg13: memref<128x128xbf16, #tpu.memory_space<vmem>>, %arg14: memref<1x128xf32, #tpu.memory_space<vmem>>, %arg15: memref<128x128xbf16, #tpu.memory_space<vmem>>, %arg16: memref<1x128xf32, #tpu.memory_space<vmem>>, %arg17: memref<2x8x128xf32, #tpu.memory_space<vmem>>) attributes {dimension_semantics = [#tpu.dimension_semantics<parallel>], iteration_bounds = array<i64: 1>, scalar_prefetch = 0 : i64, scratch_operands = 0 : i64, tpu.core_type = #tpu.core_type<tc>, window_params = [{transform_indices = @transform_0, window_bounds = array<i64: 2, 8, 32>}, {pipeline_mode = #tpu.pipeline_mode<synchronous>, transform_indices = @transform_1, window_bounds = array<i64: 32, 128>}, {pipeline_mode = #tpu.pipeline_mode<synchronous>, transform_indices = @transform_2, window_bounds = array<i64: 1, 128>}, {pipeline_mode = #tpu.pipeline_mode<synchronous>, transform_indices = @transform_3, window_bounds = array<i64: 128, 64>}, {pipeline_mode = #tpu.pipeline_mode<synchronous>, transform_indices = @transform_4, window_bounds = array<i64: 1, 64>}, {pipeline_mode = #tpu.pipeline_mode<synchronous>, transform_indices = @transform_5, window_bounds = array<i64: 64, 192>}, {pipeline_mode = #tpu.pipeline_mode<synchronous>, transform_indices = @transform_6, window_bounds = array<i64: 1, 192>}, {pipeline_mode = #tpu.pipeline_mode<synchronous>, transform_indices = @transform_7, window_bounds = array<i64: 64, 64>}, {pipeline_mode = #tpu.pipeline_mode<synchronous>, transform_indices = @transform_8, window_bounds = array<i64: 1, 64>}, {pipeline_mode = #tpu.pipeline_mode<synchronous>, transform_indices = @transform_9, window_bounds = array<i64: 64, 128>}, {pipeline_mode = #tpu.pipeline_mode<synchronous>, transform_indices = @transform_10, window_bounds = array<i64: 1, 128>}, {pipeline_mode = #tpu.pipeline_mode<synchronous>, transform_indices = @transform_11, window_bounds = array<i64: 128, 128>}, {pipeline_mode = #tpu.pipeline_mode<synchronous>, transform_indices = @transform_12, window_bounds = array<i64: 128, 128>}, {pipeline_mode = #tpu.pipeline_mode<synchronous>, transform_indices = @transform_13, window_bounds = array<i64: 1, 128>}, {pipeline_mode = #tpu.pipeline_mode<synchronous>, transform_indices = @transform_14, window_bounds = array<i64: 128, 128>}, {pipeline_mode = #tpu.pipeline_mode<synchronous>, transform_indices = @transform_15, window_bounds = array<i64: 1, 128>}, {transform_indices = @transform_16, window_bounds = array<i64: 2, 8, 128>}]} {
    %c0 = arith.constant 0 : index
    %c0_0 = arith.constant 0 : index
    %c0_1 = arith.constant 0 : index
    %0 = vector.load %arg1[%c0, %c0_0, %c0_1] : memref<2x8x32xf32, #tpu.memory_space<vmem>>, vector<2x8x32xf32>
    %1 = vector.shape_cast %0 : vector<2x8x32xf32> to vector<16x32xf32>
    %2 = arith.truncf %1 : vector<16x32xf32> to vector<16x32xbf16>
    %c0_2 = arith.constant 0 : index
    %c0_3 = arith.constant 0 : index
    %3 = vector.load %arg2[%c0_2, %c0_3] : memref<32x128xbf16, #tpu.memory_space<vmem>>, vector<32x128xbf16>
    %cst = arith.constant dense<0.000000e+00> : vector<16x128xf32>
    %4 = tpu.matmul %2, %3, %cst {dimension_numbers = #tpu.dot_dimension_numbers<[1], [0], [0], [1], [0, 0, 1, 1], [], []>} : vector<16x32xbf16>, vector<32x128xbf16>, vector<16x128xf32> -> vector<16x128xf32>
    %c0_4 = arith.constant 0 : index
    %c0_5 = arith.constant 0 : index
    %5 = vector.load %arg3[%c0_4, %c0_5] : memref<1x128xf32, #tpu.memory_space<vmem>>, vector<1x128xf32>
    %6 = vector.broadcast %5 : vector<1x128xf32> to vector<16x128xf32>
    %7 = arith.addf %4, %6 : vector<16x128xf32>
    %cst_6 = arith.constant 0.000000e+00 : f32
    %8 = vector.broadcast %cst_6 : f32 to vector<16x128xf32>
    %9 = arith.maximumf %7, %8 : vector<16x128xf32>
    %10 = arith.truncf %9 : vector<16x128xf32> to vector<16x128xbf16>
    %c0_7 = arith.constant 0 : index
    %c0_8 = arith.constant 0 : index
    %11 = vector.load %arg4[%c0_7, %c0_8] : memref<128x64xbf16, #tpu.memory_space<vmem>>, vector<128x64xbf16>
    %cst_9 = arith.constant dense<0.000000e+00> : vector<16x64xf32>
    %12 = tpu.matmul %10, %11, %cst_9 {dimension_numbers = #tpu.dot_dimension_numbers<[1], [0], [0], [1], [0, 0, 1, 1], [], []>} : vector<16x128xbf16>, vector<128x64xbf16>, vector<16x64xf32> -> vector<16x64xf32>
    %c0_10 = arith.constant 0 : index
    %c0_11 = arith.constant 0 : index
    %13 = vector.load %arg5[%c0_10, %c0_11] : memref<1x64xf32, #tpu.memory_space<vmem>>, vector<1x64xf32>
    %14 = vector.broadcast %13 : vector<1x64xf32> to vector<16x64xf32>
    %15 = arith.addf %12, %14 : vector<16x64xf32>
    %16 = arith.truncf %15 : vector<16x64xf32> to vector<16x64xbf16>
    %c0_12 = arith.constant 0 : index
    %c0_13 = arith.constant 0 : index
    %17 = vector.load %arg6[%c0_12, %c0_13] : memref<64x192xbf16, #tpu.memory_space<vmem>>, vector<64x192xbf16>
    %cst_14 = arith.constant dense<0.000000e+00> : vector<16x192xf32>
    %18 = tpu.matmul %16, %17, %cst_14 {dimension_numbers = #tpu.dot_dimension_numbers<[1], [0], [0], [1], [0, 0, 1, 1], [], []>} : vector<16x64xbf16>, vector<64x192xbf16>, vector<16x192xf32> -> vector<16x192xf32>
    %c0_15 = arith.constant 0 : index
    %c0_16 = arith.constant 0 : index
    %19 = vector.load %arg7[%c0_15, %c0_16] : memref<1x192xf32, #tpu.memory_space<vmem>>, vector<1x192xf32>
    %20 = vector.broadcast %19 : vector<1x192xf32> to vector<16x192xf32>
    %21 = arith.addf %18, %20 : vector<16x192xf32>
    %22 = vector.shape_cast %21 : vector<16x192xf32> to vector<2x8x192xf32>
    %23 = vector.extract_strided_slice %22 {offsets = [0, 0, 0], sizes = [2, 8, 16], strides = [1, 1, 1]} : vector<2x8x192xf32> to vector<2x8x16xf32>
    %24 = vector.extract_strided_slice %22 {offsets = [0, 0, 64], sizes = [2, 8, 16], strides = [1, 1, 1]} : vector<2x8x192xf32> to vector<2x8x16xf32>
    %25 = vector.extract_strided_slice %22 {offsets = [0, 0, 128], sizes = [2, 8, 16], strides = [1, 1, 1]} : vector<2x8x192xf32> to vector<2x8x16xf32>
    %26 = arith.truncf %23 : vector<2x8x16xf32> to vector<2x8x16xbf16>
    %27 = arith.truncf %24 : vector<2x8x16xf32> to vector<2x8x16xbf16>
    "tpu.trace_start"() <{level = 10 : i32, message = "bqd,bkd->bqk"}> : () -> ()
    %cst_17 = arith.constant dense<0.000000e+00> : vector<2x8x8xf32>
    %28 = tpu.matmul %26, %27, %cst_17 {dimension_numbers = #tpu.dot_dimension_numbers<[2], [2], [1], [1], [0, 0, 0, 1, 1, 1], [0], [0]>} : vector<2x8x16xbf16>, vector<2x8x16xbf16>, vector<2x8x8xf32> -> vector<2x8x8xf32>
    "tpu.trace_stop"() : () -> ()
    %cst_18 = arith.constant 2.500000e-01 : f32
    %29 = vector.broadcast %cst_18 : f32 to vector<2x8x8xf32>
    %30 = arith.mulf %28, %29 : vector<2x8x8xf32>
    %cst_19 = arith.constant dense<0xFF800000> : vector<2x8xf32>
    %31 = vector.multi_reduction <maximumf>, %30, %cst_19 [2] : vector<2x8x8xf32> to vector<2x8xf32>
    %32 = vector.shape_cast %31 : vector<2x8xf32> to vector<2x8x1xf32>
    %33 = vector.broadcast %32 : vector<2x8x1xf32> to vector<2x8x8xf32>
    %34 = arith.subf %30, %33 : vector<2x8x8xf32>
    %35 = math.exp %34 : vector<2x8x8xf32>
    %cst_20 = arith.constant dense<0.000000e+00> : vector<2x8xf32>
    %36 = vector.multi_reduction <add>, %35, %cst_20 [2] : vector<2x8x8xf32> to vector<2x8xf32>
    %37 = vector.shape_cast %36 : vector<2x8xf32> to vector<2x8x1xf32>
    %38 = tpu.reciprocal %37 {approx = true} : vector<2x8x1xf32> -> vector<2x8x1xf32>
    %39 = vector.broadcast %38 : vector<2x8x1xf32> to vector<2x8x8xf32>
    %40 = arith.mulf %35, %39 : vector<2x8x8xf32>
    %41 = arith.truncf %40 : vector<2x8x8xf32> to vector<2x8x8xbf16>
    %42 = arith.truncf %25 : vector<2x8x16xf32> to vector<2x8x16xbf16>
    "tpu.trace_start"() <{level = 10 : i32, message = "bqk,bkd->bqd"}> : () -> ()
    %cst_21 = arith.constant dense<0.000000e+00> : vector<2x8x16xf32>
    %43 = tpu.matmul %41, %42, %cst_21 {dimension_numbers = #tpu.dot_dimension_numbers<[2], [1], [1], [2], [0, 0, 0, 1, 1, 2], [0], [0]>} : vector<2x8x8xbf16>, vector<2x8x16xbf16>, vector<2x8x16xf32> -> vector<2x8x16xf32>
    "tpu.trace_stop"() : () -> ()
    %44 = vector.extract_strided_slice %22 {offsets = [0, 0, 16], sizes = [2, 8, 16], strides = [1, 1, 1]} : vector<2x8x192xf32> to vector<2x8x16xf32>
    %45 = vector.extract_strided_slice %22 {offsets = [0, 0, 80], sizes = [2, 8, 16], strides = [1, 1, 1]} : vector<2x8x192xf32> to vector<2x8x16xf32>
    %46 = vector.extract_strided_slice %22 {offsets = [0, 0, 144], sizes = [2, 8, 16], strides = [1, 1, 1]} : vector<2x8x192xf32> to vector<2x8x16xf32>
    %47 = arith.truncf %44 : vector<2x8x16xf32> to vector<2x8x16xbf16>
    %48 = arith.truncf %45 : vector<2x8x16xf32> to vector<2x8x16xbf16>
    "tpu.trace_start"() <{level = 10 : i32, message = "bqd,bkd->bqk"}> : () -> ()
    %cst_22 = arith.constant dense<0.000000e+00> : vector<2x8x8xf32>
    %49 = tpu.matmul %47, %48, %cst_22 {dimension_numbers = #tpu.dot_dimension_numbers<[2], [2], [1], [1], [0, 0, 0, 1, 1, 1], [0], [0]>} : vector<2x8x16xbf16>, vector<2x8x16xbf16>, vector<2x8x8xf32> -> vector<2x8x8xf32>
    "tpu.trace_stop"() : () -> ()
    %cst_23 = arith.constant 2.500000e-01 : f32
    %50 = vector.broadcast %cst_23 : f32 to vector<2x8x8xf32>
    %51 = arith.mulf %49, %50 : vector<2x8x8xf32>
    %cst_24 = arith.constant dense<0xFF800000> : vector<2x8xf32>
    %52 = vector.multi_reduction <maximumf>, %51, %cst_24 [2] : vector<2x8x8xf32> to vector<2x8xf32>
    %53 = vector.shape_cast %52 : vector<2x8xf32> to vector<2x8x1xf32>
    %54 = vector.broadcast %53 : vector<2x8x1xf32> to vector<2x8x8xf32>
    %55 = arith.subf %51, %54 : vector<2x8x8xf32>
    %56 = math.exp %55 : vector<2x8x8xf32>
    %cst_25 = arith.constant dense<0.000000e+00> : vector<2x8xf32>
    %57 = vector.multi_reduction <add>, %56, %cst_25 [2] : vector<2x8x8xf32> to vector<2x8xf32>
    %58 = vector.shape_cast %57 : vector<2x8xf32> to vector<2x8x1xf32>
    %59 = tpu.reciprocal %58 {approx = true} : vector<2x8x1xf32> -> vector<2x8x1xf32>
    %60 = vector.broadcast %59 : vector<2x8x1xf32> to vector<2x8x8xf32>
    %61 = arith.mulf %56, %60 : vector<2x8x8xf32>
    %62 = arith.truncf %61 : vector<2x8x8xf32> to vector<2x8x8xbf16>
    %63 = arith.truncf %46 : vector<2x8x16xf32> to vector<2x8x16xbf16>
    "tpu.trace_start"() <{level = 10 : i32, message = "bqk,bkd->bqd"}> : () -> ()
    %cst_26 = arith.constant dense<0.000000e+00> : vector<2x8x16xf32>
    %64 = tpu.matmul %62, %63, %cst_26 {dimension_numbers = #tpu.dot_dimension_numbers<[2], [1], [1], [2], [0, 0, 0, 1, 1, 2], [0], [0]>} : vector<2x8x8xbf16>, vector<2x8x16xbf16>, vector<2x8x16xf32> -> vector<2x8x16xf32>
    "tpu.trace_stop"() : () -> ()
    %65 = vector.extract_strided_slice %22 {offsets = [0, 0, 32], sizes = [2, 8, 16], strides = [1, 1, 1]} : vector<2x8x192xf32> to vector<2x8x16xf32>
    %66 = vector.extract_strided_slice %22 {offsets = [0, 0, 96], sizes = [2, 8, 16], strides = [1, 1, 1]} : vector<2x8x192xf32> to vector<2x8x16xf32>
    %67 = vector.extract_strided_slice %22 {offsets = [0, 0, 160], sizes = [2, 8, 16], strides = [1, 1, 1]} : vector<2x8x192xf32> to vector<2x8x16xf32>
    %68 = arith.truncf %65 : vector<2x8x16xf32> to vector<2x8x16xbf16>
    %69 = arith.truncf %66 : vector<2x8x16xf32> to vector<2x8x16xbf16>
    "tpu.trace_start"() <{level = 10 : i32, message = "bqd,bkd->bqk"}> : () -> ()
    %cst_27 = arith.constant dense<0.000000e+00> : vector<2x8x8xf32>
    %70 = tpu.matmul %68, %69, %cst_27 {dimension_numbers = #tpu.dot_dimension_numbers<[2], [2], [1], [1], [0, 0, 0, 1, 1, 1], [0], [0]>} : vector<2x8x16xbf16>, vector<2x8x16xbf16>, vector<2x8x8xf32> -> vector<2x8x8xf32>
    "tpu.trace_stop"() : () -> ()
    %cst_28 = arith.constant 2.500000e-01 : f32
    %71 = vector.broadcast %cst_28 : f32 to vector<2x8x8xf32>
    %72 = arith.mulf %70, %71 : vector<2x8x8xf32>
    %cst_29 = arith.constant dense<0xFF800000> : vector<2x8xf32>
    %73 = vector.multi_reduction <maximumf>, %72, %cst_29 [2] : vector<2x8x8xf32> to vector<2x8xf32>
    %74 = vector.shape_cast %73 : vector<2x8xf32> to vector<2x8x1xf32>
    %75 = vector.broadcast %74 : vector<2x8x1xf32> to vector<2x8x8xf32>
    %76 = arith.subf %72, %75 : vector<2x8x8xf32>
    %77 = math.exp %76 : vector<2x8x8xf32>
    %cst_30 = arith.constant dense<0.000000e+00> : vector<2x8xf32>
    %78 = vector.multi_reduction <add>, %77, %cst_30 [2] : vector<2x8x8xf32> to vector<2x8xf32>
    %79 = vector.shape_cast %78 : vector<2x8xf32> to vector<2x8x1xf32>
    %80 = tpu.reciprocal %79 {approx = true} : vector<2x8x1xf32> -> vector<2x8x1xf32>
    %81 = vector.broadcast %80 : vector<2x8x1xf32> to vector<2x8x8xf32>
    %82 = arith.mulf %77, %81 : vector<2x8x8xf32>
    %83 = arith.truncf %82 : vector<2x8x8xf32> to vector<2x8x8xbf16>
    %84 = arith.truncf %67 : vector<2x8x16xf32> to vector<2x8x16xbf16>
    "tpu.trace_start"() <{level = 10 : i32, message = "bqk,bkd->bqd"}> : () -> ()
    %cst_31 = arith.constant dense<0.000000e+00> : vector<2x8x16xf32>
    %85 = tpu.matmul %83, %84, %cst_31 {dimension_numbers = #tpu.dot_dimension_numbers<[2], [1], [1], [2], [0, 0, 0, 1, 1, 2], [0], [0]>} : vector<2x8x8xbf16>, vector<2x8x16xbf16>, vector<2x8x16xf32> -> vector<2x8x16xf32>
    "tpu.trace_stop"() : () -> ()
    %86 = vector.extract_strided_slice %22 {offsets = [0, 0, 48], sizes = [2, 8, 16], strides = [1, 1, 1]} : vector<2x8x192xf32> to vector<2x8x16xf32>
    %87 = vector.extract_strided_slice %22 {offsets = [0, 0, 112], sizes = [2, 8, 16], strides = [1, 1, 1]} : vector<2x8x192xf32> to vector<2x8x16xf32>
    %88 = vector.extract_strided_slice %22 {offsets = [0, 0, 176], sizes = [2, 8, 16], strides = [1, 1, 1]} : vector<2x8x192xf32> to vector<2x8x16xf32>
    %89 = arith.truncf %86 : vector<2x8x16xf32> to vector<2x8x16xbf16>
    %90 = arith.truncf %87 : vector<2x8x16xf32> to vector<2x8x16xbf16>
    "tpu.trace_start"() <{level = 10 : i32, message = "bqd,bkd->bqk"}> : () -> ()
    %cst_32 = arith.constant dense<0.000000e+00> : vector<2x8x8xf32>
    %91 = tpu.matmul %89, %90, %cst_32 {dimension_numbers = #tpu.dot_dimension_numbers<[2], [2], [1], [1], [0, 0, 0, 1, 1, 1], [0], [0]>} : vector<2x8x16xbf16>, vector<2x8x16xbf16>, vector<2x8x8xf32> -> vector<2x8x8xf32>
    "tpu.trace_stop"() : () -> ()
    %cst_33 = arith.constant 2.500000e-01 : f32
    %92 = vector.broadcast %cst_33 : f32 to vector<2x8x8xf32>
    %93 = arith.mulf %91, %92 : vector<2x8x8xf32>
    %cst_34 = arith.constant dense<0xFF800000> : vector<2x8xf32>
    %94 = vector.multi_reduction <maximumf>, %93, %cst_34 [2] : vector<2x8x8xf32> to vector<2x8xf32>
    %95 = vector.shape_cast %94 : vector<2x8xf32> to vector<2x8x1xf32>
    %96 = vector.broadcast %95 : vector<2x8x1xf32> to vector<2x8x8xf32>
    %97 = arith.subf %93, %96 : vector<2x8x8xf32>
    %98 = math.exp %97 : vector<2x8x8xf32>
    %cst_35 = arith.constant dense<0.000000e+00> : vector<2x8xf32>
    %99 = vector.multi_reduction <add>, %98, %cst_35 [2] : vector<2x8x8xf32> to vector<2x8xf32>
    %100 = vector.shape_cast %99 : vector<2x8xf32> to vector<2x8x1xf32>
    %101 = tpu.reciprocal %100 {approx = true} : vector<2x8x1xf32> -> vector<2x8x1xf32>
    %102 = vector.broadcast %101 : vector<2x8x1xf32> to vector<2x8x8xf32>
    %103 = arith.mulf %98, %102 : vector<2x8x8xf32>
    %104 = arith.truncf %103 : vector<2x8x8xf32> to vector<2x8x8xbf16>
    %105 = arith.truncf %88 : vector<2x8x16xf32> to vector<2x8x16xbf16>
    "tpu.trace_start"() <{level = 10 : i32, message = "bqk,bkd->bqd"}> : () -> ()
    %cst_36 = arith.constant dense<0.000000e+00> : vector<2x8x16xf32>
    %106 = tpu.matmul %104, %105, %cst_36 {dimension_numbers = #tpu.dot_dimension_numbers<[2], [1], [1], [2], [0, 0, 0, 1, 1, 2], [0], [0]>} : vector<2x8x8xbf16>, vector<2x8x16xbf16>, vector<2x8x16xf32> -> vector<2x8x16xf32>
    "tpu.trace_stop"() : () -> ()
    %107 = tpu.concatenate %43, %64, %85, %106 in 2 : vector<2x8x16xf32>, vector<2x8x16xf32>, vector<2x8x16xf32>, vector<2x8x16xf32> -> vector<2x8x64xf32>
    %108 = vector.shape_cast %107 : vector<2x8x64xf32> to vector<16x64xf32>
    %109 = arith.truncf %108 : vector<16x64xf32> to vector<16x64xbf16>
    %c0_37 = arith.constant 0 : index
    %c0_38 = arith.constant 0 : index
    %110 = vector.load %arg8[%c0_37, %c0_38] : memref<64x64xbf16, #tpu.memory_space<vmem>>, vector<64x64xbf16>
    %cst_39 = arith.constant dense<0.000000e+00> : vector<16x64xf32>
    %111 = tpu.matmul %109, %110, %cst_39 {dimension_numbers = #tpu.dot_dimension_numbers<[1], [0], [0], [1], [0, 0, 1, 1], [], []>} : vector<16x64xbf16>, vector<64x64xbf16>, vector<16x64xf32> -> vector<16x64xf32>
    %c0_40 = arith.constant 0 : index
    %c0_41 = arith.constant 0 : index
    %112 = vector.load %arg9[%c0_40, %c0_41] : memref<1x64xf32, #tpu.memory_space<vmem>>, vector<1x64xf32>
    %113 = vector.broadcast %112 : vector<1x64xf32> to vector<16x64xf32>
    %114 = arith.addf %111, %113 : vector<16x64xf32>
    %115 = arith.truncf %114 : vector<16x64xf32> to vector<16x64xbf16>
    %c0_42 = arith.constant 0 : index
    %c0_43 = arith.constant 0 : index
    %116 = vector.load %arg10[%c0_42, %c0_43] : memref<64x128xbf16, #tpu.memory_space<vmem>>, vector<64x128xbf16>
    %cst_44 = arith.constant dense<0.000000e+00> : vector<16x128xf32>
    %117 = tpu.matmul %115, %116, %cst_44 {dimension_numbers = #tpu.dot_dimension_numbers<[1], [0], [0], [1], [0, 0, 1, 1], [], []>} : vector<16x64xbf16>, vector<64x128xbf16>, vector<16x128xf32> -> vector<16x128xf32>
    %c0_45 = arith.constant 0 : index
    %c0_46 = arith.constant 0 : index
    %118 = vector.load %arg11[%c0_45, %c0_46] : memref<1x128xf32, #tpu.memory_space<vmem>>, vector<1x128xf32>
    %119 = vector.broadcast %118 : vector<1x128xf32> to vector<16x128xf32>
    %120 = arith.addf %117, %119 : vector<16x128xf32>
    %121 = arith.truncf %9 : vector<16x128xf32> to vector<16x128xbf16>
    %c0_47 = arith.constant 0 : index
    %c0_48 = arith.constant 0 : index
    %122 = vector.load %arg12[%c0_47, %c0_48] : memref<128x128xbf16, #tpu.memory_space<vmem>>, vector<128x128xbf16>
    %cst_49 = arith.constant dense<0.000000e+00> : vector<16x128xf32>
    %123 = tpu.matmul %121, %122, %cst_49 {dimension_numbers = #tpu.dot_dimension_numbers<[1], [0], [0], [1], [0, 0, 1, 1], [], []>} : vector<16x128xbf16>, vector<128x128xbf16>, vector<16x128xf32> -> vector<16x128xf32>
    %124 = arith.truncf %120 : vector<16x128xf32> to vector<16x128xbf16>
    %c0_50 = arith.constant 0 : index
    %c0_51 = arith.constant 0 : index
    %125 = vector.load %arg13[%c0_50, %c0_51] : memref<128x128xbf16, #tpu.memory_space<vmem>>, vector<128x128xbf16>
    %cst_52 = arith.constant dense<0.000000e+00> : vector<16x128xf32>
    %126 = tpu.matmul %124, %125, %cst_52 {dimension_numbers = #tpu.dot_dimension_numbers<[1], [0], [0], [1], [0, 0, 1, 1], [], []>} : vector<16x128xbf16>, vector<128x128xbf16>, vector<16x128xf32> -> vector<16x128xf32>
    %127 = arith.addf %123, %126 : vector<16x128xf32>
    %c0_53 = arith.constant 0 : index
    %c0_54 = arith.constant 0 : index
    %128 = vector.load %arg14[%c0_53, %c0_54] : memref<1x128xf32, #tpu.memory_space<vmem>>, vector<1x128xf32>
    %129 = vector.broadcast %128 : vector<1x128xf32> to vector<16x128xf32>
    %130 = arith.addf %127, %129 : vector<16x128xf32>
    %131 = arith.negf %130 : vector<16x128xf32>
    %132 = math.exp %131 : vector<16x128xf32>
    %cst_55 = arith.constant 1.000000e+00 : f32
    %133 = vector.broadcast %cst_55 : f32 to vector<16x128xf32>
    %134 = arith.addf %133, %132 : vector<16x128xf32>
    %135 = arith.divf %133, %134 : vector<16x128xf32>
    %136 = arith.mulf %135, %9 : vector<16x128xf32>
    %cst_56 = arith.constant 1.000000e+00 : f32
    %137 = vector.broadcast %cst_56 : f32 to vector<16x128xf32>
    %138 = arith.subf %137, %135 : vector<16x128xf32>
    %139 = arith.mulf %138, %120 : vector<16x128xf32>
    %140 = arith.addf %136, %139 : vector<16x128xf32>
    %cst_57 = arith.constant dense<0x7F800000> : vector<16xf32>
    %141 = vector.multi_reduction <minimumf>, %140, %cst_57 [1] : vector<16x128xf32> to vector<16xf32>
    %142 = vector.shape_cast %141 : vector<16xf32> to vector<16x1xf32>
    %cst_58 = arith.constant dense<0xFF800000> : vector<16xf32>
    %143 = vector.multi_reduction <maximumf>, %140, %cst_58 [1] : vector<16x128xf32> to vector<16xf32>
    %144 = vector.shape_cast %143 : vector<16xf32> to vector<16x1xf32>
    %145 = arith.addf %142, %144 : vector<16x1xf32>
    %cst_59 = arith.constant 5.000000e-01 : f32
    %146 = vector.broadcast %cst_59 : f32 to vector<16x1xf32>
    %147 = arith.mulf %146, %145 : vector<16x1xf32>
    %148 = vector.broadcast %147 : vector<16x1xf32> to vector<16x128xf32>
    %149 = arith.cmpf oge, %140, %148 : vector<16x128xf32>
    %150 = arith.extui %149 : vector<16x128xi1> to vector<16x128xi32>
    %151 = arith.sitofp %150 : vector<16x128xi32> to vector<16x128xf32>
    %cst_60 = arith.constant dense<0.000000e+00> : vector<16xf32>
    %152 = vector.multi_reduction <add>, %151, %cst_60 [1] : vector<16x128xf32> to vector<16xf32>
    %153 = vector.shape_cast %152 : vector<16xf32> to vector<16x1xf32>
    %cst_61 = arith.constant 1.600000e+01 : f32
    %154 = vector.broadcast %cst_61 : f32 to vector<16x1xf32>
    %155 = arith.cmpf oge, %153, %154 : vector<16x1xf32>
    %156 = arith.select %155, %147, %142 : vector<16x1xi1>, vector<16x1xf32>
    %157 = arith.select %155, %144, %147 : vector<16x1xi1>, vector<16x1xf32>
    %158 = arith.addf %156, %157 : vector<16x1xf32>
    %cst_62 = arith.constant 5.000000e-01 : f32
    %159 = vector.broadcast %cst_62 : f32 to vector<16x1xf32>
    %160 = arith.mulf %159, %158 : vector<16x1xf32>
    %161 = vector.broadcast %160 : vector<16x1xf32> to vector<16x128xf32>
    %162 = arith.cmpf oge, %140, %161 : vector<16x128xf32>
    %163 = arith.extui %162 : vector<16x128xi1> to vector<16x128xi32>
    %164 = arith.sitofp %163 : vector<16x128xi32> to vector<16x128xf32>
    %cst_63 = arith.constant dense<0.000000e+00> : vector<16xf32>
    %165 = vector.multi_reduction <add>, %164, %cst_63 [1] : vector<16x128xf32> to vector<16xf32>
    %166 = vector.shape_cast %165 : vector<16xf32> to vector<16x1xf32>
    %cst_64 = arith.constant 1.600000e+01 : f32
    %167 = vector.broadcast %cst_64 : f32 to vector<16x1xf32>
    %168 = arith.cmpf oge, %166, %167 : vector<16x1xf32>
    %169 = arith.select %168, %160, %156 : vector<16x1xi1>, vector<16x1xf32>
    %170 = arith.select %168, %157, %160 : vector<16x1xi1>, vector<16x1xf32>
    %171 = arith.addf %169, %170 : vector<16x1xf32>
    %cst_65 = arith.constant 5.000000e-01 : f32
    %172 = vector.broadcast %cst_65 : f32 to vector<16x1xf32>
    %173 = arith.mulf %172, %171 : vector<16x1xf32>
    %174 = vector.broadcast %173 : vector<16x1xf32> to vector<16x128xf32>
    %175 = arith.cmpf oge, %140, %174 : vector<16x128xf32>
    %176 = arith.extui %175 : vector<16x128xi1> to vector<16x128xi32>
    %177 = arith.sitofp %176 : vector<16x128xi32> to vector<16x128xf32>
    %cst_66 = arith.constant dense<0.000000e+00> : vector<16xf32>
    %178 = vector.multi_reduction <add>, %177, %cst_66 [1] : vector<16x128xf32> to vector<16xf32>
    %179 = vector.shape_cast %178 : vector<16xf32> to vector<16x1xf32>
    %cst_67 = arith.constant 1.600000e+01 : f32
    %180 = vector.broadcast %cst_67 : f32 to vector<16x1xf32>
    %181 = arith.cmpf oge, %179, %180 : vector<16x1xf32>
    %182 = arith.select %181, %173, %169 : vector<16x1xi1>, vector<16x1xf32>
    %183 = arith.select %181, %170, %173 : vector<16x1xi1>, vector<16x1xf32>
    %184 = arith.addf %182, %183 : vector<16x1xf32>
    %cst_68 = arith.constant 5.000000e-01 : f32
    %185 = vector.broadcast %cst_68 : f32 to vector<16x1xf32>
    %186 = arith.mulf %185, %184 : vector<16x1xf32>
    %187 = vector.broadcast %186 : vector<16x1xf32> to vector<16x128xf32>
    %188 = arith.cmpf oge, %140, %187 : vector<16x128xf32>
    %189 = arith.extui %188 : vector<16x128xi1> to vector<16x128xi32>
    %190 = arith.sitofp %189 : vector<16x128xi32> to vector<16x128xf32>
    %cst_69 = arith.constant dense<0.000000e+00> : vector<16xf32>
    %191 = vector.multi_reduction <add>, %190, %cst_69 [1] : vector<16x128xf32> to vector<16xf32>
    %192 = vector.shape_cast %191 : vector<16xf32> to vector<16x1xf32>
    %cst_70 = arith.constant 1.600000e+01 : f32
    %193 = vector.broadcast %cst_70 : f32 to vector<16x1xf32>
    %194 = arith.cmpf oge, %192, %193 : vector<16x1xf32>
    %195 = arith.select %194, %186, %182 : vector<16x1xi1>, vector<16x1xf32>
    %196 = arith.select %194, %183, %186 : vector<16x1xi1>, vector<16x1xf32>
    %197 = arith.addf %195, %196 : vector<16x1xf32>
    %cst_71 = arith.constant 5.000000e-01 : f32
    %198 = vector.broadcast %cst_71 : f32 to vector<16x1xf32>
    %199 = arith.mulf %198, %197 : vector<16x1xf32>
    %200 = vector.broadcast %199 : vector<16x1xf32> to vector<16x128xf32>
    %201 = arith.cmpf oge, %140, %200 : vector<16x128xf32>
    %202 = arith.extui %201 : vector<16x128xi1> to vector<16x128xi32>
    %203 = arith.sitofp %202 : vector<16x128xi32> to vector<16x128xf32>
    %cst_72 = arith.constant dense<0.000000e+00> : vector<16xf32>
    %204 = vector.multi_reduction <add>, %203, %cst_72 [1] : vector<16x128xf32> to vector<16xf32>
    %205 = vector.shape_cast %204 : vector<16xf32> to vector<16x1xf32>
    %cst_73 = arith.constant 1.600000e+01 : f32
    %206 = vector.broadcast %cst_73 : f32 to vector<16x1xf32>
    %207 = arith.cmpf oge, %205, %206 : vector<16x1xf32>
    %208 = arith.select %207, %199, %195 : vector<16x1xi1>, vector<16x1xf32>
    %209 = arith.select %207, %196, %199 : vector<16x1xi1>, vector<16x1xf32>
    %210 = arith.addf %208, %209 : vector<16x1xf32>
    %cst_74 = arith.constant 5.000000e-01 : f32
    %211 = vector.broadcast %cst_74 : f32 to vector<16x1xf32>
    %212 = arith.mulf %211, %210 : vector<16x1xf32>
    %213 = vector.broadcast %212 : vector<16x1xf32> to vector<16x128xf32>
    %214 = arith.cmpf oge, %140, %213 : vector<16x128xf32>
    %215 = arith.extui %214 : vector<16x128xi1> to vector<16x128xi32>
    %216 = arith.sitofp %215 : vector<16x128xi32> to vector<16x128xf32>
    %cst_75 = arith.constant dense<0.000000e+00> : vector<16xf32>
    %217 = vector.multi_reduction <add>, %216, %cst_75 [1] : vector<16x128xf32> to vector<16xf32>
    %218 = vector.shape_cast %217 : vector<16xf32> to vector<16x1xf32>
    %cst_76 = arith.constant 1.600000e+01 : f32
    %219 = vector.broadcast %cst_76 : f32 to vector<16x1xf32>
    %220 = arith.cmpf oge, %218, %219 : vector<16x1xf32>
    %221 = arith.select %220, %212, %208 : vector<16x1xi1>, vector<16x1xf32>
    %222 = arith.select %220, %209, %212 : vector<16x1xi1>, vector<16x1xf32>
    %223 = arith.addf %221, %222 : vector<16x1xf32>
    %cst_77 = arith.constant 5.000000e-01 : f32
    %224 = vector.broadcast %cst_77 : f32 to vector<16x1xf32>
    %225 = arith.mulf %224, %223 : vector<16x1xf32>
    %226 = vector.broadcast %225 : vector<16x1xf32> to vector<16x128xf32>
    %227 = arith.cmpf oge, %140, %226 : vector<16x128xf32>
    %228 = arith.extui %227 : vector<16x128xi1> to vector<16x128xi32>
    %229 = arith.sitofp %228 : vector<16x128xi32> to vector<16x128xf32>
    %cst_78 = arith.constant dense<0.000000e+00> : vector<16xf32>
    %230 = vector.multi_reduction <add>, %229, %cst_78 [1] : vector<16x128xf32> to vector<16xf32>
    %231 = vector.shape_cast %230 : vector<16xf32> to vector<16x1xf32>
    %cst_79 = arith.constant 1.600000e+01 : f32
    %232 = vector.broadcast %cst_79 : f32 to vector<16x1xf32>
    %233 = arith.cmpf oge, %231, %232 : vector<16x1xf32>
    %234 = arith.select %233, %225, %221 : vector<16x1xi1>, vector<16x1xf32>
    %235 = arith.select %233, %222, %225 : vector<16x1xi1>, vector<16x1xf32>
    %236 = arith.addf %234, %235 : vector<16x1xf32>
    %cst_80 = arith.constant 5.000000e-01 : f32
    %237 = vector.broadcast %cst_80 : f32 to vector<16x1xf32>
    %238 = arith.mulf %237, %236 : vector<16x1xf32>
    %239 = vector.broadcast %238 : vector<16x1xf32> to vector<16x128xf32>
    %240 = arith.cmpf oge, %140, %239 : vector<16x128xf32>
    %241 = arith.extui %240 : vector<16x128xi1> to vector<16x128xi32>
    %242 = arith.sitofp %241 : vector<16x128xi32> to vector<16x128xf32>
    %cst_81 = arith.constant dense<0.000000e+00> : vector<16xf32>
    %243 = vector.multi_reduction <add>, %242, %cst_81 [1] : vector<16x128xf32> to vector<16xf32>
    %244 = vector.shape_cast %243 : vector<16xf32> to vector<16x1xf32>
    %cst_82 = arith.constant 1.600000e+01 : f32
    %245 = vector.broadcast %cst_82 : f32 to vector<16x1xf32>
    %246 = arith.cmpf oge, %244, %245 : vector<16x1xf32>
    %247 = arith.select %246, %238, %234 : vector<16x1xi1>, vector<16x1xf32>
    %248 = arith.select %246, %235, %238 : vector<16x1xi1>, vector<16x1xf32>
    %249 = arith.addf %247, %248 : vector<16x1xf32>
    %cst_83 = arith.constant 5.000000e-01 : f32
    %250 = vector.broadcast %cst_83 : f32 to vector<16x1xf32>
    %251 = arith.mulf %250, %249 : vector<16x1xf32>
    %252 = vector.broadcast %251 : vector<16x1xf32> to vector<16x128xf32>
    %253 = arith.cmpf oge, %140, %252 : vector<16x128xf32>
    %254 = arith.extui %253 : vector<16x128xi1> to vector<16x128xi32>
    %255 = arith.sitofp %254 : vector<16x128xi32> to vector<16x128xf32>
    %cst_84 = arith.constant dense<0.000000e+00> : vector<16xf32>
    %256 = vector.multi_reduction <add>, %255, %cst_84 [1] : vector<16x128xf32> to vector<16xf32>
    %257 = vector.shape_cast %256 : vector<16xf32> to vector<16x1xf32>
    %cst_85 = arith.constant 1.600000e+01 : f32
    %258 = vector.broadcast %cst_85 : f32 to vector<16x1xf32>
    %259 = arith.cmpf oge, %257, %258 : vector<16x1xf32>
    %260 = arith.select %259, %251, %247 : vector<16x1xi1>, vector<16x1xf32>
    %261 = arith.select %259, %248, %251 : vector<16x1xi1>, vector<16x1xf32>
    %262 = arith.addf %260, %261 : vector<16x1xf32>
    %cst_86 = arith.constant 5.000000e-01 : f32
    %263 = vector.broadcast %cst_86 : f32 to vector<16x1xf32>
    %264 = arith.mulf %263, %262 : vector<16x1xf32>
    %265 = vector.broadcast %264 : vector<16x1xf32> to vector<16x128xf32>
    %266 = arith.cmpf oge, %140, %265 : vector<16x128xf32>
    %267 = arith.extui %266 : vector<16x128xi1> to vector<16x128xi32>
    %268 = arith.sitofp %267 : vector<16x128xi32> to vector<16x128xf32>
    %cst_87 = arith.constant dense<0.000000e+00> : vector<16xf32>
    %269 = vector.multi_reduction <add>, %268, %cst_87 [1] : vector<16x128xf32> to vector<16xf32>
    %270 = vector.shape_cast %269 : vector<16xf32> to vector<16x1xf32>
    %cst_88 = arith.constant 1.600000e+01 : f32
    %271 = vector.broadcast %cst_88 : f32 to vector<16x1xf32>
    %272 = arith.cmpf oge, %270, %271 : vector<16x1xf32>
    %273 = arith.select %272, %264, %260 : vector<16x1xi1>, vector<16x1xf32>
    %274 = arith.select %272, %261, %264 : vector<16x1xi1>, vector<16x1xf32>
    %275 = arith.addf %273, %274 : vector<16x1xf32>
    %cst_89 = arith.constant 5.000000e-01 : f32
    %276 = vector.broadcast %cst_89 : f32 to vector<16x1xf32>
    %277 = arith.mulf %276, %275 : vector<16x1xf32>
    %278 = vector.broadcast %277 : vector<16x1xf32> to vector<16x128xf32>
    %279 = arith.cmpf oge, %140, %278 : vector<16x128xf32>
    %280 = arith.extui %279 : vector<16x128xi1> to vector<16x128xi32>
    %281 = arith.sitofp %280 : vector<16x128xi32> to vector<16x128xf32>
    %cst_90 = arith.constant dense<0.000000e+00> : vector<16xf32>
    %282 = vector.multi_reduction <add>, %281, %cst_90 [1] : vector<16x128xf32> to vector<16xf32>
    %283 = vector.shape_cast %282 : vector<16xf32> to vector<16x1xf32>
    %cst_91 = arith.constant 1.600000e+01 : f32
    %284 = vector.broadcast %cst_91 : f32 to vector<16x1xf32>
    %285 = arith.cmpf oge, %283, %284 : vector<16x1xf32>
    %286 = arith.select %285, %277, %273 : vector<16x1xi1>, vector<16x1xf32>
    %287 = arith.select %285, %274, %277 : vector<16x1xi1>, vector<16x1xf32>
    %288 = arith.addf %286, %287 : vector<16x1xf32>
    %cst_92 = arith.constant 5.000000e-01 : f32
    %289 = vector.broadcast %cst_92 : f32 to vector<16x1xf32>
    %290 = arith.mulf %289, %288 : vector<16x1xf32>
    %291 = vector.broadcast %290 : vector<16x1xf32> to vector<16x128xf32>
    %292 = arith.cmpf oge, %140, %291 : vector<16x128xf32>
    %293 = arith.extui %292 : vector<16x128xi1> to vector<16x128xi32>
    %294 = arith.sitofp %293 : vector<16x128xi32> to vector<16x128xf32>
    %cst_93 = arith.constant dense<0.000000e+00> : vector<16xf32>
    %295 = vector.multi_reduction <add>, %294, %cst_93 [1] : vector<16x128xf32> to vector<16xf32>
    %296 = vector.shape_cast %295 : vector<16xf32> to vector<16x1xf32>
    %cst_94 = arith.constant 1.600000e+01 : f32
    %297 = vector.broadcast %cst_94 : f32 to vector<16x1xf32>
    %298 = arith.cmpf oge, %296, %297 : vector<16x1xf32>
    %299 = arith.select %298, %290, %286 : vector<16x1xi1>, vector<16x1xf32>
    %300 = arith.select %298, %287, %290 : vector<16x1xi1>, vector<16x1xf32>
    %301 = arith.addf %299, %300 : vector<16x1xf32>
    %cst_95 = arith.constant 5.000000e-01 : f32
    %302 = vector.broadcast %cst_95 : f32 to vector<16x1xf32>
    %303 = arith.mulf %302, %301 : vector<16x1xf32>
    %304 = vector.broadcast %303 : vector<16x1xf32> to vector<16x128xf32>
    %305 = arith.cmpf oge, %140, %304 : vector<16x128xf32>
    %306 = arith.extui %305 : vector<16x128xi1> to vector<16x128xi32>
    %307 = arith.sitofp %306 : vector<16x128xi32> to vector<16x128xf32>
    %cst_96 = arith.constant dense<0.000000e+00> : vector<16xf32>
    %308 = vector.multi_reduction <add>, %307, %cst_96 [1] : vector<16x128xf32> to vector<16xf32>
    %309 = vector.shape_cast %308 : vector<16xf32> to vector<16x1xf32>
    %cst_97 = arith.constant 1.600000e+01 : f32
    %310 = vector.broadcast %cst_97 : f32 to vector<16x1xf32>
    %311 = arith.cmpf oge, %309, %310 : vector<16x1xf32>
    %312 = arith.select %311, %303, %299 : vector<16x1xi1>, vector<16x1xf32>
    %313 = arith.select %311, %300, %303 : vector<16x1xi1>, vector<16x1xf32>
    %314 = arith.addf %312, %313 : vector<16x1xf32>
    %cst_98 = arith.constant 5.000000e-01 : f32
    %315 = vector.broadcast %cst_98 : f32 to vector<16x1xf32>
    %316 = arith.mulf %315, %314 : vector<16x1xf32>
    %317 = vector.broadcast %316 : vector<16x1xf32> to vector<16x128xf32>
    %318 = arith.cmpf oge, %140, %317 : vector<16x128xf32>
    %319 = arith.extui %318 : vector<16x128xi1> to vector<16x128xi32>
    %320 = arith.sitofp %319 : vector<16x128xi32> to vector<16x128xf32>
    %cst_99 = arith.constant dense<0.000000e+00> : vector<16xf32>
    %321 = vector.multi_reduction <add>, %320, %cst_99 [1] : vector<16x128xf32> to vector<16xf32>
    %322 = vector.shape_cast %321 : vector<16xf32> to vector<16x1xf32>
    %cst_100 = arith.constant 1.600000e+01 : f32
    %323 = vector.broadcast %cst_100 : f32 to vector<16x1xf32>
    %324 = arith.cmpf oge, %322, %323 : vector<16x1xf32>
    %325 = arith.select %324, %316, %312 : vector<16x1xi1>, vector<16x1xf32>
    %326 = arith.select %324, %313, %316 : vector<16x1xi1>, vector<16x1xf32>
    %327 = arith.addf %325, %326 : vector<16x1xf32>
    %cst_101 = arith.constant 5.000000e-01 : f32
    %328 = vector.broadcast %cst_101 : f32 to vector<16x1xf32>
    %329 = arith.mulf %328, %327 : vector<16x1xf32>
    %330 = vector.broadcast %329 : vector<16x1xf32> to vector<16x128xf32>
    %331 = arith.cmpf oge, %140, %330 : vector<16x128xf32>
    %332 = arith.extui %331 : vector<16x128xi1> to vector<16x128xi32>
    %333 = arith.sitofp %332 : vector<16x128xi32> to vector<16x128xf32>
    %cst_102 = arith.constant dense<0.000000e+00> : vector<16xf32>
    %334 = vector.multi_reduction <add>, %333, %cst_102 [1] : vector<16x128xf32> to vector<16xf32>
    %335 = vector.shape_cast %334 : vector<16xf32> to vector<16x1xf32>
    %cst_103 = arith.constant 1.600000e+01 : f32
    %336 = vector.broadcast %cst_103 : f32 to vector<16x1xf32>
    %337 = arith.cmpf oge, %335, %336 : vector<16x1xf32>
    %338 = arith.select %337, %329, %325 : vector<16x1xi1>, vector<16x1xf32>
    %339 = arith.select %337, %326, %329 : vector<16x1xi1>, vector<16x1xf32>
    %340 = arith.addf %338, %339 : vector<16x1xf32>
    %cst_104 = arith.constant 5.000000e-01 : f32
    %341 = vector.broadcast %cst_104 : f32 to vector<16x1xf32>
    %342 = arith.mulf %341, %340 : vector<16x1xf32>
    %343 = vector.broadcast %342 : vector<16x1xf32> to vector<16x128xf32>
    %344 = arith.cmpf oge, %140, %343 : vector<16x128xf32>
    %345 = arith.extui %344 : vector<16x128xi1> to vector<16x128xi32>
    %346 = arith.sitofp %345 : vector<16x128xi32> to vector<16x128xf32>
    %cst_105 = arith.constant dense<0.000000e+00> : vector<16xf32>
    %347 = vector.multi_reduction <add>, %346, %cst_105 [1] : vector<16x128xf32> to vector<16xf32>
    %348 = vector.shape_cast %347 : vector<16xf32> to vector<16x1xf32>
    %cst_106 = arith.constant 1.600000e+01 : f32
    %349 = vector.broadcast %cst_106 : f32 to vector<16x1xf32>
    %350 = arith.cmpf oge, %348, %349 : vector<16x1xf32>
    %351 = arith.select %350, %342, %338 : vector<16x1xi1>, vector<16x1xf32>
    %352 = arith.select %350, %339, %342 : vector<16x1xi1>, vector<16x1xf32>
    %353 = arith.addf %351, %352 : vector<16x1xf32>
    %cst_107 = arith.constant 5.000000e-01 : f32
    %354 = vector.broadcast %cst_107 : f32 to vector<16x1xf32>
    %355 = arith.mulf %354, %353 : vector<16x1xf32>
    %356 = vector.broadcast %355 : vector<16x1xf32> to vector<16x128xf32>
    %357 = arith.cmpf oge, %140, %356 : vector<16x128xf32>
    %358 = arith.extui %357 : vector<16x128xi1> to vector<16x128xi32>
    %359 = arith.sitofp %358 : vector<16x128xi32> to vector<16x128xf32>
    %cst_108 = arith.constant dense<0.000000e+00> : vector<16xf32>
    %360 = vector.multi_reduction <add>, %359, %cst_108 [1] : vector<16x128xf32> to vector<16xf32>
    %361 = vector.shape_cast %360 : vector<16xf32> to vector<16x1xf32>
    %cst_109 = arith.constant 1.600000e+01 : f32
    %362 = vector.broadcast %cst_109 : f32 to vector<16x1xf32>
    %363 = arith.cmpf oge, %361, %362 : vector<16x1xf32>
    %364 = arith.select %363, %355, %351 : vector<16x1xi1>, vector<16x1xf32>
    %365 = arith.select %363, %352, %355 : vector<16x1xi1>, vector<16x1xf32>
    %366 = arith.addf %364, %365 : vector<16x1xf32>
    %cst_110 = arith.constant 5.000000e-01 : f32
    %367 = vector.broadcast %cst_110 : f32 to vector<16x1xf32>
    %368 = arith.mulf %367, %366 : vector<16x1xf32>
    %369 = vector.broadcast %368 : vector<16x1xf32> to vector<16x128xf32>
    %370 = arith.cmpf oge, %140, %369 : vector<16x128xf32>
    %371 = arith.extui %370 : vector<16x128xi1> to vector<16x128xi32>
    %372 = arith.sitofp %371 : vector<16x128xi32> to vector<16x128xf32>
    %cst_111 = arith.constant dense<0.000000e+00> : vector<16xf32>
    %373 = vector.multi_reduction <add>, %372, %cst_111 [1] : vector<16x128xf32> to vector<16xf32>
    %374 = vector.shape_cast %373 : vector<16xf32> to vector<16x1xf32>
    %cst_112 = arith.constant 1.600000e+01 : f32
    %375 = vector.broadcast %cst_112 : f32 to vector<16x1xf32>
    %376 = arith.cmpf oge, %374, %375 : vector<16x1xf32>
    %377 = arith.select %376, %368, %364 : vector<16x1xi1>, vector<16x1xf32>
    %378 = arith.select %376, %365, %368 : vector<16x1xi1>, vector<16x1xf32>
    %379 = arith.addf %377, %378 : vector<16x1xf32>
    %cst_113 = arith.constant 5.000000e-01 : f32
    %380 = vector.broadcast %cst_113 : f32 to vector<16x1xf32>
    %381 = arith.mulf %380, %379 : vector<16x1xf32>
    %382 = vector.broadcast %381 : vector<16x1xf32> to vector<16x128xf32>
    %383 = arith.cmpf oge, %140, %382 : vector<16x128xf32>
    %384 = arith.extui %383 : vector<16x128xi1> to vector<16x128xi32>
    %385 = arith.sitofp %384 : vector<16x128xi32> to vector<16x128xf32>
    %cst_114 = arith.constant dense<0.000000e+00> : vector<16xf32>
    %386 = vector.multi_reduction <add>, %385, %cst_114 [1] : vector<16x128xf32> to vector<16xf32>
    %387 = vector.shape_cast %386 : vector<16xf32> to vector<16x1xf32>
    %cst_115 = arith.constant 1.600000e+01 : f32
    %388 = vector.broadcast %cst_115 : f32 to vector<16x1xf32>
    %389 = arith.cmpf oge, %387, %388 : vector<16x1xf32>
    %390 = arith.select %389, %381, %377 : vector<16x1xi1>, vector<16x1xf32>
    %391 = arith.select %389, %378, %381 : vector<16x1xi1>, vector<16x1xf32>
    %392 = arith.addf %390, %391 : vector<16x1xf32>
    %cst_116 = arith.constant 5.000000e-01 : f32
    %393 = vector.broadcast %cst_116 : f32 to vector<16x1xf32>
    %394 = arith.mulf %393, %392 : vector<16x1xf32>
    %395 = vector.broadcast %394 : vector<16x1xf32> to vector<16x128xf32>
    %396 = arith.cmpf oge, %140, %395 : vector<16x128xf32>
    %397 = arith.extui %396 : vector<16x128xi1> to vector<16x128xi32>
    %398 = arith.sitofp %397 : vector<16x128xi32> to vector<16x128xf32>
    %cst_117 = arith.constant dense<0.000000e+00> : vector<16xf32>
    %399 = vector.multi_reduction <add>, %398, %cst_117 [1] : vector<16x128xf32> to vector<16xf32>
    %400 = vector.shape_cast %399 : vector<16xf32> to vector<16x1xf32>
    %cst_118 = arith.constant 1.600000e+01 : f32
    %401 = vector.broadcast %cst_118 : f32 to vector<16x1xf32>
    %402 = arith.cmpf oge, %400, %401 : vector<16x1xf32>
    %403 = arith.select %402, %394, %390 : vector<16x1xi1>, vector<16x1xf32>
    %404 = arith.select %402, %391, %394 : vector<16x1xi1>, vector<16x1xf32>
    %405 = arith.addf %403, %404 : vector<16x1xf32>
    %cst_119 = arith.constant 5.000000e-01 : f32
    %406 = vector.broadcast %cst_119 : f32 to vector<16x1xf32>
    %407 = arith.mulf %406, %405 : vector<16x1xf32>
    %408 = vector.broadcast %407 : vector<16x1xf32> to vector<16x128xf32>
    %409 = arith.cmpf oge, %140, %408 : vector<16x128xf32>
    %410 = arith.extui %409 : vector<16x128xi1> to vector<16x128xi32>
    %411 = arith.sitofp %410 : vector<16x128xi32> to vector<16x128xf32>
    %cst_120 = arith.constant dense<0.000000e+00> : vector<16xf32>
    %412 = vector.multi_reduction <add>, %411, %cst_120 [1] : vector<16x128xf32> to vector<16xf32>
    %413 = vector.shape_cast %412 : vector<16xf32> to vector<16x1xf32>
    %cst_121 = arith.constant 1.600000e+01 : f32
    %414 = vector.broadcast %cst_121 : f32 to vector<16x1xf32>
    %415 = arith.cmpf oge, %413, %414 : vector<16x1xf32>
    %416 = arith.select %415, %407, %403 : vector<16x1xi1>, vector<16x1xf32>
    %417 = arith.select %415, %404, %407 : vector<16x1xi1>, vector<16x1xf32>
    %418 = arith.addf %416, %417 : vector<16x1xf32>
    %cst_122 = arith.constant 5.000000e-01 : f32
    %419 = vector.broadcast %cst_122 : f32 to vector<16x1xf32>
    %420 = arith.mulf %419, %418 : vector<16x1xf32>
    %421 = vector.broadcast %420 : vector<16x1xf32> to vector<16x128xf32>
    %422 = arith.cmpf oge, %140, %421 : vector<16x128xf32>
    %423 = arith.extui %422 : vector<16x128xi1> to vector<16x128xi32>
    %424 = arith.sitofp %423 : vector<16x128xi32> to vector<16x128xf32>
    %cst_123 = arith.constant dense<0.000000e+00> : vector<16xf32>
    %425 = vector.multi_reduction <add>, %424, %cst_123 [1] : vector<16x128xf32> to vector<16xf32>
    %426 = vector.shape_cast %425 : vector<16xf32> to vector<16x1xf32>
    %cst_124 = arith.constant 1.600000e+01 : f32
    %427 = vector.broadcast %cst_124 : f32 to vector<16x1xf32>
    %428 = arith.cmpf oge, %426, %427 : vector<16x1xf32>
    %429 = arith.select %428, %420, %416 : vector<16x1xi1>, vector<16x1xf32>
    %430 = vector.broadcast %429 : vector<16x1xf32> to vector<16x128xf32>
    %431 = arith.subf %140, %430 : vector<16x128xf32>
    %cst_125 = arith.constant 0.000000e+00 : f32
    %432 = vector.broadcast %cst_125 : f32 to vector<16x128xf32>
    %433 = arith.maximumf %431, %432 : vector<16x128xf32>
    %434 = arith.truncf %433 : vector<16x128xf32> to vector<16x128xbf16>
    %c0_126 = arith.constant 0 : index
    %c0_127 = arith.constant 0 : index
    %435 = vector.load %arg15[%c0_126, %c0_127] : memref<128x128xbf16, #tpu.memory_space<vmem>>, vector<128x128xbf16>
    %cst_128 = arith.constant dense<0.000000e+00> : vector<16x128xf32>
    %436 = tpu.matmul %434, %435, %cst_128 {dimension_numbers = #tpu.dot_dimension_numbers<[1], [0], [0], [1], [0, 0, 1, 1], [], []>} : vector<16x128xbf16>, vector<128x128xbf16>, vector<16x128xf32> -> vector<16x128xf32>
    %c0_129 = arith.constant 0 : index
    %c0_130 = arith.constant 0 : index
    %437 = vector.load %arg16[%c0_129, %c0_130] : memref<1x128xf32, #tpu.memory_space<vmem>>, vector<1x128xf32>
    %438 = vector.broadcast %437 : vector<1x128xf32> to vector<16x128xf32>
    %439 = arith.addf %436, %438 : vector<16x128xf32>
    %440 = vector.shape_cast %439 : vector<16x128xf32> to vector<2x8x128xf32>
    %c0_131 = arith.constant 0 : index
    %c0_132 = arith.constant 0 : index
    %c0_133 = arith.constant 0 : index
    %441 = vector.load %arg17[%c0_131, %c0_132, %c0_133] : memref<2x8x128xf32, #tpu.memory_space<vmem>>, vector<2x8x128xf32>
    tpu.vector_store %arg17[%c0_131, %c0_132, %c0_133], %440 {strides = array<i32>} : memref<2x8x128xf32, #tpu.memory_space<vmem>>, vector<2x8x128xf32>,
    return
  }
  func.func @transform_0(%arg0: i32) -> (i32, i32, i32) {
    %c0_i32 = arith.constant 0 : i32
    %c0_i32_0 = arith.constant 0 : i32
    %c0_i32_1 = arith.constant 0 : i32
    return %arg0, %c0_i32, %c0_i32_0 : i32, i32, i32
  }
  func.func @transform_1(%arg0: i32) -> (i32, i32) {
    %c0_i32 = arith.constant 0 : i32
    %c0_i32_0 = arith.constant 0 : i32
    %c0_i32_1 = arith.constant 0 : i32
    return %c0_i32, %c0_i32_0 : i32, i32
  }
  func.func @transform_2(%arg0: i32) -> (i32, i32) {
    %c0_i32 = arith.constant 0 : i32
    %c0_i32_0 = arith.constant 0 : i32
    %c0_i32_1 = arith.constant 0 : i32
    return %c0_i32, %c0_i32_0 : i32, i32
  }
  func.func @transform_3(%arg0: i32) -> (i32, i32) {
    %c0_i32 = arith.constant 0 : i32
    %c0_i32_0 = arith.constant 0 : i32
    %c0_i32_1 = arith.constant 0 : i32
    return %c0_i32, %c0_i32_0 : i32, i32
  }
  func.func @transform_4(%arg0: i32) -> (i32, i32) {
    %c0_i32 = arith.constant 0 : i32
    %c0_i32_0 = arith.constant 0 : i32
    %c0_i32_1 = arith.constant 0 : i32
    return %c0_i32, %c0_i32_0 : i32, i32
  }
  func.func @transform_5(%arg0: i32) -> (i32, i32) {
    %c0_i32 = arith.constant 0 : i32
    %c0_i32_0 = arith.constant 0 : i32
    %c0_i32_1 = arith.constant 0 : i32
    return %c0_i32, %c0_i32_0 : i32, i32
  }
  func.func @transform_6(%arg0: i32) -> (i32, i32) {
    %c0_i32 = arith.constant 0 : i32
    %c0_i32_0 = arith.constant 0 : i32
    %c0_i32_1 = arith.constant 0 : i32
    return %c0_i32, %c0_i32_0 : i32, i32
  }
  func.func @transform_7(%arg0: i32) -> (i32, i32) {
    %c0_i32 = arith.constant 0 : i32
    %c0_i32_0 = arith.constant 0 : i32
    %c0_i32_1 = arith.constant 0 : i32
    return %c0_i32, %c0_i32_0 : i32, i32
  }
  func.func @transform_8(%arg0: i32) -> (i32, i32) {
    %c0_i32 = arith.constant 0 : i32
    %c0_i32_0 = arith.constant 0 : i32
    %c0_i32_1 = arith.constant 0 : i32
    return %c0_i32, %c0_i32_0 : i32, i32
  }
  func.func @transform_9(%arg0: i32) -> (i32, i32) {
    %c0_i32 = arith.constant 0 : i32
    %c0_i32_0 = arith.constant 0 : i32
    %c0_i32_1 = arith.constant 0 : i32
    return %c0_i32, %c0_i32_0 : i32, i32
  }
  func.func @transform_10(%arg0: i32) -> (i32, i32) {
    %c0_i32 = arith.constant 0 : i32
    %c0_i32_0 = arith.constant 0 : i32
    %c0_i32_1 = arith.constant 0 : i32
    return %c0_i32, %c0_i32_0 : i32, i32
  }
  func.func @transform_11(%arg0: i32) -> (i32, i32) {
    %c0_i32 = arith.constant 0 : i32
    %c0_i32_0 = arith.constant 0 : i32
    %c0_i32_1 = arith.constant 0 : i32
    return %c0_i32, %c0_i32_0 : i32, i32
  }
  func.func @transform_12(%arg0: i32) -> (i32, i32) {
    %c0_i32 = arith.constant 0 : i32
    %c0_i32_0 = arith.constant 0 : i32
    %c0_i32_1 = arith.constant 0 : i32
    return %c0_i32, %c0_i32_0 : i32, i32
  }
  func.func @transform_13(%arg0: i32) -> (i32, i32) {
    %c0_i32 = arith.constant 0 : i32
    %c0_i32_0 = arith.constant 0 : i32
    %c0_i32_1 = arith.constant 0 : i32
    return %c0_i32, %c0_i32_0 : i32, i32
  }
  func.func @transform_14(%arg0: i32) -> (i32, i32) {
    %c0_i32 = arith.constant 0 : i32
    %c0_i32_0 = arith.constant 0 : i32
    %c0_i32_1 = arith.constant 0 : i32
    return %c0_i32, %c0_i32_0 : i32, i32
  }
  func.func @transform_15(%arg0: i32) -> (i32, i32) {
    %c0_i32 = arith.constant 0 : i32
    %c0_i32_0 = arith.constant 0 : i32
    %c0_i32_1 = arith.constant 0 : i32
    return %c0_i32, %c0_i32_0 : i32, i32
  }
  func.func @transform_16(%arg0: i32) -> (i32, i32, i32) {
    %c0_i32 = arith.constant 0 : i32
    %c0_i32_0 = arith.constant 0 : i32
    %c0_i32_1 = arith.constant 0 : i32
    return %arg0, %c0_i32, %c0_i32_0 : i32, i32, i32
  }
}

</mosaic_0001>

<llo_original>
// kernel: tpu_custom_call.1
$region0: #{tpu_custom_call.1}
  #allocation0 [shape = 'u32[]', space=smem, size = 0x4, offset = 0x4, fixed_abs, tag = 'smem constant byte address 0x4 - core index']
  #allocation1 [shape = 'u32[144,128]{1,0:T(1,128)}', space=vmem, size = 0x12000, scoped, tag = 'internal scratch']
  %s0 = inlined_call_operand.hbm [shape: f32[2,8,32], index: 0, kind: input, shape index: {}]
  %s1 = inlined_call_operand.hbm [shape: bf16[32,128], index: 1, kind: input, shape index: {}]
  %s2 = inlined_call_operand.hbm [shape: f32[1,128], index: 2, kind: input, shape index: {}]
  %s3 = inlined_call_operand.vmem [shape: bf16[128,64], index: 3, kind: input, shape index: {}]
  %s4 = inlined_call_operand.hbm [shape: f32[1,64], index: 4, kind: input, shape index: {}]
  %s5 = inlined_call_operand.vmem [shape: bf16[64,192], index: 5, kind: input, shape index: {}]
  %s6 = inlined_call_operand.vmem [shape: f32[1,192], index: 6, kind: input, shape index: {}]
  %s7 = inlined_call_operand.hbm [shape: bf16[64,64], index: 7, kind: input, shape index: {}]
  %s8 = inlined_call_operand.hbm [shape: f32[1,64], index: 8, kind: input, shape index: {}]
  %s9 = inlined_call_operand.hbm [shape: bf16[64,128], index: 9, kind: input, shape index: {}]
  %s10 = inlined_call_operand.vmem [shape: f32[1,128], index: 10, kind: input, shape index: {}]
  %s11 = inlined_call_operand.vmem [shape: bf16[128,128], index: 11, kind: input, shape index: {}]
  %s12 = inlined_call_operand.hbm [shape: bf16[128,128], index: 12, kind: input, shape index: {}]
  %s13 = inlined_call_operand.vmem [shape: f32[1,128], index: 13, kind: input, shape index: {}]
  %s14 = inlined_call_operand.hbm [shape: bf16[128,128], index: 14, kind: input, shape index: {}]
  %s15 = inlined_call_operand.vmem [shape: f32[1,128], index: 15, kind: input, shape index: {}]
  %s16 = inlined_call_operand.hbm [shape: f32[2,8,128], index: 16, kind: output, shape index: {}]
  %s17 = sld [smem:[#allocation0]]
  $region110: #{tpu_custom_call.1} parent=0
    _
  %s19 = ssub.s32 1, %s17
  %s20 = scalar_select 0, %s19, %s17
  $region1: #{tpu_custom_call.1} parent=0
    #allocation2 [shape = 'u8[8192]{0}', space=vmem, size = 0x2000, scoped, tag = 'input window, operand 0, single buffered']
    #allocation3 [shape = 's32[1]{0}', space=sflag, size = 0x4, scoped, tag = 'scoped memory for tpu_custom_call.1']
    #allocation4 [shape = 's32[1]{0}', space=sflag, size = 0x4, scoped, tag = 'scoped memory for tpu_custom_call.1']
    #allocation5 [shape = 'u8[8192]{0}', space=vmem, size = 0x2000, scoped, tag = 'input window, operand 1, single buffered']
    #allocation6 [shape = 's32[1]{0}', space=sflag, size = 0x4, scoped, tag = 'scoped memory for tpu_custom_call.1']
    #allocation7 [shape = 'u8[512]{0}', space=vmem, size = 0x400, scoped, tag = 'input window, operand 2, single buffered']
    #allocation8 [shape = 'u8[512]{0}', space=vmem, size = 0x400, scoped, tag = 'input window, operand 4, single buffered']
    #allocation9 [shape = 's32[1]{0}', space=sflag, size = 0x4, scoped, tag = 'scoped memory for tpu_custom_call.1']
    #allocation10 [shape = 'u8[16384]{0}', space=vmem, size = 0x4000, scoped, tag = 'input window, operand 7, single buffered']
    #allocation11 [shape = 'u8[512]{0}', space=vmem, size = 0x400, scoped, tag = 'input window, operand 8, single buffered']
    #allocation12 [shape = 's32[1]{0}', space=sflag, size = 0x4, scoped, tag = 'scoped memory for tpu_custom_call.1']
    #allocation13 [shape = 'u8[16384]{0}', space=vmem, size = 0x4000, scoped, tag = 'input window, operand 9, single buffered']
    #allocation14 [shape = 'u8[32768]{0}', space=vmem, size = 0x8000, scoped, tag = 'input window, operand 12, single buffered']
    #allocation15 [shape = 's32[1]{0}', space=sflag, size = 0x4, scoped, tag = 'scoped memory for tpu_custom_call.1']
    #allocation16 [shape = 'u8[32768]{0}', space=vmem, size = 0x8000, scoped, tag = 'input window, operand 14, single buffered']
    #allocation17 [shape = 'u8[8192]{0}', space=vmem, size = 0x2000, scoped, tag = 'output window, operand 0, single buffered']
    %21 = vsyncpa [#allocation3], 0
    %22 = vsyncpa [#allocation6], 0
    %23 = vsyncpa [#allocation9], 0
    %24 = vsyncpa [#allocation12], 0
    %25 = vsyncpa [#allocation15], 0
    %26 = vsyncpa [#allocation4], 0
    // Predicated region
    $region2: #{tpu_custom_call.1} parent=1 // pred_check
      _
    $region3: #{tpu_custom_call.1} parent=1 // pred_check_branch
      %28 = sbr.rel (0) target = $region5
    $region4: #{tpu_custom_call.1} parent=1 // pred_region
      %s30 = ssub.s32 256, 256
      %31 = vsyncadd [#allocation3], %s30
      %s32 = sshll.u32 [#allocation2], 4
      %s33 = int_to_ptr.vmem [resolvable:$true] %s32
      %38 = dma.hbm_to_vmem [thread:$0]  %s0, 256, %s33, [#allocation3], 128, 128, 8
    $region5: #{tpu_custom_call.1} parent=1 // pred_fallthru
      _
    // Predicated region
    $region6: #{tpu_custom_call.1} parent=1 // pred_check
      _
    $region7: #{tpu_custom_call.1} parent=1 // pred_check_branch
      %40 = sbr.rel (0) target = $region9
    $region8: #{tpu_custom_call.1} parent=1 // pred_region
      %s42 = ssub.s32 256, 256
      %43 = vsyncadd [#allocation6], %s42
      %s44 = sshll.u32 [#allocation5], 4
      %s45 = int_to_ptr.vmem [resolvable:$true] %s44
      %50 = dma.hbm_to_vmem [thread:$0]  %s1, 256, %s45, [#allocation6], 64, 64, 4
    $region9: #{tpu_custom_call.1} parent=1 // pred_fallthru
      _
    // Predicated region
    $region10: #{tpu_custom_call.1} parent=1 // pred_check
      _
    $region11: #{tpu_custom_call.1} parent=1 // pred_check_branch
      %52 = sbr.rel (0) target = $region13
    $region12: #{tpu_custom_call.1} parent=1 // pred_region
      %s54 = ssub.s32 16, 16
      %55 = vsyncadd [#allocation6], %s54
      %s57 = sshll.u32 [#allocation7], 4
      %s58 = int_to_ptr.vmem [resolvable:$true] %s57
      %60 = dma.hbm_to_vmem [thread:$0]  %s2, 16, %s58, [#allocation6]
    $region13: #{tpu_custom_call.1} parent=1 // pred_fallthru
      _
    // Predicated region
    $region14: #{tpu_custom_call.1} parent=1 // pred_check
      _
    $region15: #{tpu_custom_call.1} parent=1 // pred_check_branch
      %62 = sbr.rel (0) target = $region17
    $region16: #{tpu_custom_call.1} parent=1 // pred_region
      _
    $region17: #{tpu_custom_call.1} parent=1 // pred_fallthru
      _
    // Predicated region
    $region18: #{tpu_custom_call.1} parent=1 // pred_check
      _
    $region19: #{tpu_custom_call.1} parent=1 // pred_check_branch
      %64 = sbr.rel (0) target = $region21
    $region20: #{tpu_custom_call.1} parent=1 // pred_region
      %s66 = ssub.s32 16, 16
      %67 = vsyncadd [#allocation9], %s66
      %s69 = sshll.u32 [#allocation8], 4
      %s70 = int_to_ptr.vmem [resolvable:$true] %s69
      %72 = dma.hbm_to_vmem [thread:$0]  %s4, 16, %s70, [#allocation9]
    $region21: #{tpu_custom_call.1} parent=1 // pred_fallthru
      _
    // Predicated region
    $region22: #{tpu_custom_call.1} parent=1 // pred_check
      _
    $region23: #{tpu_custom_call.1} parent=1 // pred_check_branch
      %74 = sbr.rel (0) target = $region25
    $region24: #{tpu_custom_call.1} parent=1 // pred_region
      _
    $region25: #{tpu_custom_call.1} parent=1 // pred_fallthru
      _
    // Predicated region
    $region26: #{tpu_custom_call.1} parent=1 // pred_check
      _
    $region27: #{tpu_custom_call.1} parent=1 // pred_check_branch
      %76 = sbr.rel (0) target = $region29
    $region28: #{tpu_custom_call.1} parent=1 // pred_region
      _
    $region29: #{tpu_custom_call.1} parent=1 // pred_fallthru
      _
    // Predicated region
    $region30: #{tpu_custom_call.1} parent=1 // pred_check
      _
    $region31: #{tpu_custom_call.1} parent=1 // pred_check_branch
      %78 = sbr.rel (0) target = $region33
    $region32: #{tpu_custom_call.1} parent=1 // pred_region
      %s80 = ssub.s32 512, 512
      %81 = vsyncadd [#allocation9], %s80
      %s82 = sshll.u32 [#allocation10], 4
      %s83 = int_to_ptr.vmem [resolvable:$true] %s82
      %88 = dma.hbm_to_vmem [thread:$0]  %s7, 512, %s83, [#allocation9], 64, 64, 4
    $region33: #{tpu_custom_call.1} parent=1 // pred_fallthru
      _
    // Predicated region
    $region34: #{tpu_custom_call.1} parent=1 // pred_check
      _
    $region35: #{tpu_custom_call.1} parent=1 // pred_check_branch
      %90 = sbr.rel (0) target = $region37
    $region36: #{tpu_custom_call.1} parent=1 // pred_region
      %s92 = ssub.s32 16, 16
      %93 = vsyncadd [#allocation12], %s92
      %s95 = sshll.u32 [#allocation11], 4
      %s96 = int_to_ptr.vmem [resolvable:$true] %s95
      %98 = dma.hbm_to_vmem [thread:$0]  %s8, 16, %s96, [#allocation12]
    $region37: #{tpu_custom_call.1} parent=1 // pred_fallthru
      _
    // Predicated region
    $region38: #{tpu_custom_call.1} parent=1 // pred_check
      _
    $region39: #{tpu_custom_call.1} parent=1 // pred_check_branch
      %100 = sbr.rel (0) target = $region41
    $region40: #{tpu_custom_call.1} parent=1 // pred_region
      %s102 = ssub.s32 512, 512
      %103 = vsyncadd [#allocation12], %s102
      %s104 = sshll.u32 [#allocation13], 4
      %s105 = int_to_ptr.vmem [resolvable:$true] %s104
      %110 = dma.hbm_to_vmem [thread:$0]  %s9, 512, %s105, [#allocation12], 64, 64, 4
    $region41: #{tpu_custom_call.1} parent=1 // pred_fallthru
      _
    // Predicated region
    $region42: #{tpu_custom_call.1} parent=1 // pred_check
      _
    $region43: #{tpu_custom_call.1} parent=1 // pred_check_branch
      %112 = sbr.rel (0) target = $region45
    $region44: #{tpu_custom_call.1} parent=1 // pred_region
      _
    $region45: #{tpu_custom_call.1} parent=1 // pred_fallthru
      _
    // Predicated region
    $region46: #{tpu_custom_call.1} parent=1 // pred_check
      _
    $region47: #{tpu_custom_call.1} parent=1 // pred_check_branch
      %114 = sbr.rel (0) target = $region49
    $region48: #{tpu_custom_call.1} parent=1 // pred_region
      _
    $region49: #{tpu_custom_call.1} parent=1 // pred_fallthru
      _
    // Predicated region
    $region50: #{tpu_custom_call.1} parent=1 // pred_check
      _
    $region51: #{tpu_custom_call.1} parent=1 // pred_check_branch
      %116 = sbr.rel (0) target = $region53
    $region52: #{tpu_custom_call.1} parent=1 // pred_region
      %s118 = ssub.s32 1024, 1024
      %119 = vsyncadd [#allocation15], %s118
      %s120 = sshll.u32 [#allocation14], 4
      %s121 = int_to_ptr.vmem [resolvable:$true] %s120
      %126 = dma.hbm_to_vmem [thread:$0]  %s12, 1024, %s121, [#allocation15], 64, 64, 4
    $region53: #{tpu_custom_call.1} parent=1 // pred_fallthru
      _
    // Predicated region
    $region54: #{tpu_custom_call.1} parent=1 // pred_check
      _
    $region55: #{tpu_custom_call.1} parent=1 // pred_check_branch
      %128 = sbr.rel (0) target = $region57
    $region56: #{tpu_custom_call.1} parent=1 // pred_region
      _
    $region57: #{tpu_custom_call.1} parent=1 // pred_fallthru
      _
    // Predicated region
    $region58: #{tpu_custom_call.1} parent=1 // pred_check
      _
    $region59: #{tpu_custom_call.1} parent=1 // pred_check_branch
      %130 = sbr.rel (0) target = $region61
    $region60: #{tpu_custom_call.1} parent=1 // pred_region
      %s132 = ssub.s32 1024, 1024
      %133 = vsyncadd [#allocation15], %s132
      %s134 = sshll.u32 [#allocation16], 4
      %s135 = int_to_ptr.vmem [resolvable:$true] %s134
      %140 = dma.hbm_to_vmem [thread:$0]  %s14, 1024, %s135, [#allocation15], 64, 64, 4
    $region61: #{tpu_custom_call.1} parent=1 // pred_fallthru
      _
    // Predicated region
    $region62: #{tpu_custom_call.1} parent=1 // pred_check
      _
    $region63: #{tpu_custom_call.1} parent=1 // pred_check_branch
      %142 = sbr.rel (0) target = $region65
    $region64: #{tpu_custom_call.1} parent=1 // pred_region
      _
    $region65: #{tpu_custom_call.1} parent=1 // pred_fallthru
      _
    // Predicated region
    $region66: #{tpu_custom_call.1} parent=1 // pred_check
      _
    $region67: #{tpu_custom_call.1} parent=1 // pred_check_branch
      %144 = sbr.rel (0) target = $region69
    $region68: #{tpu_custom_call.1} parent=1 // pred_region
      %145 = dma.done [#allocation3], 256
    $region69: #{tpu_custom_call.1} parent=1 // pred_fallthru
      _
    // Predicated region
    $region70: #{tpu_custom_call.1} parent=1 // pred_check
      _
    $region71: #{tpu_custom_call.1} parent=1 // pred_check_branch
      %147 = sbr.rel (0) target = $region73
    $region72: #{tpu_custom_call.1} parent=1 // pred_region
      %148 = dma.done [#allocation6], 256
    $region73: #{tpu_custom_call.1} parent=1 // pred_fallthru
      _
    // Predicated region
    $region74: #{tpu_custom_call.1} parent=1 // pred_check
      _
    $region75: #{tpu_custom_call.1} parent=1 // pred_check_branch
      %150 = sbr.rel (0) target = $region77
    $region76: #{tpu_custom_call.1} parent=1 // pred_region
      %151 = dma.done [#allocation6], 16
    $region77: #{tpu_custom_call.1} parent=1 // pred_fallthru
      _
    // Predicated region
    $region78: #{tpu_custom_call.1} parent=1 // pred_check
      _
    $region79: #{tpu_custom_call.1} parent=1 // pred_check_branch
      %153 = sbr.rel (0) target = $region81
    $region80: #{tpu_custom_call.1} parent=1 // pred_region
      %154 = dma.done [#allocation9], 16
    $region81: #{tpu_custom_call.1} parent=1 // pred_fallthru
      _
    // Predicated region
    $region82: #{tpu_custom_call.1} parent=1 // pred_check
      _
    $region83: #{tpu_custom_call.1} parent=1 // pred_check_branch
      %156 = sbr.rel (0) target = $region85
    $region84: #{tpu_custom_call.1} parent=1 // pred_region
      %157 = dma.done [#allocation9], 512
    $region85: #{tpu_custom_call.1} parent=1 // pred_fallthru
      _
    // Predicated region
    $region86: #{tpu_custom_call.1} parent=1 // pred_check
      _
    $region87: #{tpu_custom_call.1} parent=1 // pred_check_branch
      %159 = sbr.rel (0) target = $region89
    $region88: #{tpu_custom_call.1} parent=1 // pred_region
      %160 = dma.done [#allocation12], 16
    $region89: #{tpu_custom_call.1} parent=1 // pred_fallthru
      _
    // Predicated region
    $region90: #{tpu_custom_call.1} parent=1 // pred_check
      _
    $region91: #{tpu_custom_call.1} parent=1 // pred_check_branch
      %162 = sbr.rel (0) target = $region93
    $region92: #{tpu_custom_call.1} parent=1 // pred_region
      %163 = dma.done [#allocation12], 512
    $region93: #{tpu_custom_call.1} parent=1 // pred_fallthru
      _
    // Predicated region
    $region94: #{tpu_custom_call.1} parent=1 // pred_check
      _
    $region95: #{tpu_custom_call.1} parent=1 // pred_check_branch
      %165 = sbr.rel (0) target = $region97
    $region96: #{tpu_custom_call.1} parent=1 // pred_region
      %166 = dma.done [#allocation15], 1024
    $region97: #{tpu_custom_call.1} parent=1 // pred_fallthru
      _
    // Predicated region
    $region98: #{tpu_custom_call.1} parent=1 // pred_check
      _
    $region99: #{tpu_custom_call.1} parent=1 // pred_check_branch
      %168 = sbr.rel (0) target = $region101
    $region100: #{tpu_custom_call.1} parent=1 // pred_region
      %169 = dma.done [#allocation15], 1024
    $region101: #{tpu_custom_call.1} parent=1 // pred_fallthru
      _
    %v171 = vld [vmem:[#allocation2] sm:$0xff]
    %v172 = vld [vmem:[#allocation2 + $0x8] sm:$0xff]
    %v173 = vpack.c.bf16 %v172, %v171
    %v174 = vld [vmem:[#allocation5] sm:$0xf]
    %v175 = vld [vmem:[#allocation5 + $0x4] sm:$0xf]
    %v176 = vld [vmem:[#allocation5 + $0x8] sm:$0xf]
    %v177 = vld [vmem:[#allocation5 + $0xc] sm:$0xf]
    %v178 = vld [vmem:[#allocation7] sm:$0x1]
    %v180 = vlaneseq
    %v181 = vshrl.u32 %v180, 7
    %v182 = vsub.s32 0, %v181
    %v183 = vrot.slane %v178, %v182
    %v189 = vunpack.c.l.b16 %v174
    %v190 = vunpack.c.l.b16 %v175
    %v191 = vunpack.c.l.b16 %v176
    %v192 = vunpack.c.l.b16 %v177
    %v193 = vpack.c.b16 %v190, %v189
    %v194 = vpack.c.b16 %v192, %v191
    %vm197 = vcmask 261120
    %v199 = vsel %vm197, %v173, 0
    %201 = vmatprep.subr.bf16.mxu0 0
    %202 = vmatpush1.bf16.msra.mxu0 %v193
    %203 = vmatprep.subr.bf16.mxu0 0
    %204 = vmatpush1.bf16.msra.mxu0 %v194
    %205 = vmatprep.subr.bf16.mxu0 0
    %206 = vmatpush1.bf16.msra.mxu0 0
    %207 = vmatprep.subr.bf16.mxu0 0
    %208 = vmatpush1.bf16.msra.mxu0 0
    %209 = vmatprep.subr.bf16.mxu0 0
    %210 = vmatpush1.bf16.msra.mxu0 0
    %211 = vmatprep.subr.bf16.mxu0 0
    %212 = vmatpush1.bf16.msra.mxu0 0
    %213 = vmatprep.subr.bf16.mxu0 0
    %214 = vmatpush1.bf16.msra.mxu0 0
    %215 = vmatprep.subr.bf16.mxu0 0
    %216 = vmatpush1.bf16.msra.mxu0 0
    %217 = vmatprep.subr.bf16.mxu0 0
    %218 = vmatpush1.bf16.msra.mxu0 0
    %219 = vmatprep.subr.bf16.mxu0 0
    %220 = vmatpush1.bf16.msra.mxu0 0
    %221 = vmatprep.subr.bf16.mxu0 0
    %222 = vmatpush1.bf16.msra.mxu0 0
    %223 = vmatprep.subr.bf16.mxu0 0
    %224 = vmatpush1.bf16.msra.mxu0 0
    %225 = vmatprep.subr.bf16.mxu0 0
    %226 = vmatpush1.bf16.msra.mxu0 0
    %227 = vmatprep.subr.bf16.mxu0 0
    %228 = vmatpush1.bf16.msra.mxu0 0
    %229 = vmatprep.subr.bf16.mxu0 0
    %230 = vmatpush1.bf16.msra.mxu0 0
    %231 = vmatprep.subr.bf16.mxu0 0
    %232 = vmatpush1.bf16.msra.mxu0 0
    %233 = vmatprep.mubr.bf16.mxu0 0
    %234 = vmatmul.mubr.bf16.gmra.mrb[0].mxu0 %v199
    %v235 = vpop.f32.mrb[0].mxu0
    %v236 = vadd.f32 %v183, %v235
    %v237 = vpop.f32.mrb[0].mxu0
    %v238 = vpop.f32.mrb[0].mxu0
    %v239 = vadd.f32 %v183, %v238
    %v240 = vpop.f32.mrb[0].mxu0
    %241 = vdwg.mxu0
    %v242 = vmax.f32 %v236, 0.0
    %v243 = vmax.f32 %v239, 0.0
    %v244 = vpack.c.bf16 %v243, %v242
    %v245 = vld [vmem:[%s3] sm:$0xf]
    %v246 = vld [vmem:[%s3 + $0x4] sm:$0xf]
    %v247 = vld [vmem:[%s3 + $0x8] sm:$0xf]
    %v248 = vld [vmem:[%s3 + $0xc] sm:$0xf]
    %v249 = vld [vmem:[%s3 + $0x10] sm:$0xf]
    %v250 = vld [vmem:[%s3 + $0x14] sm:$0xf]
    %v251 = vld [vmem:[%s3 + $0x18] sm:$0xf]
    %v252 = vld [vmem:[%s3 + $0x1c] sm:$0xf]
    %v253 = vld [vmem:[%s3 + $0x20] sm:$0xf]
    %v254 = vld [vmem:[%s3 + $0x24] sm:$0xf]
    %v255 = vld [vmem:[%s3 + $0x28] sm:$0xf]
    %v256 = vld [vmem:[%s3 + $0x2c] sm:$0xf]
    %v257 = vld [vmem:[%s3 + $0x30] sm:$0xf]
    %v258 = vld [vmem:[%s3 + $0x34] sm:$0xf]
    %v259 = vld [vmem:[%s3 + $0x38] sm:$0xf]
    %v260 = vld [vmem:[%s3 + $0x3c] sm:$0xf]
    %v261 = vld [vmem:[#allocation8] sm:$0x1]
    %v263 = vlaneseq
    %v264 = vshrl.u32 %v263, 7
    %v265 = vsub.s32 0, %v264
    %v266 = vrot.slane %v261, %v265
    %v284 = vunpack.c.l.b16 %v245
    %v285 = vunpack.c.l.b16 %v246
    %v286 = vunpack.c.l.b16 %v247
    %v287 = vunpack.c.l.b16 %v248
    %v288 = vunpack.c.l.b16 %v249
    %v289 = vunpack.c.l.b16 %v250
    %v290 = vunpack.c.l.b16 %v251
    %v291 = vunpack.c.l.b16 %v252
    %v292 = vunpack.c.l.b16 %v253
    %v293 = vunpack.c.l.b16 %v254
    %v294 = vunpack.c.l.b16 %v255
    %v295 = vunpack.c.l.b16 %v256
    %v296 = vunpack.c.l.b16 %v257
    %v297 = vunpack.c.l.b16 %v258
    %v298 = vunpack.c.l.b16 %v259
    %v299 = vunpack.c.l.b16 %v260
    %v300 = vpack.c.b16 %v285, %v284
    %v301 = vpack.c.b16 %v287, %v286
    %v302 = vpack.c.b16 %v289, %v288
    %v303 = vpack.c.b16 %v291, %v290
    %v304 = vpack.c.b16 %v293, %v292
    %v305 = vpack.c.b16 %v295, %v294
    %v306 = vpack.c.b16 %v297, %v296
    %v307 = vpack.c.b16 %v299, %v298
    %316 = vmatprep.subr.bf16.mxu0 0
    %317 = vmatpush1.bf16.msra.mxu0 %v300
    %318 = vmatprep.subr.bf16.mxu0 0
    %319 = vmatpush1.bf16.msra.mxu0 %v301
    %320 = vmatprep.subr.bf16.mxu0 0
    %321 = vmatpush1.bf16.msra.mxu0 %v302
    %322 = vmatprep.subr.bf16.mxu0 0
    %323 = vmatpush1.bf16.msra.mxu0 %v303
    %324 = vmatprep.subr.bf16.mxu0 0
    %325 = vmatpush1.bf16.msra.mxu0 %v304
    %326 = vmatprep.subr.bf16.mxu0 0
    %327 = vmatpush1.bf16.msra.mxu0 %v305
    %328 = vmatprep.subr.bf16.mxu0 0
    %329 = vmatpush1.bf16.msra.mxu0 %v306
    %330 = vmatprep.subr.bf16.mxu0 0
    %331 = vmatpush1.bf16.msra.mxu0 %v307
    %332 = vmatprep.subr.bf16.mxu0 0
    %333 = vmatpush1.bf16.msra.mxu0 0
    %334 = vmatprep.subr.bf16.mxu0 0
    %335 = vmatpush1.bf16.msra.mxu0 0
    %336 = vmatprep.subr.bf16.mxu0 0
    %337 = vmatpush1.bf16.msra.mxu0 0
    %338 = vmatprep.subr.bf16.mxu0 0
    %339 = vmatpush1.bf16.msra.mxu0 0
    %340 = vmatprep.subr.bf16.mxu0 0
    %341 = vmatpush1.bf16.msra.mxu0 0
    %342 = vmatprep.subr.bf16.mxu0 0
    %343 = vmatpush1.bf16.msra.mxu0 0
    %344 = vmatprep.subr.bf16.mxu0 0
    %345 = vmatpush1.bf16.msra.mxu0 0
    %346 = vmatprep.subr.bf16.mxu0 0
    %347 = vmatpush1.bf16.msra.mxu0 0
    %348 = vmatprep.mubr.bf16.mxu0 0
    %349 = vmatmul.mubr.bf16.gmra.mrb[0].mxu0 %v244
    %v350 = vpop.f32.mrb[0].mxu0
    %v351 = vadd.f32 %v266, %v350
    %v352 = vpop.f32.mrb[0].mxu0
    %v353 = vpop.f32.mrb[0].mxu0
    %v354 = vadd.f32 %v266, %v353
    %v355 = vpop.f32.mrb[0].mxu0
    %356 = vdwg.mxu0
    %v357 = vpack.c.bf16 %v354, %v351
    %v358 = vld [vmem:[%s5] sm:$0xff]
    %v359 = vld [vmem:[%s5 + $0x8] sm:$0xff]
    %v360 = vld [vmem:[%s5 + $0x10] sm:$0xff]
    %v361 = vld [vmem:[%s5 + $0x18] sm:$0xff]
    %v362 = vld [vmem:[%s5 + $0x20] sm:$0xff]
    %v363 = vld [vmem:[%s5 + $0x28] sm:$0xff]
    %v364 = vld [vmem:[%s5 + $0x30] sm:$0xff]
    %v365 = vld [vmem:[%s5 + $0x38] sm:$0xff]
    %v366 = vld [vmem:[%s6] sm:$0x3]
    %v368 = vlaneseq
    %v369 = vshrl.u32 %v368, 7
    %v370 = vsub.s32 0, %v369
    %v371 = vrot.slane %v366, %v370
    %v372 = vlaneseq
    %v373 = vshrl.u32 %v372, 7
    %v374 = vsub.s32 1, %v373
    %v375 = vrot.slane %v366, %v374
    %v386 = vunpack.c.l.b16 %v358
    %v387 = vunpack.c.h.b16 %v358
    %v388 = vunpack.c.l.b16 %v359
    %v389 = vunpack.c.h.b16 %v359
    %v390 = vunpack.c.l.b16 %v360
    %v391 = vunpack.c.h.b16 %v360
    %v392 = vunpack.c.l.b16 %v361
    %v393 = vunpack.c.h.b16 %v361
    %v394 = vunpack.c.l.b16 %v362
    %v395 = vunpack.c.h.b16 %v362
    %v396 = vunpack.c.l.b16 %v363
    %v397 = vunpack.c.h.b16 %v363
    %v398 = vunpack.c.l.b16 %v364
    %v399 = vunpack.c.h.b16 %v364
    %v400 = vunpack.c.l.b16 %v365
    %v401 = vunpack.c.h.b16 %v365
    %v402 = vpack.c.b16 %v388, %v386
    %v403 = vpack.c.b16 %v389, %v387
    %v404 = vpack.c.b16 %v392, %v390
    %v405 = vpack.c.b16 %v393, %v391
    %v406 = vpack.c.b16 %v396, %v394
    %v407 = vpack.c.b16 %v397, %v395
    %v408 = vpack.c.b16 %v400, %v398
    %v409 = vpack.c.b16 %v401, %v399
    %vm418 = vcmask 523264
    %v420 = vsel %vm418, %v357, 0
    %422 = vmatprep.subr.bf16.mxu0 %v403
    %423 = vmatpush1.bf16.msra.mxu0 %v402
    %424 = vmatprep.subr.bf16.mxu0 %v405
    %425 = vmatpush1.bf16.msra.mxu0 %v404
    %426 = vmatprep.subr.bf16.mxu0 %v407
    %427 = vmatpush1.bf16.msra.mxu0 %v406
    %428 = vmatprep.subr.bf16.mxu0 %v409
    %429 = vmatpush1.bf16.msra.mxu0 %v408
    %430 = vmatprep.subr.bf16.mxu0 0
    %431 = vmatpush1.bf16.msra.mxu0 0
    %432 = vmatprep.subr.bf16.mxu0 0
    %433 = vmatpush1.bf16.msra.mxu0 0
    %434 = vmatprep.subr.bf16.mxu0 0
    %435 = vmatpush1.bf16.msra.mxu0 0
    %436 = vmatprep.subr.bf16.mxu0 0
    %437 = vmatpush1.bf16.msra.mxu0 0
    %438 = vmatprep.subr.bf16.mxu0 0
    %439 = vmatpush1.bf16.msra.mxu0 0
    %440 = vmatprep.subr.bf16.mxu0 0
    %441 = vmatpush1.bf16.msra.mxu0 0
    %442 = vmatprep.subr.bf16.mxu0 0
    %443 = vmatpush1.bf16.msra.mxu0 0
    %444 = vmatprep.subr.bf16.mxu0 0
    %445 = vmatpush1.bf16.msra.mxu0 0
    %446 = vmatprep.subr.bf16.mxu0 0
    %447 = vmatpush1.bf16.msra.mxu0 0
    %448 = vmatprep.subr.bf16.mxu0 0
    %449 = vmatpush1.bf16.msra.mxu0 0
    %450 = vmatprep.subr.bf16.mxu0 0
    %451 = vmatpush1.bf16.msra.mxu0 0
    %452 = vmatprep.subr.bf16.mxu0 0
    %453 = vmatpush1.bf16.msra.mxu0 0
    %454 = vmatprep.mubr.bf16.mxu0 0
    %455 = vmatmul.mubr.bf16.gmra.mrb[0].mxu0 %v420
    %v456 = vpop.f32.mrb[0].mxu0
    %v457 = vadd.f32 %v371, %v456
    %v458 = vpop.f32.mrb[0].mxu0
    %v459 = vadd.f32 %v375, %v458
    %v460 = vpop.f32.mrb[0].mxu0
    %v461 = vadd.f32 %v371, %v460
    %v462 = vpop.f32.mrb[0].mxu0
    %v463 = vadd.f32 %v375, %v462
    %464 = vdwg.mxu0
    %v465 = vpack.c.bf16 %v457, %v457
    %v466 = vpack.c.bf16 %v461, %v461
    %468 = vrot.lane.b32.xlu0 %v465, 64
    %v469 = vpop.permute.xlu0 %468
    %vm470 = vcmask 130048
    %v472 = vsel %vm470, %v465, 0
    %v475 = vsel %vm470, %v469, 0
    %477 = vmatprep.subr.bf16.mxu0 0
    %478 = vmatpush1.bf16.xpose.msra.mxu0 %v475
    %479 = vmatprep.subr.bf16.mxu0 0
    %480 = vmatpush1.bf16.xpose.msra.mxu0 0
    %481 = vmatprep.subr.bf16.mxu0 0
    %482 = vmatpush1.bf16.xpose.msra.mxu0 0
    %483 = vmatprep.subr.bf16.mxu0 0
    %484 = vmatpush1.bf16.xpose.msra.mxu0 0
    %485 = vmatprep.subr.bf16.mxu0 0
    %486 = vmatpush1.bf16.xpose.msra.mxu0 0
    %487 = vmatprep.subr.bf16.mxu0 0
    %488 = vmatpush1.bf16.xpose.msra.mxu0 0
    %489 = vmatprep.subr.bf16.mxu0 0
    %490 = vmatpush1.bf16.xpose.msra.mxu0 0
    %491 = vmatprep.subr.bf16.mxu0 0
    %492 = vmatpush1.bf16.xpose.msra.mxu0 0
    %493 = vmatprep.subr.bf16.mxu0 0
    %494 = vmatpush1.bf16.xpose.msra.mxu0 0
    %495 = vmatprep.subr.bf16.mxu0 0
    %496 = vmatpush1.bf16.xpose.msra.mxu0 0
    %497 = vmatprep.subr.bf16.mxu0 0
    %498 = vmatpush1.bf16.xpose.msra.mxu0 0
    %499 = vmatprep.subr.bf16.mxu0 0
    %500 = vmatpush1.bf16.xpose.msra.mxu0 0
    %501 = vmatprep.subr.bf16.mxu0 0
    %502 = vmatpush1.bf16.xpose.msra.mxu0 0
    %503 = vmatprep.subr.bf16.mxu0 0
    %504 = vmatpush1.bf16.xpose.msra.mxu0 0
    %505 = vmatprep.subr.bf16.mxu0 0
    %506 = vmatpush1.bf16.xpose.msra.mxu0 0
    %507 = vmatprep.subr.bf16.mxu0 0
    %508 = vmatpush1.bf16.xpose.msra.mxu0 0
    %509 = vmatprep.mubr.bf16.mxu0 0
    %510 = vmatmul.mubr.bf16.gmra.mrb[0].mxu0 %v472
    %v511 = vpop.f32.mrb[0].mxu0
    %v512 = vadd.f32 0.0, %v511
    %v513 = vpop.f32.mrb[0].mxu0
    %v514 = vpop.f32.mrb[0].mxu0
    %v515 = vpop.f32.mrb[0].mxu0
    %516 = vdwg.mxu0
    %518 = vrot.lane.b32.xlu0 %v466, 64
    %v519 = vpop.permute.xlu0 %518
    %v521 = vsel %vm470, %v466, 0
    %v524 = vsel %vm470, %v519, 0
    %526 = vmatprep.subr.bf16.mxu0 0
    %527 = vmatpush1.bf16.xpose.msra.mxu0 %v524
    %528 = vmatprep.subr.bf16.mxu0 0
    %529 = vmatpush1.bf16.xpose.msra.mxu0 0
    %530 = vmatprep.subr.bf16.mxu0 0
    %531 = vmatpush1.bf16.xpose.msra.mxu0 0
    %532 = vmatprep.subr.bf16.mxu0 0
    %533 = vmatpush1.bf16.xpose.msra.mxu0 0
    %534 = vmatprep.subr.bf16.mxu0 0
    %535 = vmatpush1.bf16.xpose.msra.mxu0 0
    %536 = vmatprep.subr.bf16.mxu0 0
    %537 = vmatpush1.bf16.xpose.msra.mxu0 0
    %538 = vmatprep.subr.bf16.mxu0 0
    %539 = vmatpush1.bf16.xpose.msra.mxu0 0
    %540 = vmatprep.subr.bf16.mxu0 0
    %541 = vmatpush1.bf16.xpose.msra.mxu0 0
    %542 = vmatprep.subr.bf16.mxu0 0
    %543 = vmatpush1.bf16.xpose.msra.mxu0 0
    %544 = vmatprep.subr.bf16.mxu0 0
    %545 = vmatpush1.bf16.xpose.msra.mxu0 0
    %546 = vmatprep.subr.bf16.mxu0 0
    %547 = vmatpush1.bf16.xpose.msra.mxu0 0
    %548 = vmatprep.subr.bf16.mxu0 0
    %549 = vmatpush1.bf16.xpose.msra.mxu0 0
    %550 = vmatprep.subr.bf16.mxu0 0
    %551 = vmatpush1.bf16.xpose.msra.mxu0 0
    %552 = vmatprep.subr.bf16.mxu0 0
    %553 = vmatpush1.bf16.xpose.msra.mxu0 0
    %554 = vmatprep.subr.bf16.mxu0 0
    %555 = vmatpush1.bf16.xpose.msra.mxu0 0
    %556 = vmatprep.subr.bf16.mxu0 0
    %557 = vmatpush1.bf16.xpose.msra.mxu0 0
    %558 = vmatprep.mubr.bf16.mxu0 0
    %559 = vmatmul.mubr.bf16.gmra.mrb[0].mxu0 %v521
    %v560 = vpop.f32.mrb[0].mxu0
    %v561 = vadd.f32 0.0, %v560
    %v562 = vpop.f32.mrb[0].mxu0
    %v563 = vpop.f32.mrb[0].mxu0
    %v564 = vpop.f32.mrb[0].mxu0
    %565 = vdwg.mxu0
    %v566 = vmul.f32 %v512, 0.25
    %v567 = vmul.f32 %v561, 0.25
    %vm568 = vcmask 64512
    %v569 = vsel %vm568, %v566, -inf
    %570 = vmax.xlane.f32.xlu0 %v569
    %v571 = vpop.xlane.xlu0 %570
    %v572 = vsel %vm568, %v567, -inf
    %573 = vmax.xlane.f32.xlu0 %v572
    %v574 = vpop.xlane.xlu0 %573
    %v575 = vsub.f32 %v566, %v571
    %v576 = vsub.f32 %v567, %v574
    %v577 = vmul.f32 %v575, 1.442695
    %v578 = vpow.pop %v577
    %v579 = vmul.f32 %v576, 1.442695
    %v580 = vpow.pop %v579
    %v581 = vsel %vm568, %v578, 0.0
    %582 = vadd.xlane.f32.xlu0 %v581
    %v583 = vpop.xlane.xlu0 %582
    %v584 = vsel %vm568, %v580, 0.0
    %585 = vadd.xlane.f32.xlu0 %v584
    %v586 = vpop.xlane.xlu0 %585
    %v587 = vrcp.pop %v583
    %v588 = vrcp.pop %v586
    %v589 = vmul.f32 %v578, %v587
    %v590 = vmul.f32 %v580, %v588
    %v591 = vpack.c.bf16 %v589, %v589
    %v592 = vpack.c.bf16 %v590, %v590
    %v593 = vpack.c.bf16 %v459, %v459
    %v594 = vpack.c.bf16 %v463, %v463
    %v596 = vsel %vm568, %v591, 0
    %vm598 = vcmask 1043456
    %v600 = vsel %vm598, %v593, 0
    %602 = vmatprep.subr.bf16.mxu0 0
    %603 = vmatpush1.bf16.msra.mxu0 %v600
    %604 = vmatprep.subr.bf16.mxu0 0
    %605 = vmatpush1.bf16.msra.mxu0 0
    %606 = vmatprep.subr.bf16.mxu0 0
    %607 = vmatpush1.bf16.msra.mxu0 0
    %608 = vmatprep.subr.bf16.mxu0 0
    %609 = vmatpush1.bf16.msra.mxu0 0
    %610 = vmatprep.subr.bf16.mxu0 0
    %611 = vmatpush1.bf16.msra.mxu0 0
    %612 = vmatprep.subr.bf16.mxu0 0
    %613 = vmatpush1.bf16.msra.mxu0 0
    %614 = vmatprep.subr.bf16.mxu0 0
    %615 = vmatpush1.bf16.msra.mxu0 0
    %616 = vmatprep.subr.bf16.mxu0 0
    %617 = vmatpush1.bf16.msra.mxu0 0
    %618 = vmatprep.subr.bf16.mxu0 0
    %619 = vmatpush1.bf16.msra.mxu0 0
    %620 = vmatprep.subr.bf16.mxu0 0
    %621 = vmatpush1.bf16.msra.mxu0 0
    %622 = vmatprep.subr.bf16.mxu0 0
    %623 = vmatpush1.bf16.msra.mxu0 0
    %624 = vmatprep.subr.bf16.mxu0 0
    %625 = vmatpush1.bf16.msra.mxu0 0
    %626 = vmatprep.subr.bf16.mxu0 0
    %627 = vmatpush1.bf16.msra.mxu0 0
    %628 = vmatprep.subr.bf16.mxu0 0
    %629 = vmatpush1.bf16.msra.mxu0 0
    %630 = vmatprep.subr.bf16.mxu0 0
    %631 = vmatpush1.bf16.msra.mxu0 0
    %632 = vmatprep.subr.bf16.mxu0 0
    %633 = vmatpush1.bf16.msra.mxu0 0
    %634 = vmatprep.mubr.bf16.mxu0 0
    %635 = vmatmul.mubr.bf16.gmra.mrb[0].mxu0 %v596
    %v636 = vpop.f32.mrb[0].mxu0
    %v637 = vadd.f32 0.0, %v636
    %v638 = vpop.f32.mrb[0].mxu0
    %v639 = vpop.f32.mrb[0].mxu0
    %v640 = vpop.f32.mrb[0].mxu0
    %641 = vdwg.mxu0
    %v643 = vsel %vm568, %v592, 0
    %v646 = vsel %vm598, %v594, 0
    %648 = vmatprep.subr.bf16.mxu0 0
    %649 = vmatpush1.bf16.msra.mxu0 %v646
    %650 = vmatprep.subr.bf16.mxu0 0
    %651 = vmatpush1.bf16.msra.mxu0 0
    %652 = vmatprep.subr.bf16.mxu0 0
    %653 = vmatpush1.bf16.msra.mxu0 0
    %654 = vmatprep.subr.bf16.mxu0 0
    %655 = vmatpush1.bf16.msra.mxu0 0
    %656 = vmatprep.subr.bf16.mxu0 0
    %657 = vmatpush1.bf16.msra.mxu0 0
    %658 = vmatprep.subr.bf16.mxu0 0
    %659 = vmatpush1.bf16.msra.mxu0 0
    %660 = vmatprep.subr.bf16.mxu0 0
    %661 = vmatpush1.bf16.msra.mxu0 0
    %662 = vmatprep.subr.bf16.mxu0 0
    %663 = vmatpush1.bf16.msra.mxu0 0
    %664 = vmatprep.subr.bf16.mxu0 0
    %665 = vmatpush1.bf16.msra.mxu0 0
    %666 = vmatprep.subr.bf16.mxu0 0
    %667 = vmatpush1.bf16.msra.mxu0 0
    %668 = vmatprep.subr.bf16.mxu0 0
    %669 = vmatpush1.bf16.msra.mxu0 0
    %670 = vmatprep.subr.bf16.mxu0 0
    %671 = vmatpush1.bf16.msra.mxu0 0
    %672 = vmatprep.subr.bf16.mxu0 0
    %673 = vmatpush1.bf16.msra.mxu0 0
    %674 = vmatprep.subr.bf16.mxu0 0
    %675 = vmatpush1.bf16.msra.mxu0 0
    %676 = vmatprep.subr.bf16.mxu0 0
    %677 = vmatpush1.bf16.msra.mxu0 0
    %678 = vmatprep.subr.bf16.mxu0 0
    %679 = vmatpush1.bf16.msra.mxu0 0
    %680 = vmatprep.mubr.bf16.mxu0 0
    %681 = vmatmul.mubr.bf16.gmra.mrb[0].mxu0 %v643
    %v682 = vpop.f32.mrb[0].mxu0
    %v683 = vadd.f32 0.0, %v682
    %v684 = vpop.f32.mrb[0].mxu0
    %v685 = vpop.f32.mrb[0].mxu0
    %v686 = vpop.f32.mrb[0].mxu0
    %687 = vdwg.mxu0
    %688 = vrot.lane.b32.xlu0 %v465, 112
    %v689 = vpop.permute.xlu0 %688
    %690 = vrot.lane.b32.xlu0 %v465, 48
    %v691 = vpop.permute.xlu0 %690
    %v693 = vsel %vm470, %v689, 0
    %v696 = vsel %vm470, %v691, 0
    %698 = vmatprep.subr.bf16.mxu0 0
    %699 = vmatpush1.bf16.xpose.msra.mxu0 %v696
    %700 = vmatprep.subr.bf16.mxu0 0
    %701 = vmatpush1.bf16.xpose.msra.mxu0 0
    %702 = vmatprep.subr.bf16.mxu0 0
    %703 = vmatpush1.bf16.xpose.msra.mxu0 0
    %704 = vmatprep.subr.bf16.mxu0 0
    %705 = vmatpush1.bf16.xpose.msra.mxu0 0
    %706 = vmatprep.subr.bf16.mxu0 0
    %707 = vmatpush1.bf16.xpose.msra.mxu0 0
    %708 = vmatprep.subr.bf16.mxu0 0
    %709 = vmatpush1.bf16.xpose.msra.mxu0 0
    %710 = vmatprep.subr.bf16.mxu0 0
    %711 = vmatpush1.bf16.xpose.msra.mxu0 0
    %712 = vmatprep.subr.bf16.mxu0 0
    %713 = vmatpush1.bf16.xpose.msra.mxu0 0
    %714 = vmatprep.subr.bf16.mxu0 0
    %715 = vmatpush1.bf16.xpose.msra.mxu0 0
    %716 = vmatprep.subr.bf16.mxu0 0
    %717 = vmatpush1.bf16.xpose.msra.mxu0 0
    %718 = vmatprep.subr.bf16.mxu0 0
    %719 = vmatpush1.bf16.xpose.msra.mxu0 0
    %720 = vmatprep.subr.bf16.mxu0 0
    %721 = vmatpush1.bf16.xpose.msra.mxu0 0
    %722 = vmatprep.subr.bf16.mxu0 0
    %723 = vmatpush1.bf16.xpose.msra.mxu0 0
    %724 = vmatprep.subr.bf16.mxu0 0
    %725 = vmatpush1.bf16.xpose.msra.mxu0 0
    %726 = vmatprep.subr.bf16.mxu0 0
    %727 = vmatpush1.bf16.xpose.msra.mxu0 0
    %728 = vmatprep.subr.bf16.mxu0 0
    %729 = vmatpush1.bf16.xpose.msra.mxu0 0
    %730 = vmatprep.mubr.bf16.mxu0 0
    %731 = vmatmul.mubr.bf16.gmra.mrb[0].mxu0 %v693
    %v732 = vpop.f32.mrb[0].mxu0
    %v733 = vadd.f32 0.0, %v732
    %v734 = vpop.f32.mrb[0].mxu0
    %v735 = vpop.f32.mrb[0].mxu0
    %v736 = vpop.f32.mrb[0].mxu0
    %737 = vdwg.mxu0
    %738 = vrot.lane.b32.xlu0 %v466, 112
    %v739 = vpop.permute.xlu0 %738
    %740 = vrot.lane.b32.xlu0 %v466, 48
    %v741 = vpop.permute.xlu0 %740
    %v743 = vsel %vm470, %v739, 0
    %v746 = vsel %vm470, %v741, 0
    %748 = vmatprep.subr.bf16.mxu0 0
    %749 = vmatpush1.bf16.xpose.msra.mxu0 %v746
    %750 = vmatprep.subr.bf16.mxu0 0
    %751 = vmatpush1.bf16.xpose.msra.mxu0 0
    %752 = vmatprep.subr.bf16.mxu0 0
    %753 = vmatpush1.bf16.xpose.msra.mxu0 0
    %754 = vmatprep.subr.bf16.mxu0 0
    %755 = vmatpush1.bf16.xpose.msra.mxu0 0
    %756 = vmatprep.subr.bf16.mxu0 0
    %757 = vmatpush1.bf16.xpose.msra.mxu0 0
    %758 = vmatprep.subr.bf16.mxu0 0
    %759 = vmatpush1.bf16.xpose.msra.mxu0 0
    %760 = vmatprep.subr.bf16.mxu0 0
    %761 = vmatpush1.bf16.xpose.msra.mxu0 0
    %762 = vmatprep.subr.bf16.mxu0 0
    %763 = vmatpush1.bf16.xpose.msra.mxu0 0
    %764 = vmatprep.subr.bf16.mxu0 0
    %765 = vmatpush1.bf16.xpose.msra.mxu0 0
    %766 = vmatprep.subr.bf16.mxu0 0
    %767 = vmatpush1.bf16.xpose.msra.mxu0 0
    %768 = vmatprep.subr.bf16.mxu0 0
    %769 = vmatpush1.bf16.xpose.msra.mxu0 0
    %770 = vmatprep.subr.bf16.mxu0 0
    %771 = vmatpush1.bf16.xpose.msra.mxu0 0
    %772 = vmatprep.subr.bf16.mxu0 0
    %773 = vmatpush1.bf16.xpose.msra.mxu0 0
    %774 = vmatprep.subr.bf16.mxu0 0
    %775 = vmatpush1.bf16.xpose.msra.mxu0 0
    %776 = vmatprep.subr.bf16.mxu0 0
    %777 = vmatpush1.bf16.xpose.msra.mxu0 0
    %778 = vmatprep.subr.bf16.mxu0 0
    %779 = vmatpush1.bf16.xpose.msra.mxu0 0
    %780 = vmatprep.mubr.bf16.mxu0 0
    %781 = vmatmul.mubr.bf16.gmra.mrb[0].mxu0 %v743
    %v782 = vpop.f32.mrb[0].mxu0
    %v783 = vadd.f32 0.0, %v782
    %v784 = vpop.f32.mrb[0].mxu0
    %v785 = vpop.f32.mrb[0].mxu0
    %v786 = vpop.f32.mrb[0].mxu0
    %787 = vdwg.mxu0
    %v788 = vmul.f32 %v733, 0.25
    %v789 = vmul.f32 %v783, 0.25
    %v790 = vsel %vm568, %v788, -inf
    %791 = vmax.xlane.f32.xlu0 %v790
    %v792 = vpop.xlane.xlu0 %791
    %v793 = vsel %vm568, %v789, -inf
    %794 = vmax.xlane.f32.xlu0 %v793
    %v795 = vpop.xlane.xlu0 %794
    %v796 = vsub.f32 %v788, %v792
    %v797 = vsub.f32 %v789, %v795
    %v798 = vmul.f32 %v796, 1.442695
    %v799 = vpow.pop %v798
    %v800 = vmul.f32 %v797, 1.442695
    %v801 = vpow.pop %v800
    %v802 = vsel %vm568, %v799, 0.0
    %803 = vadd.xlane.f32.xlu0 %v802
    %v804 = vpop.xlane.xlu0 %803
    %v805 = vsel %vm568, %v801, 0.0
    %806 = vadd.xlane.f32.xlu0 %v805
    %v807 = vpop.xlane.xlu0 %806
    %v808 = vrcp.pop %v804
    %v809 = vrcp.pop %v807
    %v810 = vmul.f32 %v799, %v808
    %v811 = vmul.f32 %v801, %v809
    %v812 = vpack.c.bf16 %v810, %v810
    %v813 = vpack.c.bf16 %v811, %v811
    %815 = vrot.lane.b32.xlu0 %v593, 112
    %v816 = vpop.permute.xlu0 %815
    %v818 = vsel %vm568, %v812, 0
    %v821 = vsel %vm598, %v816, 0
    %823 = vmatprep.subr.bf16.mxu0 0
    %824 = vmatpush1.bf16.msra.mxu0 %v821
    %825 = vmatprep.subr.bf16.mxu0 0
    %826 = vmatpush1.bf16.msra.mxu0 0
    %827 = vmatprep.subr.bf16.mxu0 0
    %828 = vmatpush1.bf16.msra.mxu0 0
    %829 = vmatprep.subr.bf16.mxu0 0
    %830 = vmatpush1.bf16.msra.mxu0 0
    %831 = vmatprep.subr.bf16.mxu0 0
    %832 = vmatpush1.bf16.msra.mxu0 0
    %833 = vmatprep.subr.bf16.mxu0 0
    %834 = vmatpush1.bf16.msra.mxu0 0
    %835 = vmatprep.subr.bf16.mxu0 0
    %836 = vmatpush1.bf16.msra.mxu0 0
    %837 = vmatprep.subr.bf16.mxu0 0
    %838 = vmatpush1.bf16.msra.mxu0 0
    %839 = vmatprep.subr.bf16.mxu0 0
    %840 = vmatpush1.bf16.msra.mxu0 0
    %841 = vmatprep.subr.bf16.mxu0 0
    %842 = vmatpush1.bf16.msra.mxu0 0
    %843 = vmatprep.subr.bf16.mxu0 0
    %844 = vmatpush1.bf16.msra.mxu0 0
    %845 = vmatprep.subr.bf16.mxu0 0
    %846 = vmatpush1.bf16.msra.mxu0 0
    %847 = vmatprep.subr.bf16.mxu0 0
    %848 = vmatpush1.bf16.msra.mxu0 0
    %849 = vmatprep.subr.bf16.mxu0 0
    %850 = vmatpush1.bf16.msra.mxu0 0
    %851 = vmatprep.subr.bf16.mxu0 0
    %852 = vmatpush1.bf16.msra.mxu0 0
    %853 = vmatprep.subr.bf16.mxu0 0
    %854 = vmatpush1.bf16.msra.mxu0 0
    %855 = vmatprep.mubr.bf16.mxu0 0
    %856 = vmatmul.mubr.bf16.gmra.mrb[0].mxu0 %v818
    %v857 = vpop.f32.mrb[0].mxu0
    %v858 = vadd.f32 0.0, %v857
    %v859 = vpop.f32.mrb[0].mxu0
    %v860 = vpop.f32.mrb[0].mxu0
    %v861 = vpop.f32.mrb[0].mxu0
    %862 = vdwg.mxu0
    %864 = vrot.lane.b32.xlu0 %v594, 112
    %v865 = vpop.permute.xlu0 %864
    %v867 = vsel %vm568, %v813, 0
    %v870 = vsel %vm598, %v865, 0
    %872 = vmatprep.subr.bf16.mxu0 0
    %873 = vmatpush1.bf16.msra.mxu0 %v870
    %874 = vmatprep.subr.bf16.mxu0 0
    %875 = vmatpush1.bf16.msra.mxu0 0
    %876 = vmatprep.subr.bf16.mxu0 0
    %877 = vmatpush1.bf16.msra.mxu0 0
    %878 = vmatprep.subr.bf16.mxu0 0
    %879 = vmatpush1.bf16.msra.mxu0 0
    %880 = vmatprep.subr.bf16.mxu0 0
    %881 = vmatpush1.bf16.msra.mxu0 0
    %882 = vmatprep.subr.bf16.mxu0 0
    %883 = vmatpush1.bf16.msra.mxu0 0
    %884 = vmatprep.subr.bf16.mxu0 0
    %885 = vmatpush1.bf16.msra.mxu0 0
    %886 = vmatprep.subr.bf16.mxu0 0
    %887 = vmatpush1.bf16.msra.mxu0 0
    %888 = vmatprep.subr.bf16.mxu0 0
    %889 = vmatpush1.bf16.msra.mxu0 0
    %890 = vmatprep.subr.bf16.mxu0 0
    %891 = vmatpush1.bf16.msra.mxu0 0
    %892 = vmatprep.subr.bf16.mxu0 0
    %893 = vmatpush1.bf16.msra.mxu0 0
    %894 = vmatprep.subr.bf16.mxu0 0
    %895 = vmatpush1.bf16.msra.mxu0 0
    %896 = vmatprep.subr.bf16.mxu0 0
    %897 = vmatpush1.bf16.msra.mxu0 0
    %898 = vmatprep.subr.bf16.mxu0 0
    %899 = vmatpush1.bf16.msra.mxu0 0
    %900 = vmatprep.subr.bf16.mxu0 0
    %901 = vmatpush1.bf16.msra.mxu0 0
    %902 = vmatprep.subr.bf16.mxu0 0
    %903 = vmatpush1.bf16.msra.mxu0 0
    %904 = vmatprep.mubr.bf16.mxu0 0
    %905 = vmatmul.mubr.bf16.gmra.mrb[0].mxu0 %v867
    %v906 = vpop.f32.mrb[0].mxu0
    %v907 = vadd.f32 0.0, %v906
    %v908 = vpop.f32.mrb[0].mxu0
    %v909 = vpop.f32.mrb[0].mxu0
    %v910 = vpop.f32.mrb[0].mxu0
    %911 = vdwg.mxu0
    %912 = vrot.lane.b32.xlu0 %v465, 96
    %v913 = vpop.permute.xlu0 %912
    %914 = vrot.lane.b32.xlu0 %v465, 32
    %v915 = vpop.permute.xlu0 %914
    %v917 = vsel %vm470, %v913, 0
    %v920 = vsel %vm470, %v915, 0
    %922 = vmatprep.subr.bf16.mxu0 0
    %923 = vmatpush1.bf16.xpose.msra.mxu0 %v920
    %924 = vmatprep.subr.bf16.mxu0 0
    %925 = vmatpush1.bf16.xpose.msra.mxu0 0
    %926 = vmatprep.subr.bf16.mxu0 0
    %927 = vmatpush1.bf16.xpose.msra.mxu0 0
    %928 = vmatprep.subr.bf16.mxu0 0
    %929 = vmatpush1.bf16.xpose.msra.mxu0 0
    %930 = vmatprep.subr.bf16.mxu0 0
    %931 = vmatpush1.bf16.xpose.msra.mxu0 0
    %932 = vmatprep.subr.bf16.mxu0 0
    %933 = vmatpush1.bf16.xpose.msra.mxu0 0
    %934 = vmatprep.subr.bf16.mxu0 0
    %935 = vmatpush1.bf16.xpose.msra.mxu0 0
    %936 = vmatprep.subr.bf16.mxu0 0
    %937 = vmatpush1.bf16.xpose.msra.mxu0 0
    %938 = vmatprep.subr.bf16.mxu0 0
    %939 = vmatpush1.bf16.xpose.msra.mxu0 0
    %940 = vmatprep.subr.bf16.mxu0 0
    %941 = vmatpush1.bf16.xpose.msra.mxu0 0
    %942 = vmatprep.subr.bf16.mxu0 0
    %943 = vmatpush1.bf16.xpose.msra.mxu0 0
    %944 = vmatprep.subr.bf16.mxu0 0
    %945 = vmatpush1.bf16.xpose.msra.mxu0 0
    %946 = vmatprep.subr.bf16.mxu0 0
    %947 = vmatpush1.bf16.xpose.msra.mxu0 0
    %948 = vmatprep.subr.bf16.mxu0 0
    %949 = vmatpush1.bf16.xpose.msra.mxu0 0
    %950 = vmatprep.subr.bf16.mxu0 0
    %951 = vmatpush1.bf16.xpose.msra.mxu0 0
    %952 = vmatprep.subr.bf16.mxu0 0
    %953 = vmatpush1.bf16.xpose.msra.mxu0 0
    %954 = vmatprep.mubr.bf16.mxu0 0
    %955 = vmatmul.mubr.bf16.gmra.mrb[0].mxu0 %v917
    %v956 = vpop.f32.mrb[0].mxu0
    %v957 = vadd.f32 0.0, %v956
    %v958 = vpop.f32.mrb[0].mxu0
    %v959 = vpop.f32.mrb[0].mxu0
    %v960 = vpop.f32.mrb[0].mxu0
    %961 = vdwg.mxu0
    %962 = vrot.lane.b32.xlu0 %v466, 96
    %v963 = vpop.permute.xlu0 %962
    %964 = vrot.lane.b32.xlu0 %v466, 32
    %v965 = vpop.permute.xlu0 %964
    %v967 = vsel %vm470, %v963, 0
    %v970 = vsel %vm470, %v965, 0
    %972 = vmatprep.subr.bf16.mxu0 0
    %973 = vmatpush1.bf16.xpose.msra.mxu0 %v970
    %974 = vmatprep.subr.bf16.mxu0 0
    %975 = vmatpush1.bf16.xpose.msra.mxu0 0
    %976 = vmatprep.subr.bf16.mxu0 0
    %977 = vmatpush1.bf16.xpose.msra.mxu0 0
    %978 = vmatprep.subr.bf16.mxu0 0
    %979 = vmatpush1.bf16.xpose.msra.mxu0 0
    %980 = vmatprep.subr.bf16.mxu0 0
    %981 = vmatpush1.bf16.xpose.msra.mxu0 0
    %982 = vmatprep.subr.bf16.mxu0 0
    %983 = vmatpush1.bf16.xpose.msra.mxu0 0
    %984 = vmatprep.subr.bf16.mxu0 0
    %985 = vmatpush1.bf16.xpose.msra.mxu0 0
    %986 = vmatprep.subr.bf16.mxu0 0
    %987 = vmatpush1.bf16.xpose.msra.mxu0 0
    %988 = vmatprep.subr.bf16.mxu0 0
    %989 = vmatpush1.bf16.xpose.msra.mxu0 0
    %990 = vmatprep.subr.bf16.mxu0 0
    %991 = vmatpush1.bf16.xpose.msra.mxu0 0
    %992 = vmatprep.subr.bf16.mxu0 0
    %993 = vmatpush1.bf16.xpose.msra.mxu0 0
    %994 = vmatprep.subr.bf16.mxu0 0
    %995 = vmatpush1.bf16.xpose.msra.mxu0 0
    %996 = vmatprep.subr.bf16.mxu0 0
    %997 = vmatpush1.bf16.xpose.msra.mxu0 0
    %998 = vmatprep.subr.bf16.mxu0 0
    %999 = vmatpush1.bf16.xpose.msra.mxu0 0
    %1000 = vmatprep.subr.bf16.mxu0 0
    %1001 = vmatpush1.bf16.xpose.msra.mxu0 0
    %1002 = vmatprep.subr.bf16.mxu0 0
    %1003 = vmatpush1.bf16.xpose.msra.mxu0 0
    %1004 = vmatprep.mubr.bf16.mxu0 0
    %1005 = vmatmul.mubr.bf16.gmra.mrb[0].mxu0 %v967
    %v1006 = vpop.f32.mrb[0].mxu0
    %v1007 = vadd.f32 0.0, %v1006
    %v1008 = vpop.f32.mrb[0].mxu0
    %v1009 = vpop.f32.mrb[0].mxu0
    %v1010 = vpop.f32.mrb[0].mxu0
    %1011 = vdwg.mxu0
    %v1012 = vmul.f32 %v957, 0.25
    %v1013 = vmul.f32 %v1007, 0.25
    %v1014 = vsel %vm568, %v1012, -inf
    %1015 = vmax.xlane.f32.xlu0 %v1014
    %v1016 = vpop.xlane.xlu0 %1015
    %v1017 = vsel %vm568, %v1013, -inf
    %1018 = vmax.xlane.f32.xlu0 %v1017
    %v1019 = vpop.xlane.xlu0 %1018
    %v1020 = vsub.f32 %v1012, %v1016
    %v1021 = vsub.f32 %v1013, %v1019
    %v1022 = vmul.f32 %v1020, 1.442695
    %v1023 = vpow.pop %v1022
    %v1024 = vmul.f32 %v1021, 1.442695
    %v1025 = vpow.pop %v1024
    %v1026 = vsel %vm568, %v1023, 0.0
    %1027 = vadd.xlane.f32.xlu0 %v1026
    %v1028 = vpop.xlane.xlu0 %1027
    %v1029 = vsel %vm568, %v1025, 0.0
    %1030 = vadd.xlane.f32.xlu0 %v1029
    %v1031 = vpop.xlane.xlu0 %1030
    %v1032 = vrcp.pop %v1028
    %v1033 = vrcp.pop %v1031
    %v1034 = vmul.f32 %v1023, %v1032
    %v1035 = vmul.f32 %v1025, %v1033
    %v1036 = vpack.c.bf16 %v1034, %v1034
    %v1037 = vpack.c.bf16 %v1035, %v1035
    %1038 = vrot.lane.b32.xlu0 %v593, 96
    %v1039 = vpop.permute.xlu0 %1038
    %v1041 = vsel %vm568, %v1036, 0
    %v1044 = vsel %vm598, %v1039, 0
    %1046 = vmatprep.subr.bf16.mxu0 0
    %1047 = vmatpush1.bf16.msra.mxu0 %v1044
    %1048 = vmatprep.subr.bf16.mxu0 0
    %1049 = vmatpush1.bf16.msra.mxu0 0
    %1050 = vmatprep.subr.bf16.mxu0 0
    %1051 = vmatpush1.bf16.msra.mxu0 0
    %1052 = vmatprep.subr.bf16.mxu0 0
    %1053 = vmatpush1.bf16.msra.mxu0 0
    %1054 = vmatprep.subr.bf16.mxu0 0
    %1055 = vmatpush1.bf16.msra.mxu0 0
    %1056 = vmatprep.subr.bf16.mxu0 0
    %1057 = vmatpush1.bf16.msra.mxu0 0
    %1058 = vmatprep.subr.bf16.mxu0 0
    %1059 = vmatpush1.bf16.msra.mxu0 0
    %1060 = vmatprep.subr.bf16.mxu0 0
    %1061 = vmatpush1.bf16.msra.mxu0 0
    %1062 = vmatprep.subr.bf16.mxu0 0
    %1063 = vmatpush1.bf16.msra.mxu0 0
    %1064 = vmatprep.subr.bf16.mxu0 0
    %1065 = vmatpush1.bf16.msra.mxu0 0
    %1066 = vmatprep.subr.bf16.mxu0 0
    %1067 = vmatpush1.bf16.msra.mxu0 0
    %1068 = vmatprep.subr.bf16.mxu0 0
    %1069 = vmatpush1.bf16.msra.mxu0 0
    %1070 = vmatprep.subr.bf16.mxu0 0
    %1071 = vmatpush1.bf16.msra.mxu0 0
    %1072 = vmatprep.subr.bf16.mxu0 0
    %1073 = vmatpush1.bf16.msra.mxu0 0
    %1074 = vmatprep.subr.bf16.mxu0 0
    %1075 = vmatpush1.bf16.msra.mxu0 0
    %1076 = vmatprep.subr.bf16.mxu0 0
    %1077 = vmatpush1.bf16.msra.mxu0 0
    %1078 = vmatprep.mubr.bf16.mxu0 0
    %1079 = vmatmul.mubr.bf16.gmra.mrb[0].mxu0 %v1041
    %v1080 = vpop.f32.mrb[0].mxu0
    %v1081 = vadd.f32 0.0, %v1080
    %v1082 = vpop.f32.mrb[0].mxu0
    %v1083 = vpop.f32.mrb[0].mxu0
    %v1084 = vpop.f32.mrb[0].mxu0
    %1085 = vdwg.mxu0
    %1086 = vrot.lane.b32.xlu0 %v594, 96
    %v1087 = vpop.permute.xlu0 %1086
    %v1089 = vsel %vm568, %v1037, 0
    %v1092 = vsel %vm598, %v1087, 0
    %1094 = vmatprep.subr.bf16.mxu0 0
    %1095 = vmatpush1.bf16.msra.mxu0 %v1092
    %1096 = vmatprep.subr.bf16.mxu0 0
    %1097 = vmatpush1.bf16.msra.mxu0 0
    %1098 = vmatprep.subr.bf16.mxu0 0
    %1099 = vmatpush1.bf16.msra.mxu0 0
    %1100 = vmatprep.subr.bf16.mxu0 0
    %1101 = vmatpush1.bf16.msra.mxu0 0
    %1102 = vmatprep.subr.bf16.mxu0 0
    %1103 = vmatpush1.bf16.msra.mxu0 0
    %1104 = vmatprep.subr.bf16.mxu0 0
    %1105 = vmatpush1.bf16.msra.mxu0 0
    %1106 = vmatprep.subr.bf16.mxu0 0
    %1107 = vmatpush1.bf16.msra.mxu0 0
    %1108 = vmatprep.subr.bf16.mxu0 0
    %1109 = vmatpush1.bf16.msra.mxu0 0
    %1110 = vmatprep.subr.bf16.mxu0 0
    %1111 = vmatpush1.bf16.msra.mxu0 0
    %1112 = vmatprep.subr.bf16.mxu0 0
    %1113 = vmatpush1.bf16.msra.mxu0 0
    %1114 = vmatprep.subr.bf16.mxu0 0
    %1115 = vmatpush1.bf16.msra.mxu0 0
    %1116 = vmatprep.subr.bf16.mxu0 0
    %1117 = vmatpush1.bf16.msra.mxu0 0
    %1118 = vmatprep.subr.bf16.mxu0 0
    %1119 = vmatpush1.bf16.msra.mxu0 0
    %1120 = vmatprep.subr.bf16.mxu0 0
    %1121 = vmatpush1.bf16.msra.mxu0 0
    %1122 = vmatprep.subr.bf16.mxu0 0
    %1123 = vmatpush1.bf16.msra.mxu0 0
    %1124 = vmatprep.subr.bf16.mxu0 0
    %1125 = vmatpush1.bf16.msra.mxu0 0
    %1126 = vmatprep.mubr.bf16.mxu0 0
    %1127 = vmatmul.mubr.bf16.gmra.mrb[0].mxu0 %v1089
    %v1128 = vpop.f32.mrb[0].mxu0
    %v1129 = vadd.f32 0.0, %v1128
    %v1130 = vpop.f32.mrb[0].mxu0
    %v1131 = vpop.f32.mrb[0].mxu0
    %v1132 = vpop.f32.mrb[0].mxu0
    %1133 = vdwg.mxu0
    %1134 = vrot.lane.b32.xlu0 %v465, 80
    %v1135 = vpop.permute.xlu0 %1134
    %1136 = vrot.lane.b32.xlu0 %v465, 16
    %v1137 = vpop.permute.xlu0 %1136
    %v1139 = vsel %vm470, %v1135, 0
    %v1142 = vsel %vm470, %v1137, 0
    %1144 = vmatprep.subr.bf16.mxu0 0
    %1145 = vmatpush1.bf16.xpose.msra.mxu0 %v1142
    %1146 = vmatprep.subr.bf16.mxu0 0
    %1147 = vmatpush1.bf16.xpose.msra.mxu0 0
    %1148 = vmatprep.subr.bf16.mxu0 0
    %1149 = vmatpush1.bf16.xpose.msra.mxu0 0
    %1150 = vmatprep.subr.bf16.mxu0 0
    %1151 = vmatpush1.bf16.xpose.msra.mxu0 0
    %1152 = vmatprep.subr.bf16.mxu0 0
    %1153 = vmatpush1.bf16.xpose.msra.mxu0 0
    %1154 = vmatprep.subr.bf16.mxu0 0
    %1155 = vmatpush1.bf16.xpose.msra.mxu0 0
    %1156 = vmatprep.subr.bf16.mxu0 0
    %1157 = vmatpush1.bf16.xpose.msra.mxu0 0
    %1158 = vmatprep.subr.bf16.mxu0 0
    %1159 = vmatpush1.bf16.xpose.msra.mxu0 0
    %1160 = vmatprep.subr.bf16.mxu0 0
    %1161 = vmatpush1.bf16.xpose.msra.mxu0 0
    %1162 = vmatprep.subr.bf16.mxu0 0
    %1163 = vmatpush1.bf16.xpose.msra.mxu0 0
    %1164 = vmatprep.subr.bf16.mxu0 0
    %1165 = vmatpush1.bf16.xpose.msra.mxu0 0
    %1166 = vmatprep.subr.bf16.mxu0 0
    %1167 = vmatpush1.bf16.xpose.msra.mxu0 0
    %1168 = vmatprep.subr.bf16.mxu0 0
    %1169 = vmatpush1.bf16.xpose.msra.mxu0 0
    %1170 = vmatprep.subr.bf16.mxu0 0
    %1171 = vmatpush1.bf16.xpose.msra.mxu0 0
    %1172 = vmatprep.subr.bf16.mxu0 0
    %1173 = vmatpush1.bf16.xpose.msra.mxu0 0
    %1174 = vmatprep.subr.bf16.mxu0 0
    %1175 = vmatpush1.bf16.xpose.msra.mxu0 0
    %1176 = vmatprep.mubr.bf16.mxu0 0
    %1177 = vmatmul.mubr.bf16.gmra.mrb[0].mxu0 %v1139
    %v1178 = vpop.f32.mrb[0].mxu0
    %v1179 = vadd.f32 0.0, %v1178
    %v1180 = vpop.f32.mrb[0].mxu0
    %v1181 = vpop.f32.mrb[0].mxu0
    %v1182 = vpop.f32.mrb[0].mxu0
    %1183 = vdwg.mxu0
    %1184 = vrot.lane.b32.xlu0 %v466, 80
    %v1185 = vpop.permute.xlu0 %1184
    %1186 = vrot.lane.b32.xlu0 %v466, 16
    %v1187 = vpop.permute.xlu0 %1186
    %v1189 = vsel %vm470, %v1185, 0
    %v1192 = vsel %vm470, %v1187, 0
    %1194 = vmatprep.subr.bf16.mxu0 0
    %1195 = vmatpush1.bf16.xpose.msra.mxu0 %v1192
    %1196 = vmatprep.subr.bf16.mxu0 0
    %1197 = vmatpush1.bf16.xpose.msra.mxu0 0
    %1198 = vmatprep.subr.bf16.mxu0 0
    %1199 = vmatpush1.bf16.xpose.msra.mxu0 0
    %1200 = vmatprep.subr.bf16.mxu0 0
    %1201 = vmatpush1.bf16.xpose.msra.mxu0 0
    %1202 = vmatprep.subr.bf16.mxu0 0
    %1203 = vmatpush1.bf16.xpose.msra.mxu0 0
    %1204 = vmatprep.subr.bf16.mxu0 0
    %1205 = vmatpush1.bf16.xpose.msra.mxu0 0
    %1206 = vmatprep.subr.bf16.mxu0 0
    %1207 = vmatpush1.bf16.xpose.msra.mxu0 0
    %1208 = vmatprep.subr.bf16.mxu0 0
    %1209 = vmatpush1.bf16.xpose.msra.mxu0 0
    %1210 = vmatprep.subr.bf16.mxu0 0
    %1211 = vmatpush1.bf16.xpose.msra.mxu0 0
    %1212 = vmatprep.subr.bf16.mxu0 0
    %1213 = vmatpush1.bf16.xpose.msra.mxu0 0
    %1214 = vmatprep.subr.bf16.mxu0 0
    %1215 = vmatpush1.bf16.xpose.msra.mxu0 0
    %1216 = vmatprep.subr.bf16.mxu0 0
    %1217 = vmatpush1.bf16.xpose.msra.mxu0 0
    %1218 = vmatprep.subr.bf16.mxu0 0
    %1219 = vmatpush1.bf16.xpose.msra.mxu0 0
    %1220 = vmatprep.subr.bf16.mxu0 0
    %1221 = vmatpush1.bf16.xpose.msra.mxu0 0
    %1222 = vmatprep.subr.bf16.mxu0 0
    %1223 = vmatpush1.bf16.xpose.msra.mxu0 0
    %1224 = vmatprep.subr.bf16.mxu0 0
    %1225 = vmatpush1.bf16.xpose.msra.mxu0 0
    %1226 = vmatprep.mubr.bf16.mxu0 0
    %1227 = vmatmul.mubr.bf16.gmra.mrb[0].mxu0 %v1189
    %v1228 = vpop.f32.mrb[0].mxu0
    %v1229 = vadd.f32 0.0, %v1228
    %v1230 = vpop.f32.mrb[0].mxu0
    %v1231 = vpop.f32.mrb[0].mxu0
    %v1232 = vpop.f32.mrb[0].mxu0
    %1233 = vdwg.mxu0
    %v1234 = vmul.f32 %v1179, 0.25
    %v1235 = vmul.f32 %v1229, 0.25
    %v1236 = vsel %vm568, %v1234, -inf
    %1237 = vmax.xlane.f32.xlu0 %v1236
    %v1238 = vpop.xlane.xlu0 %1237
    %v1239 = vsel %vm568, %v1235, -inf
    %1240 = vmax.xlane.f32.xlu0 %v1239
    %v1241 = vpop.xlane.xlu0 %1240
    %v1242 = vsub.f32 %v1234, %v1238
    %v1243 = vsub.f32 %v1235, %v1241
    %v1244 = vmul.f32 %v1242, 1.442695
    %v1245 = vpow.pop %v1244
    %v1246 = vmul.f32 %v1243, 1.442695
    %v1247 = vpow.pop %v1246
    %v1248 = vsel %vm568, %v1245, 0.0
    %1249 = vadd.xlane.f32.xlu0 %v1248
    %v1250 = vpop.xlane.xlu0 %1249
    %v1251 = vsel %vm568, %v1247, 0.0
    %1252 = vadd.xlane.f32.xlu0 %v1251
    %v1253 = vpop.xlane.xlu0 %1252
    %v1254 = vrcp.pop %v1250
    %v1255 = vrcp.pop %v1253
    %v1256 = vmul.f32 %v1245, %v1254
    %v1257 = vmul.f32 %v1247, %v1255
    %v1258 = vpack.c.bf16 %v1256, %v1256
    %v1259 = vpack.c.bf16 %v1257, %v1257
    %1260 = vrot.lane.b32.xlu0 %v593, 80
    %v1261 = vpop.permute.xlu0 %1260
    %v1263 = vsel %vm568, %v1258, 0
    %v1266 = vsel %vm598, %v1261, 0
    %1268 = vmatprep.subr.bf16.mxu0 0
    %1269 = vmatpush1.bf16.msra.mxu0 %v1266
    %1270 = vmatprep.subr.bf16.mxu0 0
    %1271 = vmatpush1.bf16.msra.mxu0 0
    %1272 = vmatprep.subr.bf16.mxu0 0
    %1273 = vmatpush1.bf16.msra.mxu0 0
    %1274 = vmatprep.subr.bf16.mxu0 0
    %1275 = vmatpush1.bf16.msra.mxu0 0
    %1276 = vmatprep.subr.bf16.mxu0 0
    %1277 = vmatpush1.bf16.msra.mxu0 0
    %1278 = vmatprep.subr.bf16.mxu0 0
    %1279 = vmatpush1.bf16.msra.mxu0 0
    %1280 = vmatprep.subr.bf16.mxu0 0
    %1281 = vmatpush1.bf16.msra.mxu0 0
    %1282 = vmatprep.subr.bf16.mxu0 0
    %1283 = vmatpush1.bf16.msra.mxu0 0
    %1284 = vmatprep.subr.bf16.mxu0 0
    %1285 = vmatpush1.bf16.msra.mxu0 0
    %1286 = vmatprep.subr.bf16.mxu0 0
    %1287 = vmatpush1.bf16.msra.mxu0 0
    %1288 = vmatprep.subr.bf16.mxu0 0
    %1289 = vmatpush1.bf16.msra.mxu0 0
    %1290 = vmatprep.subr.bf16.mxu0 0
    %1291 = vmatpush1.bf16.msra.mxu0 0
    %1292 = vmatprep.subr.bf16.mxu0 0
    %1293 = vmatpush1.bf16.msra.mxu0 0
    %1294 = vmatprep.subr.bf16.mxu0 0
    %1295 = vmatpush1.bf16.msra.mxu0 0
    %1296 = vmatprep.subr.bf16.mxu0 0
    %1297 = vmatpush1.bf16.msra.mxu0 0
    %1298 = vmatprep.subr.bf16.mxu0 0
    %1299 = vmatpush1.bf16.msra.mxu0 0
    %1300 = vmatprep.mubr.bf16.mxu0 0
    %1301 = vmatmul.mubr.bf16.gmra.mrb[0].mxu0 %v1263
    %v1302 = vpop.f32.mrb[0].mxu0
    %v1303 = vadd.f32 0.0, %v1302
    %v1304 = vpop.f32.mrb[0].mxu0
    %v1305 = vpop.f32.mrb[0].mxu0
    %v1306 = vpop.f32.mrb[0].mxu0
    %1307 = vdwg.mxu0
    %1308 = vrot.lane.b32.xlu0 %v594, 80
    %v1309 = vpop.permute.xlu0 %1308
    %v1311 = vsel %vm568, %v1259, 0
    %v1314 = vsel %vm598, %v1309, 0
    %1316 = vmatprep.subr.bf16.mxu0 0
    %1317 = vmatpush1.bf16.msra.mxu0 %v1314
    %1318 = vmatprep.subr.bf16.mxu0 0
    %1319 = vmatpush1.bf16.msra.mxu0 0
    %1320 = vmatprep.subr.bf16.mxu0 0
    %1321 = vmatpush1.bf16.msra.mxu0 0
    %1322 = vmatprep.subr.bf16.mxu0 0
    %1323 = vmatpush1.bf16.msra.mxu0 0
    %1324 = vmatprep.subr.bf16.mxu0 0
    %1325 = vmatpush1.bf16.msra.mxu0 0
    %1326 = vmatprep.subr.bf16.mxu0 0
    %1327 = vmatpush1.bf16.msra.mxu0 0
    %1328 = vmatprep.subr.bf16.mxu0 0
    %1329 = vmatpush1.bf16.msra.mxu0 0
    %1330 = vmatprep.subr.bf16.mxu0 0
    %1331 = vmatpush1.bf16.msra.mxu0 0
    %1332 = vmatprep.subr.bf16.mxu0 0
    %1333 = vmatpush1.bf16.msra.mxu0 0
    %1334 = vmatprep.subr.bf16.mxu0 0
    %1335 = vmatpush1.bf16.msra.mxu0 0
    %1336 = vmatprep.subr.bf16.mxu0 0
    %1337 = vmatpush1.bf16.msra.mxu0 0
    %1338 = vmatprep.subr.bf16.mxu0 0
    %1339 = vmatpush1.bf16.msra.mxu0 0
    %1340 = vmatprep.subr.bf16.mxu0 0
    %1341 = vmatpush1.bf16.msra.mxu0 0
    %1342 = vmatprep.subr.bf16.mxu0 0
    %1343 = vmatpush1.bf16.msra.mxu0 0
    %1344 = vmatprep.subr.bf16.mxu0 0
    %1345 = vmatpush1.bf16.msra.mxu0 0
    %1346 = vmatprep.subr.bf16.mxu0 0
    %1347 = vmatpush1.bf16.msra.mxu0 0
    %1348 = vmatprep.mubr.bf16.mxu0 0
    %1349 = vmatmul.mubr.bf16.gmra.mrb[0].mxu0 %v1311
    %v1350 = vpop.f32.mrb[0].mxu0
    %v1351 = vadd.f32 0.0, %v1350
    %v1352 = vpop.f32.mrb[0].mxu0
    %v1353 = vpop.f32.mrb[0].mxu0
    %v1354 = vpop.f32.mrb[0].mxu0
    %1355 = vdwg.mxu0
    %1358 = vrot.lane.b32.xlu0 %v858, 16
    %v1359 = vpop.permute.xlu0 %1358
    %1360 = vrot.lane.b32.xlu0 %v907, 16
    %v1361 = vpop.permute.xlu0 %1360
    %1366 = vrot.lane.b32.xlu0 %v1081, 32
    %v1367 = vpop.permute.xlu0 %1366
    %1368 = vrot.lane.b32.xlu0 %v1129, 32
    %v1369 = vpop.permute.xlu0 %1368
    %1374 = vrot.lane.b32.xlu0 %v1303, 48
    %v1375 = vpop.permute.xlu0 %1374
    %1376 = vrot.lane.b32.xlu0 %v1351, 48
    %v1377 = vpop.permute.xlu0 %1376
    %v1380 = vsel %vm470, %v637, %v1359
    %v1381 = vsel %vm470, %v683, %v1361
    %v1382 = vsel %vm197, %v1380, %v1367
    %v1383 = vsel %vm197, %v1381, %v1369
    %vm1384 = vcmask 392192
    %v1385 = vsel %vm1384, %v1382, %v1375
    %v1386 = vsel %vm1384, %v1383, %v1377
    %v1387 = vpack.c.bf16 %v1386, %v1385
    %v1388 = vld [vmem:[#allocation10] sm:$0xf]
    %v1389 = vld [vmem:[#allocation10 + $0x4] sm:$0xf]
    %v1390 = vld [vmem:[#allocation10 + $0x8] sm:$0xf]
    %v1391 = vld [vmem:[#allocation10 + $0xc] sm:$0xf]
    %v1392 = vld [vmem:[#allocation10 + $0x10] sm:$0xf]
    %v1393 = vld [vmem:[#allocation10 + $0x14] sm:$0xf]
    %v1394 = vld [vmem:[#allocation10 + $0x18] sm:$0xf]
    %v1395 = vld [vmem:[#allocation10 + $0x1c] sm:$0xf]
    %v1396 = vld [vmem:[#allocation11] sm:$0x1]
    %v1398 = vlaneseq
    %v1399 = vshrl.u32 %v1398, 7
    %v1400 = vsub.s32 0, %v1399
    %v1401 = vrot.slane %v1396, %v1400
    %v1411 = vunpack.c.l.b16 %v1388
    %v1412 = vunpack.c.l.b16 %v1389
    %v1413 = vunpack.c.l.b16 %v1390
    %v1414 = vunpack.c.l.b16 %v1391
    %v1415 = vunpack.c.l.b16 %v1392
    %v1416 = vunpack.c.l.b16 %v1393
    %v1417 = vunpack.c.l.b16 %v1394
    %v1418 = vunpack.c.l.b16 %v1395
    %v1419 = vpack.c.b16 %v1412, %v1411
    %v1420 = vpack.c.b16 %v1414, %v1413
    %v1421 = vpack.c.b16 %v1416, %v1415
    %v1422 = vpack.c.b16 %v1418, %v1417
    %v1428 = vsel %vm418, %v1387, 0
    %1430 = vmatprep.subr.bf16.mxu0 0
    %1431 = vmatpush1.bf16.msra.mxu0 %v1419
    %1432 = vmatprep.subr.bf16.mxu0 0
    %1433 = vmatpush1.bf16.msra.mxu0 %v1420
    %1434 = vmatprep.subr.bf16.mxu0 0
    %1435 = vmatpush1.bf16.msra.mxu0 %v1421
    %1436 = vmatprep.subr.bf16.mxu0 0
    %1437 = vmatpush1.bf16.msra.mxu0 %v1422
    %1438 = vmatprep.subr.bf16.mxu0 0
    %1439 = vmatpush1.bf16.msra.mxu0 0
    %1440 = vmatprep.subr.bf16.mxu0 0
    %1441 = vmatpush1.bf16.msra.mxu0 0
    %1442 = vmatprep.subr.bf16.mxu0 0
    %1443 = vmatpush1.bf16.msra.mxu0 0
    %1444 = vmatprep.subr.bf16.mxu0 0
    %1445 = vmatpush1.bf16.msra.mxu0 0
    %1446 = vmatprep.subr.bf16.mxu0 0
    %1447 = vmatpush1.bf16.msra.mxu0 0
    %1448 = vmatprep.subr.bf16.mxu0 0
    %1449 = vmatpush1.bf16.msra.mxu0 0
    %1450 = vmatprep.subr.bf16.mxu0 0
    %1451 = vmatpush1.bf16.msra.mxu0 0
    %1452 = vmatprep.subr.bf16.mxu0 0
    %1453 = vmatpush1.bf16.msra.mxu0 0
    %1454 = vmatprep.subr.bf16.mxu0 0
    %1455 = vmatpush1.bf16.msra.mxu0 0
    %1456 = vmatprep.subr.bf16.mxu0 0
    %1457 = vmatpush1.bf16.msra.mxu0 0
    %1458 = vmatprep.subr.bf16.mxu0 0
    %1459 = vmatpush1.bf16.msra.mxu0 0
    %1460 = vmatprep.subr.bf16.mxu0 0
    %1461 = vmatpush1.bf16.msra.mxu0 0
    %1462 = vmatprep.mubr.bf16.mxu0 0
    %1463 = vmatmul.mubr.bf16.gmra.mrb[0].mxu0 %v1428
    %v1464 = vpop.f32.mrb[0].mxu0
    %v1465 = vadd.f32 %v1401, %v1464
    %v1466 = vpop.f32.mrb[0].mxu0
    %v1467 = vpop.f32.mrb[0].mxu0
    %v1468 = vadd.f32 %v1401, %v1467
    %v1469 = vpop.f32.mrb[0].mxu0
    %1470 = vdwg.mxu0
    %v1471 = vpack.c.bf16 %v1468, %v1465
    %v1472 = vld [vmem:[#allocation13] sm:$0xf]
    %v1473 = vld [vmem:[#allocation13 + $0x4] sm:$0xf]
    %v1474 = vld [vmem:[#allocation13 + $0x8] sm:$0xf]
    %v1475 = vld [vmem:[#allocation13 + $0xc] sm:$0xf]
    %v1476 = vld [vmem:[#allocation13 + $0x10] sm:$0xf]
    %v1477 = vld [vmem:[#allocation13 + $0x14] sm:$0xf]
    %v1478 = vld [vmem:[#allocation13 + $0x18] sm:$0xf]
    %v1479 = vld [vmem:[#allocation13 + $0x1c] sm:$0xf]
    %v1480 = vld [vmem:[%s10] sm:$0x1]
    %v1482 = vlaneseq
    %v1483 = vshrl.u32 %v1482, 7
    %v1484 = vsub.s32 0, %v1483
    %v1485 = vrot.slane %v1480, %v1484
    %v1495 = vunpack.c.l.b16 %v1472
    %v1496 = vunpack.c.l.b16 %v1473
    %v1497 = vunpack.c.l.b16 %v1474
    %v1498 = vunpack.c.l.b16 %v1475
    %v1499 = vunpack.c.l.b16 %v1476
    %v1500 = vunpack.c.l.b16 %v1477
    %v1501 = vunpack.c.l.b16 %v1478
    %v1502 = vunpack.c.l.b16 %v1479
    %v1503 = vpack.c.b16 %v1496, %v1495
    %v1504 = vpack.c.b16 %v1498, %v1497
    %v1505 = vpack.c.b16 %v1500, %v1499
    %v1506 = vpack.c.b16 %v1502, %v1501
    %v1512 = vsel %vm418, %v1471, 0
    %1514 = vmatprep.subr.bf16.mxu0 0
    %1515 = vmatpush1.bf16.msra.mxu0 %v1503
    %1516 = vmatprep.subr.bf16.mxu0 0
    %1517 = vmatpush1.bf16.msra.mxu0 %v1504
    %1518 = vmatprep.subr.bf16.mxu0 0
    %1519 = vmatpush1.bf16.msra.mxu0 %v1505
    %1520 = vmatprep.subr.bf16.mxu0 0
    %1521 = vmatpush1.bf16.msra.mxu0 %v1506
    %1522 = vmatprep.subr.bf16.mxu0 0
    %1523 = vmatpush1.bf16.msra.mxu0 0
    %1524 = vmatprep.subr.bf16.mxu0 0
    %1525 = vmatpush1.bf16.msra.mxu0 0
    %1526 = vmatprep.subr.bf16.mxu0 0
    %1527 = vmatpush1.bf16.msra.mxu0 0
    %1528 = vmatprep.subr.bf16.mxu0 0
    %1529 = vmatpush1.bf16.msra.mxu0 0
    %1530 = vmatprep.subr.bf16.mxu0 0
    %1531 = vmatpush1.bf16.msra.mxu0 0
    %1532 = vmatprep.subr.bf16.mxu0 0
    %1533 = vmatpush1.bf16.msra.mxu0 0
    %1534 = vmatprep.subr.bf16.mxu0 0
    %1535 = vmatpush1.bf16.msra.mxu0 0
    %1536 = vmatprep.subr.bf16.mxu0 0
    %1537 = vmatpush1.bf16.msra.mxu0 0
    %1538 = vmatprep.subr.bf16.mxu0 0
    %1539 = vmatpush1.bf16.msra.mxu0 0
    %1540 = vmatprep.subr.bf16.mxu0 0
    %1541 = vmatpush1.bf16.msra.mxu0 0
    %1542 = vmatprep.subr.bf16.mxu0 0
    %1543 = vmatpush1.bf16.msra.mxu0 0
    %1544 = vmatprep.subr.bf16.mxu0 0
    %1545 = vmatpush1.bf16.msra.mxu0 0
    %1546 = vmatprep.mubr.bf16.mxu0 0
    %1547 = vmatmul.mubr.bf16.gmra.mrb[0].mxu0 %v1512
    %v1548 = vpop.f32.mrb[0].mxu0
    %v1549 = vadd.f32 %v1485, %v1548
    %v1550 = vpop.f32.mrb[0].mxu0
    %v1551 = vpop.f32.mrb[0].mxu0
    %v1552 = vadd.f32 %v1485, %v1551
    %v1553 = vpop.f32.mrb[0].mxu0
    %1554 = vdwg.mxu0
    %v1555 = vld [vmem:[%s11] sm:$0xf]
    %v1556 = vld [vmem:[%s11 + $0x4] sm:$0xf]
    %v1557 = vld [vmem:[%s11 + $0x8] sm:$0xf]
    %v1558 = vld [vmem:[%s11 + $0xc] sm:$0xf]
    %v1559 = vld [vmem:[%s11 + $0x10] sm:$0xf]
    %v1560 = vld [vmem:[%s11 + $0x14] sm:$0xf]
    %v1561 = vld [vmem:[%s11 + $0x18] sm:$0xf]
    %v1562 = vld [vmem:[%s11 + $0x1c] sm:$0xf]
    %v1563 = vld [vmem:[%s11 + $0x20] sm:$0xf]
    %v1564 = vld [vmem:[%s11 + $0x24] sm:$0xf]
    %v1565 = vld [vmem:[%s11 + $0x28] sm:$0xf]
    %v1566 = vld [vmem:[%s11 + $0x2c] sm:$0xf]
    %v1567 = vld [vmem:[%s11 + $0x30] sm:$0xf]
    %v1568 = vld [vmem:[%s11 + $0x34] sm:$0xf]
    %v1569 = vld [vmem:[%s11 + $0x38] sm:$0xf]
    %v1570 = vld [vmem:[%s11 + $0x3c] sm:$0xf]
    %v1571 = vpack.c.bf16 %v1552, %v1549
    %v1572 = vld [vmem:[#allocation14] sm:$0xf]
    %v1573 = vld [vmem:[#allocation14 + $0x4] sm:$0xf]
    %v1574 = vld [vmem:[#allocation14 + $0x8] sm:$0xf]
    %v1575 = vld [vmem:[#allocation14 + $0xc] sm:$0xf]
    %v1576 = vld [vmem:[#allocation14 + $0x10] sm:$0xf]
    %v1577 = vld [vmem:[#allocation14 + $0x14] sm:$0xf]
    %v1578 = vld [vmem:[#allocation14 + $0x18] sm:$0xf]
    %v1579 = vld [vmem:[#allocation14 + $0x1c] sm:$0xf]
    %v1580 = vld [vmem:[#allocation14 + $0x20] sm:$0xf]
    %v1581 = vld [vmem:[#allocation14 + $0x24] sm:$0xf]
    %v1582 = vld [vmem:[#allocation14 + $0x28] sm:$0xf]
    %v1583 = vld [vmem:[#allocation14 + $0x2c] sm:$0xf]
    %v1584 = vld [vmem:[#allocation14 + $0x30] sm:$0xf]
    %v1585 = vld [vmem:[#allocation14 + $0x34] sm:$0xf]
    %v1586 = vld [vmem:[#allocation14 + $0x38] sm:$0xf]
    %v1587 = vld [vmem:[#allocation14 + $0x3c] sm:$0xf]
    %v1604 = vunpack.c.l.b16 %v1572
    %v1605 = vunpack.c.l.b16 %v1573
    %v1606 = vunpack.c.l.b16 %v1574
    %v1607 = vunpack.c.l.b16 %v1575
    %v1608 = vunpack.c.l.b16 %v1576
    %v1609 = vunpack.c.l.b16 %v1577
    %v1610 = vunpack.c.l.b16 %v1578
    %v1611 = vunpack.c.l.b16 %v1579
    %v1612 = vunpack.c.l.b16 %v1580
    %v1613 = vunpack.c.l.b16 %v1581
    %v1614 = vunpack.c.l.b16 %v1582
    %v1615 = vunpack.c.l.b16 %v1583
    %v1616 = vunpack.c.l.b16 %v1584
    %v1617 = vunpack.c.l.b16 %v1585
    %v1618 = vunpack.c.l.b16 %v1586
    %v1619 = vunpack.c.l.b16 %v1587
    %v1620 = vpack.c.b16 %v1605, %v1604
    %v1621 = vpack.c.b16 %v1607, %v1606
    %v1622 = vpack.c.b16 %v1609, %v1608
    %v1623 = vpack.c.b16 %v1611, %v1610
    %v1624 = vpack.c.b16 %v1613, %v1612
    %v1625 = vpack.c.b16 %v1615, %v1614
    %v1626 = vpack.c.b16 %v1617, %v1616
    %v1627 = vpack.c.b16 %v1619, %v1618
    %1636 = vmatprep.subr.bf16.mxu0 0
    %1637 = vmatpush1.bf16.msra.mxu0 %v1620
    %1638 = vmatprep.subr.bf16.mxu0 0
    %1639 = vmatpush1.bf16.msra.mxu0 %v1621
    %1640 = vmatprep.subr.bf16.mxu0 0
    %1641 = vmatpush1.bf16.msra.mxu0 %v1622
    %1642 = vmatprep.subr.bf16.mxu0 0
    %1643 = vmatpush1.bf16.msra.mxu0 %v1623
    %1644 = vmatprep.subr.bf16.mxu0 0
    %1645 = vmatpush1.bf16.msra.mxu0 %v1624
    %1646 = vmatprep.subr.bf16.mxu0 0
    %1647 = vmatpush1.bf16.msra.mxu0 %v1625
    %1648 = vmatprep.subr.bf16.mxu0 0
    %1649 = vmatpush1.bf16.msra.mxu0 %v1626
    %1650 = vmatprep.subr.bf16.mxu0 0
    %1651 = vmatpush1.bf16.msra.mxu0 %v1627
    %1652 = vmatprep.subr.bf16.mxu0 0
    %1653 = vmatpush1.bf16.msra.mxu0 0
    %1654 = vmatprep.subr.bf16.mxu0 0
    %1655 = vmatpush1.bf16.msra.mxu0 0
    %1656 = vmatprep.subr.bf16.mxu0 0
    %1657 = vmatpush1.bf16.msra.mxu0 0
    %1658 = vmatprep.subr.bf16.mxu0 0
    %1659 = vmatpush1.bf16.msra.mxu0 0
    %1660 = vmatprep.subr.bf16.mxu0 0
    %1661 = vmatpush1.bf16.msra.mxu0 0
    %1662 = vmatprep.subr.bf16.mxu0 0
    %1663 = vmatpush1.bf16.msra.mxu0 0
    %1664 = vmatprep.subr.bf16.mxu0 0
    %1665 = vmatpush1.bf16.msra.mxu0 0
    %1666 = vmatprep.subr.bf16.mxu0 0
    %1667 = vmatpush1.bf16.msra.mxu0 0
    %1668 = vmatprep.mubr.bf16.mxu0 0
    %1669 = vmatmul.mubr.bf16.gmra.mrb[0].mxu0 %v1571
    %v1670 = vpop.f32.mrb[0].mxu0
    %v1671 = vadd.f32 0.0, %v1670
    %v1672 = vpop.f32.mrb[0].mxu0
    %v1673 = vpop.f32.mrb[0].mxu0
    %v1674 = vadd.f32 0.0, %v1673
    %v1675 = vpop.f32.mrb[0].mxu0
    %1676 = vdwg.mxu0
    %v1693 = vunpack.c.l.b16 %v1555
    %v1694 = vunpack.c.l.b16 %v1556
    %v1695 = vunpack.c.l.b16 %v1557
    %v1696 = vunpack.c.l.b16 %v1558
    %v1697 = vunpack.c.l.b16 %v1559
    %v1698 = vunpack.c.l.b16 %v1560
    %v1699 = vunpack.c.l.b16 %v1561
    %v1700 = vunpack.c.l.b16 %v1562
    %v1701 = vunpack.c.l.b16 %v1563
    %v1702 = vunpack.c.l.b16 %v1564
    %v1703 = vunpack.c.l.b16 %v1565
    %v1704 = vunpack.c.l.b16 %v1566
    %v1705 = vunpack.c.l.b16 %v1567
    %v1706 = vunpack.c.l.b16 %v1568
    %v1707 = vunpack.c.l.b16 %v1569
    %v1708 = vunpack.c.l.b16 %v1570
    %v1709 = vpack.c.b16 %v1694, %v1693
    %v1710 = vpack.c.b16 %v1696, %v1695
    %v1711 = vpack.c.b16 %v1698, %v1697
    %v1712 = vpack.c.b16 %v1700, %v1699
    %v1713 = vpack.c.b16 %v1702, %v1701
    %v1714 = vpack.c.b16 %v1704, %v1703
    %v1715 = vpack.c.b16 %v1706, %v1705
    %v1716 = vpack.c.b16 %v1708, %v1707
    %1725 = vmatprep.subr.bf16.mxu0 0
    %1726 = vmatpush1.bf16.msra.mxu0 %v1709
    %1727 = vmatprep.subr.bf16.mxu0 0
    %1728 = vmatpush1.bf16.msra.mxu0 %v1710
    %1729 = vmatprep.subr.bf16.mxu0 0
    %1730 = vmatpush1.bf16.msra.mxu0 %v1711
    %1731 = vmatprep.subr.bf16.mxu0 0
    %1732 = vmatpush1.bf16.msra.mxu0 %v1712
    %1733 = vmatprep.subr.bf16.mxu0 0
    %1734 = vmatpush1.bf16.msra.mxu0 %v1713
    %1735 = vmatprep.subr.bf16.mxu0 0
    %1736 = vmatpush1.bf16.msra.mxu0 %v1714
    %1737 = vmatprep.subr.bf16.mxu0 0
    %1738 = vmatpush1.bf16.msra.mxu0 %v1715
    %1739 = vmatprep.subr.bf16.mxu0 0
    %1740 = vmatpush1.bf16.msra.mxu0 %v1716
    %1741 = vmatprep.subr.bf16.mxu0 0
    %1742 = vmatpush1.bf16.msra.mxu0 0
    %1743 = vmatprep.subr.bf16.mxu0 0
    %1744 = vmatpush1.bf16.msra.mxu0 0
    %1745 = vmatprep.subr.bf16.mxu0 0
    %1746 = vmatpush1.bf16.msra.mxu0 0
    %1747 = vmatprep.subr.bf16.mxu0 0
    %1748 = vmatpush1.bf16.msra.mxu0 0
    %1749 = vmatprep.subr.bf16.mxu0 0
    %1750 = vmatpush1.bf16.msra.mxu0 0
    %1751 = vmatprep.subr.bf16.mxu0 0
    %1752 = vmatpush1.bf16.msra.mxu0 0
    %1753 = vmatprep.subr.bf16.mxu0 0
    %1754 = vmatpush1.bf16.msra.mxu0 0
    %1755 = vmatprep.subr.bf16.mxu0 0
    %1756 = vmatpush1.bf16.msra.mxu0 0
    %1757 = vmatprep.mubr.bf16.mxu0 0
    %1758 = vmatmul.mubr.bf16.gmra.mrb[0].mxu0 %v244
    %v1759 = vpop.f32.mrb[0].mxu0
    %v1760 = vadd.f32 %v1671, %v1759
    %v1761 = vpop.f32.mrb[0].mxu0
    %v1762 = vpop.f32.mrb[0].mxu0
    %v1763 = vadd.f32 %v1674, %v1762
    %v1764 = vpop.f32.mrb[0].mxu0
    %1765 = vdwg.mxu0
    %v1766 = vld [vmem:[%s13] sm:$0x1]
    %v1768 = vlaneseq
    %v1769 = vshrl.u32 %v1768, 7
    %v1770 = vsub.s32 0, %v1769
    %v1771 = vrot.slane %v1766, %v1770
    %v1773 = vadd.f32 %v1760, %v1771
    %v1774 = vadd.f32 %v1763, %v1771
    %v1775 = vxor.u32 %v1773, 2147483648
    %v1776 = vxor.u32 %v1774, 2147483648
    %v1777 = vmul.f32 %v1775, 1.442695
    %v1778 = vpow.pop %v1777
    %v1779 = vmul.f32 %v1776, 1.442695
    %v1780 = vpow.pop %v1779
    %v1781 = vadd.f32 %v1778, 1.0
    %v1782 = vadd.f32 %v1780, 1.0
    %v1783 = vrcp.pop %v1781
    %v1784 = vmul.f32 1.0, %v1783
    %v1785 = vrcp.pop %v1782
    %v1786 = vmul.f32 1.0, %v1785
    %v1787 = vmul.f32 %v1784, %v242
    %v1788 = vmul.f32 %v1786, %v243
    %v1789 = vsub.f32 1.0, %v1784
    %v1790 = vsub.f32 1.0, %v1786
    %v1791 = vmul.f32 %v1789, %v1549
    %v1792 = vmul.f32 %v1790, %v1552
    %v1793 = vadd.f32 %v1787, %v1791
    %v1794 = vadd.f32 %v1788, %v1792
    %1795 = vmin.xlane.f32.xlu0 %v1793
    %v1796 = vpop.xlane.xlu0 %1795
    %1797 = vmin.xlane.f32.xlu0 %v1794
    %v1798 = vpop.xlane.xlu0 %1797
    %1799 = vmax.xlane.f32.xlu0 %v1793
    %v1800 = vpop.xlane.xlu0 %1799
    %1801 = vmax.xlane.f32.xlu0 %v1794
    %v1802 = vpop.xlane.xlu0 %1801
    %v1803 = vadd.f32 %v1796, %v1800
    %v1804 = vadd.f32 %v1798, %v1802
    %v1805 = vmul.f32 %v1803, 0.5
    %v1806 = vmul.f32 %v1804, 0.5
    %vm1807 = vcmp.ge.f32.partialorder %v1793, %v1805
    %vm1808 = vcmp.ge.f32.partialorder %v1794, %v1806
    %v1809 = vsel %vm1807, 1, 0
    %v1810 = vsel %vm1808, 1, 0
    %v1811 = vcvt.s32.f32 %v1809
    %v1812 = vcvt.s32.f32 %v1810
    %1813 = vadd.xlane.f32.xlu0 %v1811
    %v1814 = vpop.xlane.xlu0 %1813
    %1815 = vadd.xlane.f32.xlu0 %v1812
    %v1816 = vpop.xlane.xlu0 %1815
    %vm1817 = vcmp.ge.f32.partialorder %v1814, 16.0
    %vm1818 = vcmp.ge.f32.partialorder %v1816, 16.0
    %v1819 = vsel %vm1817, %v1805, %v1796
    %v1820 = vsel %vm1818, %v1806, %v1798
    %v1821 = vsel %vm1817, %v1800, %v1805
    %v1822 = vsel %vm1818, %v1802, %v1806
    %v1823 = vadd.f32 %v1819, %v1821
    %v1824 = vadd.f32 %v1820, %v1822
    %v1825 = vmul.f32 %v1823, 0.5
    %v1826 = vmul.f32 %v1824, 0.5
    %vm1827 = vcmp.ge.f32.partialorder %v1793, %v1825
    %vm1828 = vcmp.ge.f32.partialorder %v1794, %v1826
    %v1829 = vsel %vm1827, 1, 0
    %v1830 = vsel %vm1828, 1, 0
    %v1831 = vcvt.s32.f32 %v1829
    %v1832 = vcvt.s32.f32 %v1830
    %1833 = vadd.xlane.f32.xlu0 %v1831
    %v1834 = vpop.xlane.xlu0 %1833
    %1835 = vadd.xlane.f32.xlu0 %v1832
    %v1836 = vpop.xlane.xlu0 %1835
    %vm1837 = vcmp.ge.f32.partialorder %v1834, 16.0
    %vm1838 = vcmp.ge.f32.partialorder %v1836, 16.0
    %v1839 = vsel %vm1837, %v1825, %v1819
    %v1840 = vsel %vm1838, %v1826, %v1820
    %v1841 = vsel %vm1837, %v1821, %v1825
    %v1842 = vsel %vm1838, %v1822, %v1826
    %v1843 = vadd.f32 %v1839, %v1841
    %v1844 = vadd.f32 %v1840, %v1842
    %v1845 = vmul.f32 %v1843, 0.5
    %v1846 = vmul.f32 %v1844, 0.5
    %vm1847 = vcmp.ge.f32.partialorder %v1793, %v1845
    %vm1848 = vcmp.ge.f32.partialorder %v1794, %v1846
    %v1849 = vsel %vm1847, 1, 0
    %v1850 = vsel %vm1848, 1, 0
    %v1851 = vcvt.s32.f32 %v1849
    %v1852 = vcvt.s32.f32 %v1850
    %1853 = vadd.xlane.f32.xlu0 %v1851
    %v1854 = vpop.xlane.xlu0 %1853
    %1855 = vadd.xlane.f32.xlu0 %v1852
    %v1856 = vpop.xlane.xlu0 %1855
    %vm1857 = vcmp.ge.f32.partialorder %v1854, 16.0
    %vm1858 = vcmp.ge.f32.partialorder %v1856, 16.0
    %v1859 = vsel %vm1857, %v1845, %v1839
    %v1860 = vsel %vm1858, %v1846, %v1840
    %v1861 = vsel %vm1857, %v1841, %v1845
    %v1862 = vsel %vm1858, %v1842, %v1846
    %v1863 = vadd.f32 %v1859, %v1861
    %v1864 = vadd.f32 %v1860, %v1862
    %v1865 = vmul.f32 %v1863, 0.5
    %v1866 = vmul.f32 %v1864, 0.5
    %vm1867 = vcmp.ge.f32.partialorder %v1793, %v1865
    %vm1868 = vcmp.ge.f32.partialorder %v1794, %v1866
    %v1869 = vsel %vm1867, 1, 0
    %v1870 = vsel %vm1868, 1, 0
    %v1871 = vcvt.s32.f32 %v1869
    %v1872 = vcvt.s32.f32 %v1870
    %1873 = vadd.xlane.f32.xlu0 %v1871
    %v1874 = vpop.xlane.xlu0 %1873
    %1875 = vadd.xlane.f32.xlu0 %v1872
    %v1876 = vpop.xlane.xlu0 %1875
    %vm1877 = vcmp.ge.f32.partialorder %v1874, 16.0
    %vm1878 = vcmp.ge.f32.partialorder %v1876, 16.0
    %v1879 = vsel %vm1877, %v1865, %v1859
    %v1880 = vsel %vm1878, %v1866, %v1860
    %v1881 = vsel %vm1877, %v1861, %v1865
    %v1882 = vsel %vm1878, %v1862, %v1866
    %v1883 = vadd.f32 %v1879, %v1881
    %v1884 = vadd.f32 %v1880, %v1882
    %v1885 = vmul.f32 %v1883, 0.5
    %v1886 = vmul.f32 %v1884, 0.5
    %vm1887 = vcmp.ge.f32.partialorder %v1793, %v1885
    %vm1888 = vcmp.ge.f32.partialorder %v1794, %v1886
    %v1889 = vsel %vm1887, 1, 0
    %v1890 = vsel %vm1888, 1, 0
    %v1891 = vcvt.s32.f32 %v1889
    %v1892 = vcvt.s32.f32 %v1890
    %1893 = vadd.xlane.f32.xlu0 %v1891
    %v1894 = vpop.xlane.xlu0 %1893
    %1895 = vadd.xlane.f32.xlu0 %v1892
    %v1896 = vpop.xlane.xlu0 %1895
    %vm1897 = vcmp.ge.f32.partialorder %v1894, 16.0
    %vm1898 = vcmp.ge.f32.partialorder %v1896, 16.0
    %v1899 = vsel %vm1897, %v1885, %v1879
    %v1900 = vsel %vm1898, %v1886, %v1880
    %v1901 = vsel %vm1897, %v1881, %v1885
    %v1902 = vsel %vm1898, %v1882, %v1886
    %v1903 = vadd.f32 %v1899, %v1901
    %v1904 = vadd.f32 %v1900, %v1902
    %v1905 = vmul.f32 %v1903, 0.5
    %v1906 = vmul.f32 %v1904, 0.5
    %vm1907 = vcmp.ge.f32.partialorder %v1793, %v1905
    %vm1908 = vcmp.ge.f32.partialorder %v1794, %v1906
    %v1909 = vsel %vm1907, 1, 0
    %v1910 = vsel %vm1908, 1, 0
    %v1911 = vcvt.s32.f32 %v1909
    %v1912 = vcvt.s32.f32 %v1910
    %1913 = vadd.xlane.f32.xlu0 %v1911
    %v1914 = vpop.xlane.xlu0 %1913
    %1915 = vadd.xlane.f32.xlu0 %v1912
    %v1916 = vpop.xlane.xlu0 %1915
    %vm1917 = vcmp.ge.f32.partialorder %v1914, 16.0
    %vm1918 = vcmp.ge.f32.partialorder %v1916, 16.0
    %v1919 = vsel %vm1917, %v1905, %v1899
    %v1920 = vsel %vm1918, %v1906, %v1900
    %v1921 = vsel %vm1917, %v1901, %v1905
    %v1922 = vsel %vm1918, %v1902, %v1906
    %v1923 = vadd.f32 %v1919, %v1921
    %v1924 = vadd.f32 %v1920, %v1922
    %v1925 = vmul.f32 %v1923, 0.5
    %v1926 = vmul.f32 %v1924, 0.5
    %vm1927 = vcmp.ge.f32.partialorder %v1793, %v1925
    %vm1928 = vcmp.ge.f32.partialorder %v1794, %v1926
    %v1929 = vsel %vm1927, 1, 0
    %v1930 = vsel %vm1928, 1, 0
    %v1931 = vcvt.s32.f32 %v1929
    %v1932 = vcvt.s32.f32 %v1930
    %1933 = vadd.xlane.f32.xlu0 %v1931
    %v1934 = vpop.xlane.xlu0 %1933
    %1935 = vadd.xlane.f32.xlu0 %v1932
    %v1936 = vpop.xlane.xlu0 %1935
    %vm1937 = vcmp.ge.f32.partialorder %v1934, 16.0
    %vm1938 = vcmp.ge.f32.partialorder %v1936, 16.0
    %v1939 = vsel %vm1937, %v1925, %v1919
    %v1940 = vsel %vm1938, %v1926, %v1920
    %v1941 = vsel %vm1937, %v1921, %v1925
    %v1942 = vsel %vm1938, %v1922, %v1926
    %v1943 = vadd.f32 %v1939, %v1941
    %v1944 = vadd.f32 %v1940, %v1942
    %v1945 = vmul.f32 %v1943, 0.5
    %v1946 = vmul.f32 %v1944, 0.5
    %vm1947 = vcmp.ge.f32.partialorder %v1793, %v1945
    %vm1948 = vcmp.ge.f32.partialorder %v1794, %v1946
    %v1949 = vsel %vm1947, 1, 0
    %v1950 = vsel %vm1948, 1, 0
    %v1951 = vcvt.s32.f32 %v1949
    %v1952 = vcvt.s32.f32 %v1950
    %1953 = vadd.xlane.f32.xlu0 %v1951
    %v1954 = vpop.xlane.xlu0 %1953
    %1955 = vadd.xlane.f32.xlu0 %v1952
    %v1956 = vpop.xlane.xlu0 %1955
    %vm1957 = vcmp.ge.f32.partialorder %v1954, 16.0
    %vm1958 = vcmp.ge.f32.partialorder %v1956, 16.0
    %v1959 = vsel %vm1957, %v1945, %v1939
    %v1960 = vsel %vm1958, %v1946, %v1940
    %v1961 = vsel %vm1957, %v1941, %v1945
    %v1962 = vsel %vm1958, %v1942, %v1946
    %v1963 = vadd.f32 %v1959, %v1961
    %v1964 = vadd.f32 %v1960, %v1962
    %v1965 = vmul.f32 %v1963, 0.5
    %v1966 = vmul.f32 %v1964, 0.5
    %vm1967 = vcmp.ge.f32.partialorder %v1793, %v1965
    %vm1968 = vcmp.ge.f32.partialorder %v1794, %v1966
    %v1969 = vsel %vm1967, 1, 0
    %v1970 = vsel %vm1968, 1, 0
    %v1971 = vcvt.s32.f32 %v1969
    %v1972 = vcvt.s32.f32 %v1970
    %1973 = vadd.xlane.f32.xlu0 %v1971
    %v1974 = vpop.xlane.xlu0 %1973
    %1975 = vadd.xlane.f32.xlu0 %v1972
    %v1976 = vpop.xlane.xlu0 %1975
    %vm1977 = vcmp.ge.f32.partialorder %v1974, 16.0
    %vm1978 = vcmp.ge.f32.partialorder %v1976, 16.0
    %v1979 = vsel %vm1977, %v1965, %v1959
    %v1980 = vsel %vm1978, %v1966, %v1960
    %v1981 = vsel %vm1977, %v1961, %v1965
    %v1982 = vsel %vm1978, %v1962, %v1966
    %v1983 = vadd.f32 %v1979, %v1981
    %v1984 = vadd.f32 %v1980, %v1982
    %v1985 = vmul.f32 %v1983, 0.5
    %v1986 = vmul.f32 %v1984, 0.5
    %vm1987 = vcmp.ge.f32.partialorder %v1793, %v1985
    %vm1988 = vcmp.ge.f32.partialorder %v1794, %v1986
    %v1989 = vsel %vm1987, 1, 0
    %v1990 = vsel %vm1988, 1, 0
    %v1991 = vcvt.s32.f32 %v1989
    %v1992 = vcvt.s32.f32 %v1990
    %1993 = vadd.xlane.f32.xlu0 %v1991
    %v1994 = vpop.xlane.xlu0 %1993
    %1995 = vadd.xlane.f32.xlu0 %v1992
    %v1996 = vpop.xlane.xlu0 %1995
    %vm1997 = vcmp.ge.f32.partialorder %v1994, 16.0
    %vm1998 = vcmp.ge.f32.partialorder %v1996, 16.0
    %v1999 = vsel %vm1997, %v1985, %v1979
    %v2000 = vsel %vm1998, %v1986, %v1980
    %v2001 = vsel %vm1997, %v1981, %v1985
    %v2002 = vsel %vm1998, %v1982, %v1986
    %v2003 = vadd.f32 %v1999, %v2001
    %v2004 = vadd.f32 %v2000, %v2002
    %v2005 = vmul.f32 %v2003, 0.5
    %v2006 = vmul.f32 %v2004, 0.5
    %vm2007 = vcmp.ge.f32.partialorder %v1793, %v2005
    %vm2008 = vcmp.ge.f32.partialorder %v1794, %v2006
    %v2009 = vsel %vm2007, 1, 0
    %v2010 = vsel %vm2008, 1, 0
    %v2011 = vcvt.s32.f32 %v2009
    %v2012 = vcvt.s32.f32 %v2010
    %2013 = vadd.xlane.f32.xlu0 %v2011
    %v2014 = vpop.xlane.xlu0 %2013
    %2015 = vadd.xlane.f32.xlu0 %v2012
    %v2016 = vpop.xlane.xlu0 %2015
    %vm2017 = vcmp.ge.f32.partialorder %v2014, 16.0
    %vm2018 = vcmp.ge.f32.partialorder %v2016, 16.0
    %v2019 = vsel %vm2017, %v2005, %v1999
    %v2020 = vsel %vm2018, %v2006, %v2000
    %v2021 = vsel %vm2017, %v2001, %v2005
    %v2022 = vsel %vm2018, %v2002, %v2006
    %v2023 = vadd.f32 %v2019, %v2021
    %v2024 = vadd.f32 %v2020, %v2022
    %v2025 = vmul.f32 %v2023, 0.5
    %v2026 = vmul.f32 %v2024, 0.5
    %vm2027 = vcmp.ge.f32.partialorder %v1793, %v2025
    %vm2028 = vcmp.ge.f32.partialorder %v1794, %v2026
    %v2029 = vsel %vm2027, 1, 0
    %v2030 = vsel %vm2028, 1, 0
    %v2031 = vcvt.s32.f32 %v2029
    %v2032 = vcvt.s32.f32 %v2030
    %2033 = vadd.xlane.f32.xlu0 %v2031
    %v2034 = vpop.xlane.xlu0 %2033
    %2035 = vadd.xlane.f32.xlu0 %v2032
    %v2036 = vpop.xlane.xlu0 %2035
    %vm2037 = vcmp.ge.f32.partialorder %v2034, 16.0
    %vm2038 = vcmp.ge.f32.partialorder %v2036, 16.0
    %v2039 = vsel %vm2037, %v2025, %v2019
    %v2040 = vsel %vm2038, %v2026, %v2020
    %v2041 = vsel %vm2037, %v2021, %v2025
    %v2042 = vsel %vm2038, %v2022, %v2026
    %v2043 = vadd.f32 %v2039, %v2041
    %v2044 = vadd.f32 %v2040, %v2042
    %v2045 = vmul.f32 %v2043, 0.5
    %v2046 = vmul.f32 %v2044, 0.5
    %vm2047 = vcmp.ge.f32.partialorder %v1793, %v2045
    %vm2048 = vcmp.ge.f32.partialorder %v1794, %v2046
    %v2049 = vsel %vm2047, 1, 0
    %v2050 = vsel %vm2048, 1, 0
    %v2051 = vcvt.s32.f32 %v2049
    %v2052 = vcvt.s32.f32 %v2050
    %2053 = vadd.xlane.f32.xlu0 %v2051
    %v2054 = vpop.xlane.xlu0 %2053
    %2055 = vadd.xlane.f32.xlu0 %v2052
    %v2056 = vpop.xlane.xlu0 %2055
    %vm2057 = vcmp.ge.f32.partialorder %v2054, 16.0
    %vm2058 = vcmp.ge.f32.partialorder %v2056, 16.0
    %v2059 = vsel %vm2057, %v2045, %v2039
    %v2060 = vsel %vm2058, %v2046, %v2040
    %v2061 = vsel %vm2057, %v2041, %v2045
    %v2062 = vsel %vm2058, %v2042, %v2046
    %v2063 = vadd.f32 %v2059, %v2061
    %v2064 = vadd.f32 %v2060, %v2062
    %v2065 = vmul.f32 %v2063, 0.5
    %v2066 = vmul.f32 %v2064, 0.5
    %vm2067 = vcmp.ge.f32.partialorder %v1793, %v2065
    %vm2068 = vcmp.ge.f32.partialorder %v1794, %v2066
    %v2069 = vsel %vm2067, 1, 0
    %v2070 = vsel %vm2068, 1, 0
    %v2071 = vcvt.s32.f32 %v2069
    %v2072 = vcvt.s32.f32 %v2070
    %2073 = vadd.xlane.f32.xlu0 %v2071
    %v2074 = vpop.xlane.xlu0 %2073
    %2075 = vadd.xlane.f32.xlu0 %v2072
    %v2076 = vpop.xlane.xlu0 %2075
    %vm2077 = vcmp.ge.f32.partialorder %v2074, 16.0
    %vm2078 = vcmp.ge.f32.partialorder %v2076, 16.0
    %v2079 = vsel %vm2077, %v2065, %v2059
    %v2080 = vsel %vm2078, %v2066, %v2060
    %v2081 = vsel %vm2077, %v2061, %v2065
    %v2082 = vsel %vm2078, %v2062, %v2066
    %v2083 = vadd.f32 %v2079, %v2081
    %v2084 = vadd.f32 %v2080, %v2082
    %v2085 = vmul.f32 %v2083, 0.5
    %v2086 = vmul.f32 %v2084, 0.5
    %vm2087 = vcmp.ge.f32.partialorder %v1793, %v2085
    %vm2088 = vcmp.ge.f32.partialorder %v1794, %v2086
    %v2089 = vsel %vm2087, 1, 0
    %v2090 = vsel %vm2088, 1, 0
    %v2091 = vcvt.s32.f32 %v2089
    %v2092 = vcvt.s32.f32 %v2090
    %2093 = vadd.xlane.f32.xlu0 %v2091
    %v2094 = vpop.xlane.xlu0 %2093
    %2095 = vadd.xlane.f32.xlu0 %v2092
    %v2096 = vpop.xlane.xlu0 %2095
    %vm2097 = vcmp.ge.f32.partialorder %v2094, 16.0
    %vm2098 = vcmp.ge.f32.partialorder %v2096, 16.0
    %v2099 = vsel %vm2097, %v2085, %v2079
    %v2100 = vsel %vm2098, %v2086, %v2080
    %v2101 = vsel %vm2097, %v2081, %v2085
    %v2102 = vsel %vm2098, %v2082, %v2086
    %v2103 = vadd.f32 %v2099, %v2101
    %v2104 = vadd.f32 %v2100, %v2102
    %v2105 = vmul.f32 %v2103, 0.5
    %v2106 = vmul.f32 %v2104, 0.5
    %vm2107 = vcmp.ge.f32.partialorder %v1793, %v2105
    %vm2108 = vcmp.ge.f32.partialorder %v1794, %v2106
    %v2109 = vsel %vm2107, 1, 0
    %v2110 = vsel %vm2108, 1, 0
    %v2111 = vcvt.s32.f32 %v2109
    %v2112 = vcvt.s32.f32 %v2110
    %2113 = vadd.xlane.f32.xlu0 %v2111
    %v2114 = vpop.xlane.xlu0 %2113
    %2115 = vadd.xlane.f32.xlu0 %v2112
    %v2116 = vpop.xlane.xlu0 %2115
    %vm2117 = vcmp.ge.f32.partialorder %v2114, 16.0
    %vm2118 = vcmp.ge.f32.partialorder %v2116, 16.0
    %v2119 = vsel %vm2117, %v2105, %v2099
    %v2120 = vsel %vm2118, %v2106, %v2100
    %v2121 = vsel %vm2117, %v2101, %v2105
    %v2122 = vsel %vm2118, %v2102, %v2106
    %v2123 = vadd.f32 %v2119, %v2121
    %v2124 = vadd.f32 %v2120, %v2122
    %v2125 = vmul.f32 %v2123, 0.5
    %v2126 = vmul.f32 %v2124, 0.5
    %vm2127 = vcmp.ge.f32.partialorder %v1793, %v2125
    %vm2128 = vcmp.ge.f32.partialorder %v1794, %v2126
    %v2129 = vsel %vm2127, 1, 0
    %v2130 = vsel %vm2128, 1, 0
    %v2131 = vcvt.s32.f32 %v2129
    %v2132 = vcvt.s32.f32 %v2130
    %2133 = vadd.xlane.f32.xlu0 %v2131
    %v2134 = vpop.xlane.xlu0 %2133
    %2135 = vadd.xlane.f32.xlu0 %v2132
    %v2136 = vpop.xlane.xlu0 %2135
    %vm2137 = vcmp.ge.f32.partialorder %v2134, 16.0
    %vm2138 = vcmp.ge.f32.partialorder %v2136, 16.0
    %v2139 = vsel %vm2137, %v2125, %v2119
    %v2140 = vsel %vm2138, %v2126, %v2120
    %v2141 = vsel %vm2137, %v2121, %v2125
    %v2142 = vsel %vm2138, %v2122, %v2126
    %v2143 = vadd.f32 %v2139, %v2141
    %v2144 = vadd.f32 %v2140, %v2142
    %v2145 = vmul.f32 %v2143, 0.5
    %v2146 = vmul.f32 %v2144, 0.5
    %vm2147 = vcmp.ge.f32.partialorder %v1793, %v2145
    %vm2148 = vcmp.ge.f32.partialorder %v1794, %v2146
    %v2149 = vsel %vm2147, 1, 0
    %v2150 = vsel %vm2148, 1, 0
    %v2151 = vcvt.s32.f32 %v2149
    %v2152 = vcvt.s32.f32 %v2150
    %2153 = vadd.xlane.f32.xlu0 %v2151
    %v2154 = vpop.xlane.xlu0 %2153
    %2155 = vadd.xlane.f32.xlu0 %v2152
    %v2156 = vpop.xlane.xlu0 %2155
    %vm2157 = vcmp.ge.f32.partialorder %v2154, 16.0
    %vm2158 = vcmp.ge.f32.partialorder %v2156, 16.0
    %v2159 = vsel %vm2157, %v2145, %v2139
    %v2160 = vsel %vm2158, %v2146, %v2140
    %v2161 = vsel %vm2157, %v2141, %v2145
    %v2162 = vsel %vm2158, %v2142, %v2146
    %v2163 = vadd.f32 %v2159, %v2161
    %v2164 = vadd.f32 %v2160, %v2162
    %v2165 = vmul.f32 %v2163, 0.5
    %v2166 = vmul.f32 %v2164, 0.5
    %vm2167 = vcmp.ge.f32.partialorder %v1793, %v2165
    %vm2168 = vcmp.ge.f32.partialorder %v1794, %v2166
    %v2169 = vsel %vm2167, 1, 0
    %v2170 = vsel %vm2168, 1, 0
    %v2171 = vcvt.s32.f32 %v2169
    %v2172 = vcvt.s32.f32 %v2170
    %2173 = vadd.xlane.f32.xlu0 %v2171
    %v2174 = vpop.xlane.xlu0 %2173
    %2175 = vadd.xlane.f32.xlu0 %v2172
    %v2176 = vpop.xlane.xlu0 %2175
    %vm2177 = vcmp.ge.f32.partialorder %v2174, 16.0
    %vm2178 = vcmp.ge.f32.partialorder %v2176, 16.0
    %v2179 = vsel %vm2177, %v2165, %v2159
    %v2180 = vsel %vm2178, %v2166, %v2160
    %v2181 = vsel %vm2177, %v2161, %v2165
    %v2182 = vsel %vm2178, %v2162, %v2166
    %v2183 = vadd.f32 %v2179, %v2181
    %v2184 = vadd.f32 %v2180, %v2182
    %v2185 = vmul.f32 %v2183, 0.5
    %v2186 = vmul.f32 %v2184, 0.5
    %vm2187 = vcmp.ge.f32.partialorder %v1793, %v2185
    %vm2188 = vcmp.ge.f32.partialorder %v1794, %v2186
    %v2189 = vsel %vm2187, 1, 0
    %v2190 = vsel %vm2188, 1, 0
    %v2191 = vcvt.s32.f32 %v2189
    %v2192 = vcvt.s32.f32 %v2190
    %2193 = vadd.xlane.f32.xlu0 %v2191
    %v2194 = vpop.xlane.xlu0 %2193
    %2195 = vadd.xlane.f32.xlu0 %v2192
    %v2196 = vpop.xlane.xlu0 %2195
    %vm2197 = vcmp.ge.f32.partialorder %v2194, 16.0
    %vm2198 = vcmp.ge.f32.partialorder %v2196, 16.0
    %v2199 = vsel %vm2197, %v2185, %v2179
    %v2200 = vsel %vm2198, %v2186, %v2180
    %v2201 = vsel %vm2197, %v2181, %v2185
    %v2202 = vsel %vm2198, %v2182, %v2186
    %v2203 = vadd.f32 %v2199, %v2201
    %v2204 = vadd.f32 %v2200, %v2202
    %v2205 = vmul.f32 %v2203, 0.5
    %v2206 = vmul.f32 %v2204, 0.5
    %vm2207 = vcmp.ge.f32.partialorder %v1793, %v2205
    %vm2208 = vcmp.ge.f32.partialorder %v1794, %v2206
    %v2209 = vsel %vm2207, 1, 0
    %v2210 = vsel %vm2208, 1, 0
    %v2211 = vcvt.s32.f32 %v2209
    %v2212 = vcvt.s32.f32 %v2210
    %2213 = vadd.xlane.f32.xlu0 %v2211
    %v2214 = vpop.xlane.xlu0 %2213
    %2215 = vadd.xlane.f32.xlu0 %v2212
    %v2216 = vpop.xlane.xlu0 %2215
    %vm2217 = vcmp.ge.f32.partialorder %v2214, 16.0
    %vm2218 = vcmp.ge.f32.partialorder %v2216, 16.0
    %v2219 = vsel %vm2217, %v2205, %v2199
    %v2220 = vsel %vm2218, %v2206, %v2200
    %v2221 = vsel %vm2217, %v2201, %v2205
    %v2222 = vsel %vm2218, %v2202, %v2206
    %v2223 = vadd.f32 %v2219, %v2221
    %v2224 = vadd.f32 %v2220, %v2222
    %v2225 = vmul.f32 %v2223, 0.5
    %v2226 = vmul.f32 %v2224, 0.5
    %vm2227 = vcmp.ge.f32.partialorder %v1793, %v2225
    %vm2228 = vcmp.ge.f32.partialorder %v1794, %v2226
    %v2229 = vsel %vm2227, 1, 0
    %v2230 = vsel %vm2228, 1, 0
    %v2231 = vcvt.s32.f32 %v2229
    %v2232 = vcvt.s32.f32 %v2230
    %2233 = vadd.xlane.f32.xlu0 %v2231
    %v2234 = vpop.xlane.xlu0 %2233
    %2235 = vadd.xlane.f32.xlu0 %v2232
    %v2236 = vpop.xlane.xlu0 %2235
    %vm2237 = vcmp.ge.f32.partialorder %v2234, 16.0
    %vm2238 = vcmp.ge.f32.partialorder %v2236, 16.0
    %v2239 = vsel %vm2237, %v2225, %v2219
    %v2240 = vsel %vm2238, %v2226, %v2220
    %v2241 = vsub.f32 %v1793, %v2239
    %v2242 = vsub.f32 %v1794, %v2240
    %v2243 = vmax.f32 %v2241, 0.0
    %v2244 = vmax.f32 %v2242, 0.0
    %v2245 = vpack.c.bf16 %v2244, %v2243
    %v2246 = vld [vmem:[#allocation16] sm:$0xf]
    %v2247 = vld [vmem:[#allocation16 + $0x4] sm:$0xf]
    %v2248 = vld [vmem:[#allocation16 + $0x8] sm:$0xf]
    %v2249 = vld [vmem:[#allocation16 + $0xc] sm:$0xf]
    %v2250 = vld [vmem:[#allocation16 + $0x10] sm:$0xf]
    %v2251 = vld [vmem:[#allocation16 + $0x14] sm:$0xf]
    %v2252 = vld [vmem:[#allocation16 + $0x18] sm:$0xf]
    %v2253 = vld [vmem:[#allocation16 + $0x1c] sm:$0xf]
    %v2254 = vld [vmem:[#allocation16 + $0x20] sm:$0xf]
    %v2255 = vld [vmem:[#allocation16 + $0x24] sm:$0xf]
    %v2256 = vld [vmem:[#allocation16 + $0x28] sm:$0xf]
    %v2257 = vld [vmem:[#allocation16 + $0x2c] sm:$0xf]
    %v2258 = vld [vmem:[#allocation16 + $0x30] sm:$0xf]
    %v2259 = vld [vmem:[#allocation16 + $0x34] sm:$0xf]
    %v2260 = vld [vmem:[#allocation16 + $0x38] sm:$0xf]
    %v2261 = vld [vmem:[#allocation16 + $0x3c] sm:$0xf]
    %v2262 = vld [vmem:[%s15] sm:$0x1]
    %v2264 = vlaneseq
    %v2265 = vshrl.u32 %v2264, 7
    %v2266 = vsub.s32 0, %v2265
    %v2267 = vrot.slane %v2262, %v2266
    %v2285 = vunpack.c.l.b16 %v2246
    %v2286 = vunpack.c.l.b16 %v2247
    %v2287 = vunpack.c.l.b16 %v2248
    %v2288 = vunpack.c.l.b16 %v2249
    %v2289 = vunpack.c.l.b16 %v2250
    %v2290 = vunpack.c.l.b16 %v2251
    %v2291 = vunpack.c.l.b16 %v2252
    %v2292 = vunpack.c.l.b16 %v2253
    %v2293 = vunpack.c.l.b16 %v2254
    %v2294 = vunpack.c.l.b16 %v2255
    %v2295 = vunpack.c.l.b16 %v2256
    %v2296 = vunpack.c.l.b16 %v2257
    %v2297 = vunpack.c.l.b16 %v2258
    %v2298 = vunpack.c.l.b16 %v2259
    %v2299 = vunpack.c.l.b16 %v2260
    %v2300 = vunpack.c.l.b16 %v2261
    %v2301 = vpack.c.b16 %v2286, %v2285
    %v2302 = vpack.c.b16 %v2288, %v2287
    %v2303 = vpack.c.b16 %v2290, %v2289
    %v2304 = vpack.c.b16 %v2292, %v2291
    %v2305 = vpack.c.b16 %v2294, %v2293
    %v2306 = vpack.c.b16 %v2296, %v2295
    %v2307 = vpack.c.b16 %v2298, %v2297
    %v2308 = vpack.c.b16 %v2300, %v2299
    %2317 = vmatprep.subr.bf16.mxu0 0
    %2318 = vmatpush1.bf16.msra.mxu0 %v2301
    %2319 = vmatprep.subr.bf16.mxu0 0
    %2320 = vmatpush1.bf16.msra.mxu0 %v2302
    %2321 = vmatprep.subr.bf16.mxu0 0
    %2322 = vmatpush1.bf16.msra.mxu0 %v2303
    %2323 = vmatprep.subr.bf16.mxu0 0
    %2324 = vmatpush1.bf16.msra.mxu0 %v2304
    %2325 = vmatprep.subr.bf16.mxu0 0
    %2326 = vmatpush1.bf16.msra.mxu0 %v2305
    %2327 = vmatprep.subr.bf16.mxu0 0
    %2328 = vmatpush1.bf16.msra.mxu0 %v2306
    %2329 = vmatprep.subr.bf16.mxu0 0
    %2330 = vmatpush1.bf16.msra.mxu0 %v2307
    %2331 = vmatprep.subr.bf16.mxu0 0
    %2332 = vmatpush1.bf16.msra.mxu0 %v2308
    %2333 = vmatprep.subr.bf16.mxu0 0
    %2334 = vmatpush1.bf16.msra.mxu0 0
    %2335 = vmatprep.subr.bf16.mxu0 0
    %2336 = vmatpush1.bf16.msra.mxu0 0
    %2337 = vmatprep.subr.bf16.mxu0 0
    %2338 = vmatpush1.bf16.msra.mxu0 0
    %2339 = vmatprep.subr.bf16.mxu0 0
    %2340 = vmatpush1.bf16.msra.mxu0 0
    %2341 = vmatprep.subr.bf16.mxu0 0
    %2342 = vmatpush1.bf16.msra.mxu0 0
    %2343 = vmatprep.subr.bf16.mxu0 0
    %2344 = vmatpush1.bf16.msra.mxu0 0
    %2345 = vmatprep.subr.bf16.mxu0 0
    %2346 = vmatpush1.bf16.msra.mxu0 0
    %2347 = vmatprep.subr.bf16.mxu0 0
    %2348 = vmatpush1.bf16.msra.mxu0 0
    %2349 = vmatprep.mubr.bf16.mxu0 0
    %2350 = vmatmul.mubr.bf16.gmra.mrb[0].mxu0 %v2245
    %v2351 = vpop.f32.mrb[0].mxu0
    %v2352 = vadd.f32 %v2267, %v2351
    %v2353 = vpop.f32.mrb[0].mxu0
    %v2354 = vpop.f32.mrb[0].mxu0
    %v2355 = vadd.f32 %v2267, %v2354
    %v2356 = vpop.f32.mrb[0].mxu0
    %2357 = vdwg.mxu0
    %2358 = vst [vmem:[#allocation17] sm:$0xff] %v2352
    %2359 = vst [vmem:[#allocation17 + $0x8] sm:$0xff] %v2355
    // Predicated region
    $region102: #{tpu_custom_call.1} parent=1 // pred_check
      _
    $region103: #{tpu_custom_call.1} parent=1 // pred_check_branch
      %2361 = sbr.rel (0) target = $region105
    $region104: #{tpu_custom_call.1} parent=1 // pred_region
      %s2363 = ssub.s32 256, 256
      %2364 = vsyncadd [#allocation4], %s2363
      %s2365 = sshll.u32 [#allocation17], 4
      %s2366 = int_to_ptr.vmem [resolvable:$true] %s2365
      %2371 = dma.vmem_to_hbm [thread:$0]  %s2366, 256, %s16, [#allocation4], 128, 128, 8
    $region105: #{tpu_custom_call.1} parent=1 // pred_fallthru
      _
    // Predicated region
    $region106: #{tpu_custom_call.1} parent=1 // pred_check
      _
    $region107: #{tpu_custom_call.1} parent=1 // pred_check_branch
      %2373 = sbr.rel (0) target = $region109
    $region108: #{tpu_custom_call.1} parent=1 // pred_region
      %2374 = dma.done [#allocation4], 256
    $region109: #{tpu_custom_call.1} parent=1 // pred_fallthru
      _
    %2375 = vsyncpa [#allocation3], 1
    %2376 = vsyncpa [#allocation6], 1
    %2377 = vsyncpa [#allocation9], 1
    %2378 = vsyncpa [#allocation12], 1
    %2379 = vsyncpa [#allocation15], 1
    %2380 = vsyncpa [#allocation4], 1

</llo_original>
